<compile_context>
chip_gen: v7x
topology: tpu7x:2x2x1
jax: 0.10.0
libtpu: 0.0.40
codegen_flags: <defaults>
</compile_context>

<pallas_src>
import functools

import numpy as np
import jax
import jax.numpy as jnp
from jax.experimental import pallas as pl
from jax.experimental.pallas import tpu as pltpu


# ---------------------------------------------------------------------------
# Compile-time DFT constants
# ---------------------------------------------------------------------------
@functools.lru_cache(maxsize=None)
def _dft_matrix(n: int):
    """Ortho-normalized DFT matrix of size n as (real, imag) f32 numpy arrays."""
    idx = np.arange(n, dtype=np.float64)
    ang = -2.0 * np.pi * np.outer(idx, idx) / float(n)
    scale = 1.0 / np.sqrt(float(n))
    return ((np.cos(ang) * scale).astype(np.float32),
            (np.sin(ang) * scale).astype(np.float32))


@functools.lru_cache(maxsize=None)
def _dc_constants(nx: int, ny: int):
    """Row-DFT matrices plus 'realified' column-DFT matrices.

    Ar/Ai  (2*ny, ny): interleaved [re,im,re,im,...] lanes -> planar column DFT
                       (T = X @ Fy, complex) in 2 real matmuls.
    Br/Bi  (ny, 2*ny): planar -> interleaved inverse column DFT
                       (out = U @ conj(Fy)) in 2 real matmuls.
    """
    fxr, fxi = _dft_matrix(nx)
    fyr, fyi = _dft_matrix(ny)

    ayr = np.empty((2 * ny, ny), np.float32)
    ayi = np.empty((2 * ny, ny), np.float32)
    ayr[0::2], ayr[1::2] = fyr, -fyi          # Tr = Xr@Fyr - Xi@Fyi
    ayi[0::2], ayi[1::2] = fyi, fyr           # Ti = Xr@Fyi + Xi@Fyr

    byr = np.empty((ny, 2 * ny), np.float32)
    byi = np.empty((ny, 2 * ny), np.float32)
    byr[:, 0::2], byr[:, 1::2] = fyr, -fyi    # even lanes Rr, odd lanes Ri
    byi[:, 0::2], byi[:, 1::2] = fyi, fyr     # (conj(Fy) = Fyr - i*Fyi)

    return fxr, fxi, ayr, ayi, byr, byi


# ---------------------------------------------------------------------------
# Batch-block / device heuristics
# ---------------------------------------------------------------------------
def _multi_tensorcore() -> bool:
    """True on parts with >1 TensorCore per chip (v4 / v5p / v7x)."""
    try:
        kind = jax.devices()[0].device_kind.lower()
    except Exception:  # pragma: no cover - defensive
        return False
    return any(tag in kind for tag in ("v4", "v5p", "v7"))


def _pick_batch_block(B: int, Nx: int, Ny: int, multi_tc: bool) -> int:
    """Images per grid step.

    With per-image processing inside the kernel, Bblk only amortizes per-step
    pipeline overhead and DMA granularity, so grow it until the double-buffered
    I/O working set hits a conservative budget.  Keep >=2 grid steps only on
    multi-TensorCore chips so the "parallel" batch axis can feed both cores.
    """
    plane = Nx * Ny * 4
    budget = 24 * 1024 * 1024
    best = 1
    for cand in range(1, B + 1):
        if B % cand:
            continue
        if multi_tc and B >= 2 and (B // cand) < 2:
            continue
        if cand * plane * 18 > budget:        # 9 I/O planes, double-buffered
            break
        best = cand
    return best


# ---------------------------------------------------------------------------
# Kernel
# ---------------------------------------------------------------------------
def _dc_kernel(fxr_ref, fxi_ref, ayr_ref, ayi_ref, byr_ref, byi_ref,
               x_ref, k0_ref, m_ref, o_ref):
    """Per batch block: X -> FFT2 -> data consistency -> IFFT2.

    x_ref : (Bblk, Nx, 2*Ny) f32, lane-interleaved [re, im, re, im, ...]
    k0_ref: (2, Bblk, Nx, Ny) f32, planar (real, imag)
    m_ref : (Bblk, Nx, Ny) int/bool mask
    o_ref : (Bblk, Nx, 2*Ny) f32, lane-interleaved output
    """
    Bblk = m_ref.shape[0]

    def split(a):
        """f32 -> (bf16 hi, bf16 lo) error-compensated split."""
        hi = a.astype(jnp.bfloat16)
        lo = (a - hi.astype(jnp.float32)).astype(jnp.bfloat16)
        return hi, lo

    def dot3(a_hl, b_hl):
        """~f32-accurate matmul via 3 bf16 MXU passes (drops lo@lo term)."""
        ah, al = a_hl
        bh, bl = b_hl
        d = lambda p, q: jnp.dot(p, q, preferred_element_type=jnp.float32)
        return d(ah, bh) + d(ah, bl) + d(al, bh)

    fxr = fxr_ref[...]
    fxi = fxi_ref[...]

    # Split the grid-invariant matrices once per grid step (hoisted out of the
    # per-image loop); cost is O(N^2) VPU work vs O(N^3) MXU work.
    fxr_s = split(fxr)
    fxi_s = split(fxi)
    fxs_s = split(fxr + fxi)          # forward-row Karatsuba sum operand
    cxs_s = split(fxr - fxi)          # inverse-row (conj) Karatsuba sum operand
    ayr_s = split(ayr_ref[...])
    ayi_s = split(ayi_ref[...])
    byr_s = split(byr_ref[...])
    byi_s = split(byi_ref[...])

    for b in range(Bblk):             # static unrolled loop over images
        # ---- forward column DFT: interleaved -> planar (2 matmuls) --------
        xb_s = split(x_ref[b])                        # (Nx, 2Ny)
        tr = dot3(xb_s, ayr_s)                        # (Nx, Ny)
        ti = dot3(xb_s, ayi_s)

        # ---- forward row DFT: K = Fx @ T (Karatsuba, 3 matmuls) -----------
        tr_s, ti_s, ts_s = split(tr), split(ti), split(tr + ti)
        p1 = dot3(fxr_s, tr_s)
        p2 = dot3(fxi_s, ti_s)
        p3 = dot3(fxs_s, ts_s)
        kr = p1 - p2
        ki = p3 - p1 - p2

        # ---- data consistency (noise_lvl=None): (1-m)*k + m*k0 ------------
        m = m_ref[b].astype(jnp.float32)              # (Nx, Ny)
        nm = 1.0 - m
        dcr = nm * kr + m * k0_ref[0, b]
        dci = nm * ki + m * k0_ref[1, b]
        # TODO(synk): noise_lvl branch -> (k + v*k0)/(1+v) inside the mask.

        # ---- inverse row DFT: U = conj(Fx) @ DC (Karatsuba, 3 matmuls) ----
        dr_s, di_s, ds_s = split(dcr), split(dci), split(dcr + dci)
        q1 = dot3(fxr_s, dr_s)
        q2 = dot3(fxi_s, di_s)
        q3 = dot3(cxs_s, ds_s)
        ur = q1 + q2                                   # Fxr@dcr + Fxi@dci
        ui = q3 - q1 + q2                              # Fxr@dci - Fxi@dcr

        # ---- inverse column DFT: planar -> interleaved (2 matmuls) --------
        o_ref[b] = dot3(split(ur), byr_s) + dot3(split(ui), byi_s)


# ---------------------------------------------------------------------------
# Wrapper
# ---------------------------------------------------------------------------
@jax.jit
def data_consistency_in_kspace(x, k0, mask):
    """
    x    : f32 [B, Nx, Ny, 2]  image-domain (real, imag)
    k0   : f32 [B, Nx, Ny, 2]  sampled k-space (real, imag)
    mask : int [B, Nx, Ny, 1]  sampling mask
    returns f32 [B, Nx, Ny, 2]
    """
    B, Nx, Ny, two = x.shape
    assert two == 2, "last dim must be (real, imag)"

    multi_tc = _multi_tensorcore()
    Bblk = _pick_batch_block(B, Nx, Ny, multi_tc)

    # Free metadata reshapes: interleaved lanes for x / output, planar mask.
    x_int = x.reshape(B, Nx, 2 * Ny)
    m = mask.reshape(B, Nx, Ny)                 # dtype passes through as-is
    # The one remaining layout copy: planar k0 for the in-k-space merge.
    k0p = jnp.transpose(k0, (3, 0, 1, 2))       # (2, B, Nx, Ny)

    fxr, fxi, ayr, ayi, byr, byi = _dc_constants(Nx, Ny)

    spec_fx = pl.BlockSpec((Nx, Nx), lambda g: (0, 0))
    spec_ay = pl.BlockSpec((2 * Ny, Ny), lambda g: (0, 0))
    spec_by = pl.BlockSpec((Ny, 2 * Ny), lambda g: (0, 0))
    x_spec = pl.BlockSpec((Bblk, Nx, 2 * Ny), lambda g: (g, 0, 0))
    k0_spec = pl.BlockSpec((2, Bblk, Nx, Ny), lambda g: (0, g, 0, 0))
    m_spec = pl.BlockSpec((Bblk, Nx, Ny), lambda g: (g, 0, 0))

    # VMEM budget: double-buffered matrices + their in-kernel bf16 splits,
    # double-buffered I/O blocks, and per-image temporaries.  Capped at 48 MiB
    # (headroom under v7x's 64 MiB), floored at 32 MiB (above v5e's default).
    plane = Nx * Ny * 4
    mat_f32 = (2 * Nx * Nx + 4 * 2 * Ny * Ny) * 4
    request = 3 * mat_f32 + 18 * Bblk * plane + 16 * plane
    vmem_limit = int(min(48 * 1024 * 1024, max(32 * 1024 * 1024, request)))

    # Advisory cost estimate so XLA can overlap surrounding ops.
    macs = B * (8 * Nx * Ny * Ny + 6 * Nx * Nx * Ny)
    cost = pl.CostEstimate(flops=int(2 * macs),
                           transcendentals=0,
                           bytes_accessed=int(B * 9 * plane + mat_f32))

    out_int = pl.pallas_call(
        _dc_kernel,
        out_shape=jax.ShapeDtypeStruct((B, Nx, 2 * Ny), jnp.float32),
        grid_spec=pltpu.PrefetchScalarGridSpec(
            num_scalar_prefetch=0,
            grid=(B // Bblk,),
            in_specs=[spec_fx, spec_fx, spec_ay, spec_ay, spec_by, spec_by,
                      x_spec, k0_spec, m_spec],
            out_specs=x_spec,
        ),
        compiler_params=pltpu.CompilerParams(
            dimension_semantics=("parallel",),
            vmem_limit_bytes=vmem_limit),
        cost_estimate=cost,
    )(jnp.asarray(fxr), jnp.asarray(fxi),
      jnp.asarray(ayr), jnp.asarray(ayi),
      jnp.asarray(byr), jnp.asarray(byi),
      x_int, k0p, m)

    return out_int.reshape(B, Nx, Ny, 2)        # free reshape back to module layout


# ---------------------------------------------------------------------------
# Reference + self-test
# ---------------------------------------------------------------------------
def _reference(x, k0, mask):
    """Pure-JAX reference mirroring the PyTorch module semantics."""
    xc = x[..., 0] + 1j * x[..., 1]
    k0c = k0[..., 0] + 1j * k0[..., 1]
    m = mask[..., 0].astype(jnp.float32)
    k = jnp.fft.fft2(xc, norm="ortho")
    out = (1.0 - m) * k + m * k0c
    xr = jnp.fft.ifft2(out, norm="ortho")
    return jnp.stack([jnp.real(xr), jnp.imag(xr)], axis=-1).astype(jnp.float32)


if __name__ == "__main__":
    key = jax.random.PRNGKey(0)

    # Small main case + a case that exercises the batch-blocked path.
    for (B, Nx, Ny) in [(2, 16, 16), (4, 32, 32)]:
        key, kx, kk, km = jax.random.split(key, 4)
        x = jax.random.normal(kx, (B, Nx, Ny, 2), dtype=jnp.float32)
        k0 = jax.random.normal(kk, (B, Nx, Ny, 2), dtype=jnp.float32)
        mask = jax.random.bernoulli(km, 0.4, (B, Nx, Ny, 1)).astype(jnp.int32)

        out = jax.block_until_ready(data_consistency_in_kspace(x, k0, mask))
        ref = _reference(x, k0, mask)

        assert out.shape == (B, Nx, Ny, 2)
        assert jnp.allclose(out, ref, atol=1e-3, rtol=1e-3), \
            f"max abs err {float(jnp.max(jnp.abs(out - ref)))} at shape {(B, Nx, Ny)}"

    print("KERNEL_OK")
</pallas_src>

<mosaic_0001>
module attributes {stable_mosaic.version = 11 : i64} {
  func.func @_dc_kernel(%arg0: i32, %arg1: memref<16x16xf32, #tpu.memory_space<vmem>>, %arg2: memref<16x16xf32, #tpu.memory_space<vmem>>, %arg3: memref<32x16xf32, #tpu.memory_space<vmem>>, %arg4: memref<32x16xf32, #tpu.memory_space<vmem>>, %arg5: memref<16x32xf32, #tpu.memory_space<vmem>>, %arg6: memref<16x32xf32, #tpu.memory_space<vmem>>, %arg7: memref<2x16x32xf32, #tpu.memory_space<vmem>>, %arg8: memref<2x2x16x16xf32, #tpu.memory_space<vmem>>, %arg9: memref<2x16x16xi32, #tpu.memory_space<vmem>>, %arg10: memref<2x16x32xf32, #tpu.memory_space<vmem>>) attributes {dimension_semantics = [#tpu.dimension_semantics<parallel>], iteration_bounds = array<i64: 1>, scalar_prefetch = 0 : i64, scratch_operands = 0 : i64, tpu.core_type = #tpu.core_type<tc>, window_params = [{pipeline_mode = #tpu.pipeline_mode<synchronous>, transform_indices = @transform_0, window_bounds = array<i64: 16, 16>}, {pipeline_mode = #tpu.pipeline_mode<synchronous>, transform_indices = @transform_1, window_bounds = array<i64: 16, 16>}, {pipeline_mode = #tpu.pipeline_mode<synchronous>, transform_indices = @transform_2, window_bounds = array<i64: 32, 16>}, {pipeline_mode = #tpu.pipeline_mode<synchronous>, transform_indices = @transform_3, window_bounds = array<i64: 32, 16>}, {pipeline_mode = #tpu.pipeline_mode<synchronous>, transform_indices = @transform_4, window_bounds = array<i64: 16, 32>}, {pipeline_mode = #tpu.pipeline_mode<synchronous>, transform_indices = @transform_5, window_bounds = array<i64: 16, 32>}, {transform_indices = @transform_6, window_bounds = array<i64: 2, 16, 32>}, {transform_indices = @transform_7, window_bounds = array<i64: 2, 2, 16, 16>}, {transform_indices = @transform_8, window_bounds = array<i64: 2, 16, 16>}, {transform_indices = @transform_9, window_bounds = array<i64: 2, 16, 32>}]} {
    %c0 = arith.constant 0 : index
    %c0_0 = arith.constant 0 : index
    %0 = vector.load %arg1[%c0, %c0_0] : memref<16x16xf32, #tpu.memory_space<vmem>>, vector<16x16xf32>
    %c0_1 = arith.constant 0 : index
    %c0_2 = arith.constant 0 : index
    %1 = vector.load %arg2[%c0_1, %c0_2] : memref<16x16xf32, #tpu.memory_space<vmem>>, vector<16x16xf32>
    %2 = arith.truncf %0 : vector<16x16xf32> to vector<16x16xbf16>
    %3 = arith.extf %2 : vector<16x16xbf16> to vector<16x16xf32>
    %4 = arith.subf %0, %3 : vector<16x16xf32>
    %5 = arith.truncf %4 : vector<16x16xf32> to vector<16x16xbf16>
    %6 = arith.truncf %1 : vector<16x16xf32> to vector<16x16xbf16>
    %7 = arith.extf %6 : vector<16x16xbf16> to vector<16x16xf32>
    %8 = arith.subf %1, %7 : vector<16x16xf32>
    %9 = arith.truncf %8 : vector<16x16xf32> to vector<16x16xbf16>
    %10 = arith.addf %0, %1 : vector<16x16xf32>
    %11 = arith.truncf %10 : vector<16x16xf32> to vector<16x16xbf16>
    %12 = arith.extf %11 : vector<16x16xbf16> to vector<16x16xf32>
    %13 = arith.subf %10, %12 : vector<16x16xf32>
    %14 = arith.truncf %13 : vector<16x16xf32> to vector<16x16xbf16>
    %15 = arith.subf %0, %1 : vector<16x16xf32>
    %16 = arith.truncf %15 : vector<16x16xf32> to vector<16x16xbf16>
    %17 = arith.extf %16 : vector<16x16xbf16> to vector<16x16xf32>
    %18 = arith.subf %15, %17 : vector<16x16xf32>
    %19 = arith.truncf %18 : vector<16x16xf32> to vector<16x16xbf16>
    %c0_3 = arith.constant 0 : index
    %c0_4 = arith.constant 0 : index
    %20 = vector.load %arg3[%c0_3, %c0_4] : memref<32x16xf32, #tpu.memory_space<vmem>>, vector<32x16xf32>
    %21 = arith.truncf %20 : vector<32x16xf32> to vector<32x16xbf16>
    %22 = arith.extf %21 : vector<32x16xbf16> to vector<32x16xf32>
    %23 = arith.subf %20, %22 : vector<32x16xf32>
    %24 = arith.truncf %23 : vector<32x16xf32> to vector<32x16xbf16>
    %c0_5 = arith.constant 0 : index
    %c0_6 = arith.constant 0 : index
    %25 = vector.load %arg4[%c0_5, %c0_6] : memref<32x16xf32, #tpu.memory_space<vmem>>, vector<32x16xf32>
    %26 = arith.truncf %25 : vector<32x16xf32> to vector<32x16xbf16>
    %27 = arith.extf %26 : vector<32x16xbf16> to vector<32x16xf32>
    %28 = arith.subf %25, %27 : vector<32x16xf32>
    %29 = arith.truncf %28 : vector<32x16xf32> to vector<32x16xbf16>
    %c0_7 = arith.constant 0 : index
    %c0_8 = arith.constant 0 : index
    %30 = vector.load %arg5[%c0_7, %c0_8] : memref<16x32xf32, #tpu.memory_space<vmem>>, vector<16x32xf32>
    %31 = arith.truncf %30 : vector<16x32xf32> to vector<16x32xbf16>
    %32 = arith.extf %31 : vector<16x32xbf16> to vector<16x32xf32>
    %33 = arith.subf %30, %32 : vector<16x32xf32>
    %34 = arith.truncf %33 : vector<16x32xf32> to vector<16x32xbf16>
    %c0_9 = arith.constant 0 : index
    %c0_10 = arith.constant 0 : index
    %35 = vector.load %arg6[%c0_9, %c0_10] : memref<16x32xf32, #tpu.memory_space<vmem>>, vector<16x32xf32>
    %36 = arith.truncf %35 : vector<16x32xf32> to vector<16x32xbf16>
    %37 = arith.extf %36 : vector<16x32xbf16> to vector<16x32xf32>
    %38 = arith.subf %35, %37 : vector<16x32xf32>
    %39 = arith.truncf %38 : vector<16x32xf32> to vector<16x32xbf16>
    %c0_11 = arith.constant 0 : index
    %c0_12 = arith.constant 0 : index
    %c0_13 = arith.constant 0 : index
    %40 = vector.load %arg7[%c0_11, %c0_12, %c0_13] : memref<2x16x32xf32, #tpu.memory_space<vmem>>, vector<1x16x32xf32>
    %41 = vector.shape_cast %40 : vector<1x16x32xf32> to vector<16x32xf32>
    %42 = arith.truncf %41 : vector<16x32xf32> to vector<16x32xbf16>
    %43 = arith.extf %42 : vector<16x32xbf16> to vector<16x32xf32>
    %44 = arith.subf %41, %43 : vector<16x32xf32>
    %45 = arith.truncf %44 : vector<16x32xf32> to vector<16x32xbf16>
    %cst = arith.constant dense<0.000000e+00> : vector<16x16xf32>
    %46 = tpu.matmul %42, %21, %cst {dimension_numbers = #tpu.dot_dimension_numbers<[1], [0], [0], [1], [0, 0, 1, 1], [], []>} : vector<16x32xbf16>, vector<32x16xbf16>, vector<16x16xf32> -> vector<16x16xf32>
    %cst_14 = arith.constant dense<0.000000e+00> : vector<16x16xf32>
    %47 = tpu.matmul %42, %24, %cst_14 {dimension_numbers = #tpu.dot_dimension_numbers<[1], [0], [0], [1], [0, 0, 1, 1], [], []>} : vector<16x32xbf16>, vector<32x16xbf16>, vector<16x16xf32> -> vector<16x16xf32>
    %48 = arith.addf %46, %47 : vector<16x16xf32>
    %cst_15 = arith.constant dense<0.000000e+00> : vector<16x16xf32>
    %49 = tpu.matmul %45, %21, %cst_15 {dimension_numbers = #tpu.dot_dimension_numbers<[1], [0], [0], [1], [0, 0, 1, 1], [], []>} : vector<16x32xbf16>, vector<32x16xbf16>, vector<16x16xf32> -> vector<16x16xf32>
    %50 = arith.addf %48, %49 : vector<16x16xf32>
    %cst_16 = arith.constant dense<0.000000e+00> : vector<16x16xf32>
    %51 = tpu.matmul %42, %26, %cst_16 {dimension_numbers = #tpu.dot_dimension_numbers<[1], [0], [0], [1], [0, 0, 1, 1], [], []>} : vector<16x32xbf16>, vector<32x16xbf16>, vector<16x16xf32> -> vector<16x16xf32>
    %cst_17 = arith.constant dense<0.000000e+00> : vector<16x16xf32>
    %52 = tpu.matmul %42, %29, %cst_17 {dimension_numbers = #tpu.dot_dimension_numbers<[1], [0], [0], [1], [0, 0, 1, 1], [], []>} : vector<16x32xbf16>, vector<32x16xbf16>, vector<16x16xf32> -> vector<16x16xf32>
    %53 = arith.addf %51, %52 : vector<16x16xf32>
    %cst_18 = arith.constant dense<0.000000e+00> : vector<16x16xf32>
    %54 = tpu.matmul %45, %26, %cst_18 {dimension_numbers = #tpu.dot_dimension_numbers<[1], [0], [0], [1], [0, 0, 1, 1], [], []>} : vector<16x32xbf16>, vector<32x16xbf16>, vector<16x16xf32> -> vector<16x16xf32>
    %55 = arith.addf %53, %54 : vector<16x16xf32>
    %56 = arith.truncf %50 : vector<16x16xf32> to vector<16x16xbf16>
    %57 = arith.extf %56 : vector<16x16xbf16> to vector<16x16xf32>
    %58 = arith.subf %50, %57 : vector<16x16xf32>
    %59 = arith.truncf %58 : vector<16x16xf32> to vector<16x16xbf16>
    %60 = arith.truncf %55 : vector<16x16xf32> to vector<16x16xbf16>
    %61 = arith.extf %60 : vector<16x16xbf16> to vector<16x16xf32>
    %62 = arith.subf %55, %61 : vector<16x16xf32>
    %63 = arith.truncf %62 : vector<16x16xf32> to vector<16x16xbf16>
    %64 = arith.addf %50, %55 : vector<16x16xf32>
    %65 = arith.truncf %64 : vector<16x16xf32> to vector<16x16xbf16>
    %66 = arith.extf %65 : vector<16x16xbf16> to vector<16x16xf32>
    %67 = arith.subf %64, %66 : vector<16x16xf32>
    %68 = arith.truncf %67 : vector<16x16xf32> to vector<16x16xbf16>
    %cst_19 = arith.constant dense<0.000000e+00> : vector<16x16xf32>
    %69 = tpu.matmul %2, %56, %cst_19 {dimension_numbers = #tpu.dot_dimension_numbers<[1], [0], [0], [1], [0, 0, 1, 1], [], []>} : vector<16x16xbf16>, vector<16x16xbf16>, vector<16x16xf32> -> vector<16x16xf32>
    %cst_20 = arith.constant dense<0.000000e+00> : vector<16x16xf32>
    %70 = tpu.matmul %2, %59, %cst_20 {dimension_numbers = #tpu.dot_dimension_numbers<[1], [0], [0], [1], [0, 0, 1, 1], [], []>} : vector<16x16xbf16>, vector<16x16xbf16>, vector<16x16xf32> -> vector<16x16xf32>
    %71 = arith.addf %69, %70 : vector<16x16xf32>
    %cst_21 = arith.constant dense<0.000000e+00> : vector<16x16xf32>
    %72 = tpu.matmul %5, %56, %cst_21 {dimension_numbers = #tpu.dot_dimension_numbers<[1], [0], [0], [1], [0, 0, 1, 1], [], []>} : vector<16x16xbf16>, vector<16x16xbf16>, vector<16x16xf32> -> vector<16x16xf32>
    %73 = arith.addf %71, %72 : vector<16x16xf32>
    %cst_22 = arith.constant dense<0.000000e+00> : vector<16x16xf32>
    %74 = tpu.matmul %6, %60, %cst_22 {dimension_numbers = #tpu.dot_dimension_numbers<[1], [0], [0], [1], [0, 0, 1, 1], [], []>} : vector<16x16xbf16>, vector<16x16xbf16>, vector<16x16xf32> -> vector<16x16xf32>
    %cst_23 = arith.constant dense<0.000000e+00> : vector<16x16xf32>
    %75 = tpu.matmul %6, %63, %cst_23 {dimension_numbers = #tpu.dot_dimension_numbers<[1], [0], [0], [1], [0, 0, 1, 1], [], []>} : vector<16x16xbf16>, vector<16x16xbf16>, vector<16x16xf32> -> vector<16x16xf32>
    %76 = arith.addf %74, %75 : vector<16x16xf32>
    %cst_24 = arith.constant dense<0.000000e+00> : vector<16x16xf32>
    %77 = tpu.matmul %9, %60, %cst_24 {dimension_numbers = #tpu.dot_dimension_numbers<[1], [0], [0], [1], [0, 0, 1, 1], [], []>} : vector<16x16xbf16>, vector<16x16xbf16>, vector<16x16xf32> -> vector<16x16xf32>
    %78 = arith.addf %76, %77 : vector<16x16xf32>
    %cst_25 = arith.constant dense<0.000000e+00> : vector<16x16xf32>
    %79 = tpu.matmul %11, %65, %cst_25 {dimension_numbers = #tpu.dot_dimension_numbers<[1], [0], [0], [1], [0, 0, 1, 1], [], []>} : vector<16x16xbf16>, vector<16x16xbf16>, vector<16x16xf32> -> vector<16x16xf32>
    %cst_26 = arith.constant dense<0.000000e+00> : vector<16x16xf32>
    %80 = tpu.matmul %11, %68, %cst_26 {dimension_numbers = #tpu.dot_dimension_numbers<[1], [0], [0], [1], [0, 0, 1, 1], [], []>} : vector<16x16xbf16>, vector<16x16xbf16>, vector<16x16xf32> -> vector<16x16xf32>
    %81 = arith.addf %79, %80 : vector<16x16xf32>
    %cst_27 = arith.constant dense<0.000000e+00> : vector<16x16xf32>
    %82 = tpu.matmul %14, %65, %cst_27 {dimension_numbers = #tpu.dot_dimension_numbers<[1], [0], [0], [1], [0, 0, 1, 1], [], []>} : vector<16x16xbf16>, vector<16x16xbf16>, vector<16x16xf32> -> vector<16x16xf32>
    %83 = arith.addf %81, %82 : vector<16x16xf32>
    %84 = arith.subf %73, %78 : vector<16x16xf32>
    %85 = arith.subf %83, %73 : vector<16x16xf32>
    %86 = arith.subf %85, %78 : vector<16x16xf32>
    %c0_28 = arith.constant 0 : index
    %c0_29 = arith.constant 0 : index
    %c0_30 = arith.constant 0 : index
    %87 = vector.load %arg9[%c0_28, %c0_29, %c0_30] : memref<2x16x16xi32, #tpu.memory_space<vmem>>, vector<1x16x16xi32>
    %88 = vector.shape_cast %87 : vector<1x16x16xi32> to vector<16x16xi32>
    %89 = arith.sitofp %88 : vector<16x16xi32> to vector<16x16xf32>
    %cst_31 = arith.constant 1.000000e+00 : f32
    %90 = vector.broadcast %cst_31 : f32 to vector<16x16xf32>
    %91 = arith.subf %90, %89 : vector<16x16xf32>
    %92 = arith.mulf %91, %84 : vector<16x16xf32>
    %c0_32 = arith.constant 0 : index
    %c0_33 = arith.constant 0 : index
    %c0_34 = arith.constant 0 : index
    %c0_35 = arith.constant 0 : index
    %93 = vector.load %arg8[%c0_32, %c0_33, %c0_34, %c0_35] : memref<2x2x16x16xf32, #tpu.memory_space<vmem>>, vector<1x1x16x16xf32>
    %94 = vector.shape_cast %93 : vector<1x1x16x16xf32> to vector<16x16xf32>
    %95 = arith.mulf %89, %94 : vector<16x16xf32>
    %96 = arith.addf %92, %95 : vector<16x16xf32>
    %97 = arith.mulf %91, %86 : vector<16x16xf32>
    %c1 = arith.constant 1 : index
    %c0_36 = arith.constant 0 : index
    %c0_37 = arith.constant 0 : index
    %c0_38 = arith.constant 0 : index
    %98 = vector.load %arg8[%c1, %c0_36, %c0_37, %c0_38] : memref<2x2x16x16xf32, #tpu.memory_space<vmem>>, vector<1x1x16x16xf32>
    %99 = vector.shape_cast %98 : vector<1x1x16x16xf32> to vector<16x16xf32>
    %100 = arith.mulf %89, %99 : vector<16x16xf32>
    %101 = arith.addf %97, %100 : vector<16x16xf32>
    %102 = arith.truncf %96 : vector<16x16xf32> to vector<16x16xbf16>
    %103 = arith.extf %102 : vector<16x16xbf16> to vector<16x16xf32>
    %104 = arith.subf %96, %103 : vector<16x16xf32>
    %105 = arith.truncf %104 : vector<16x16xf32> to vector<16x16xbf16>
    %106 = arith.truncf %101 : vector<16x16xf32> to vector<16x16xbf16>
    %107 = arith.extf %106 : vector<16x16xbf16> to vector<16x16xf32>
    %108 = arith.subf %101, %107 : vector<16x16xf32>
    %109 = arith.truncf %108 : vector<16x16xf32> to vector<16x16xbf16>
    %110 = arith.addf %96, %101 : vector<16x16xf32>
    %111 = arith.truncf %110 : vector<16x16xf32> to vector<16x16xbf16>
    %112 = arith.extf %111 : vector<16x16xbf16> to vector<16x16xf32>
    %113 = arith.subf %110, %112 : vector<16x16xf32>
    %114 = arith.truncf %113 : vector<16x16xf32> to vector<16x16xbf16>
    %cst_39 = arith.constant dense<0.000000e+00> : vector<16x16xf32>
    %115 = tpu.matmul %2, %102, %cst_39 {dimension_numbers = #tpu.dot_dimension_numbers<[1], [0], [0], [1], [0, 0, 1, 1], [], []>} : vector<16x16xbf16>, vector<16x16xbf16>, vector<16x16xf32> -> vector<16x16xf32>
    %cst_40 = arith.constant dense<0.000000e+00> : vector<16x16xf32>
    %116 = tpu.matmul %2, %105, %cst_40 {dimension_numbers = #tpu.dot_dimension_numbers<[1], [0], [0], [1], [0, 0, 1, 1], [], []>} : vector<16x16xbf16>, vector<16x16xbf16>, vector<16x16xf32> -> vector<16x16xf32>
    %117 = arith.addf %115, %116 : vector<16x16xf32>
    %cst_41 = arith.constant dense<0.000000e+00> : vector<16x16xf32>
    %118 = tpu.matmul %5, %102, %cst_41 {dimension_numbers = #tpu.dot_dimension_numbers<[1], [0], [0], [1], [0, 0, 1, 1], [], []>} : vector<16x16xbf16>, vector<16x16xbf16>, vector<16x16xf32> -> vector<16x16xf32>
    %119 = arith.addf %117, %118 : vector<16x16xf32>
    %cst_42 = arith.constant dense<0.000000e+00> : vector<16x16xf32>
    %120 = tpu.matmul %6, %106, %cst_42 {dimension_numbers = #tpu.dot_dimension_numbers<[1], [0], [0], [1], [0, 0, 1, 1], [], []>} : vector<16x16xbf16>, vector<16x16xbf16>, vector<16x16xf32> -> vector<16x16xf32>
    %cst_43 = arith.constant dense<0.000000e+00> : vector<16x16xf32>
    %121 = tpu.matmul %6, %109, %cst_43 {dimension_numbers = #tpu.dot_dimension_numbers<[1], [0], [0], [1], [0, 0, 1, 1], [], []>} : vector<16x16xbf16>, vector<16x16xbf16>, vector<16x16xf32> -> vector<16x16xf32>
    %122 = arith.addf %120, %121 : vector<16x16xf32>
    %cst_44 = arith.constant dense<0.000000e+00> : vector<16x16xf32>
    %123 = tpu.matmul %9, %106, %cst_44 {dimension_numbers = #tpu.dot_dimension_numbers<[1], [0], [0], [1], [0, 0, 1, 1], [], []>} : vector<16x16xbf16>, vector<16x16xbf16>, vector<16x16xf32> -> vector<16x16xf32>
    %124 = arith.addf %122, %123 : vector<16x16xf32>
    %cst_45 = arith.constant dense<0.000000e+00> : vector<16x16xf32>
    %125 = tpu.matmul %16, %111, %cst_45 {dimension_numbers = #tpu.dot_dimension_numbers<[1], [0], [0], [1], [0, 0, 1, 1], [], []>} : vector<16x16xbf16>, vector<16x16xbf16>, vector<16x16xf32> -> vector<16x16xf32>
    %cst_46 = arith.constant dense<0.000000e+00> : vector<16x16xf32>
    %126 = tpu.matmul %16, %114, %cst_46 {dimension_numbers = #tpu.dot_dimension_numbers<[1], [0], [0], [1], [0, 0, 1, 1], [], []>} : vector<16x16xbf16>, vector<16x16xbf16>, vector<16x16xf32> -> vector<16x16xf32>
    %127 = arith.addf %125, %126 : vector<16x16xf32>
    %cst_47 = arith.constant dense<0.000000e+00> : vector<16x16xf32>
    %128 = tpu.matmul %19, %111, %cst_47 {dimension_numbers = #tpu.dot_dimension_numbers<[1], [0], [0], [1], [0, 0, 1, 1], [], []>} : vector<16x16xbf16>, vector<16x16xbf16>, vector<16x16xf32> -> vector<16x16xf32>
    %129 = arith.addf %127, %128 : vector<16x16xf32>
    %130 = arith.addf %119, %124 : vector<16x16xf32>
    %131 = arith.subf %129, %119 : vector<16x16xf32>
    %132 = arith.addf %131, %124 : vector<16x16xf32>
    %133 = arith.truncf %130 : vector<16x16xf32> to vector<16x16xbf16>
    %134 = arith.extf %133 : vector<16x16xbf16> to vector<16x16xf32>
    %135 = arith.subf %130, %134 : vector<16x16xf32>
    %136 = arith.truncf %135 : vector<16x16xf32> to vector<16x16xbf16>
    %cst_48 = arith.constant dense<0.000000e+00> : vector<16x32xf32>
    %137 = tpu.matmul %133, %31, %cst_48 {dimension_numbers = #tpu.dot_dimension_numbers<[1], [0], [0], [1], [0, 0, 1, 1], [], []>} : vector<16x16xbf16>, vector<16x32xbf16>, vector<16x32xf32> -> vector<16x32xf32>
    %cst_49 = arith.constant dense<0.000000e+00> : vector<16x32xf32>
    %138 = tpu.matmul %133, %34, %cst_49 {dimension_numbers = #tpu.dot_dimension_numbers<[1], [0], [0], [1], [0, 0, 1, 1], [], []>} : vector<16x16xbf16>, vector<16x32xbf16>, vector<16x32xf32> -> vector<16x32xf32>
    %139 = arith.addf %137, %138 : vector<16x32xf32>
    %cst_50 = arith.constant dense<0.000000e+00> : vector<16x32xf32>
    %140 = tpu.matmul %136, %31, %cst_50 {dimension_numbers = #tpu.dot_dimension_numbers<[1], [0], [0], [1], [0, 0, 1, 1], [], []>} : vector<16x16xbf16>, vector<16x32xbf16>, vector<16x32xf32> -> vector<16x32xf32>
    %141 = arith.addf %139, %140 : vector<16x32xf32>
    %142 = arith.truncf %132 : vector<16x16xf32> to vector<16x16xbf16>
    %143 = arith.extf %142 : vector<16x16xbf16> to vector<16x16xf32>
    %144 = arith.subf %132, %143 : vector<16x16xf32>
    %145 = arith.truncf %144 : vector<16x16xf32> to vector<16x16xbf16>
    %cst_51 = arith.constant dense<0.000000e+00> : vector<16x32xf32>
    %146 = tpu.matmul %142, %36, %cst_51 {dimension_numbers = #tpu.dot_dimension_numbers<[1], [0], [0], [1], [0, 0, 1, 1], [], []>} : vector<16x16xbf16>, vector<16x32xbf16>, vector<16x32xf32> -> vector<16x32xf32>
    %cst_52 = arith.constant dense<0.000000e+00> : vector<16x32xf32>
    %147 = tpu.matmul %142, %39, %cst_52 {dimension_numbers = #tpu.dot_dimension_numbers<[1], [0], [0], [1], [0, 0, 1, 1], [], []>} : vector<16x16xbf16>, vector<16x32xbf16>, vector<16x32xf32> -> vector<16x32xf32>
    %148 = arith.addf %146, %147 : vector<16x32xf32>
    %cst_53 = arith.constant dense<0.000000e+00> : vector<16x32xf32>
    %149 = tpu.matmul %145, %36, %cst_53 {dimension_numbers = #tpu.dot_dimension_numbers<[1], [0], [0], [1], [0, 0, 1, 1], [], []>} : vector<16x16xbf16>, vector<16x32xbf16>, vector<16x32xf32> -> vector<16x32xf32>
    %150 = arith.addf %148, %149 : vector<16x32xf32>
    %151 = arith.addf %141, %150 : vector<16x32xf32>
    %c0_54 = arith.constant 0 : index
    %c0_55 = arith.constant 0 : index
    %c0_56 = arith.constant 0 : index
    %152 = vector.load %arg10[%c0_54, %c0_55, %c0_56] : memref<2x16x32xf32, #tpu.memory_space<vmem>>, vector<1x16x32xf32>
    %153 = vector.shape_cast %152 : vector<1x16x32xf32> to vector<16x32xf32>
    %154 = vector.shape_cast %151 : vector<16x32xf32> to vector<1x16x32xf32>
    tpu.vector_store %arg10[%c0_54, %c0_55, %c0_56], %154 {strides = array<i32>} : memref<2x16x32xf32, #tpu.memory_space<vmem>>, vector<1x16x32xf32>,
    %c1_57 = arith.constant 1 : index
    %c0_58 = arith.constant 0 : index
    %c0_59 = arith.constant 0 : index
    %155 = vector.load %arg7[%c1_57, %c0_58, %c0_59] : memref<2x16x32xf32, #tpu.memory_space<vmem>>, vector<1x16x32xf32>
    %156 = vector.shape_cast %155 : vector<1x16x32xf32> to vector<16x32xf32>
    %157 = arith.truncf %156 : vector<16x32xf32> to vector<16x32xbf16>
    %158 = arith.extf %157 : vector<16x32xbf16> to vector<16x32xf32>
    %159 = arith.subf %156, %158 : vector<16x32xf32>
    %160 = arith.truncf %159 : vector<16x32xf32> to vector<16x32xbf16>
    %cst_60 = arith.constant dense<0.000000e+00> : vector<16x16xf32>
    %161 = tpu.matmul %157, %21, %cst_60 {dimension_numbers = #tpu.dot_dimension_numbers<[1], [0], [0], [1], [0, 0, 1, 1], [], []>} : vector<16x32xbf16>, vector<32x16xbf16>, vector<16x16xf32> -> vector<16x16xf32>
    %cst_61 = arith.constant dense<0.000000e+00> : vector<16x16xf32>
    %162 = tpu.matmul %157, %24, %cst_61 {dimension_numbers = #tpu.dot_dimension_numbers<[1], [0], [0], [1], [0, 0, 1, 1], [], []>} : vector<16x32xbf16>, vector<32x16xbf16>, vector<16x16xf32> -> vector<16x16xf32>
    %163 = arith.addf %161, %162 : vector<16x16xf32>
    %cst_62 = arith.constant dense<0.000000e+00> : vector<16x16xf32>
    %164 = tpu.matmul %160, %21, %cst_62 {dimension_numbers = #tpu.dot_dimension_numbers<[1], [0], [0], [1], [0, 0, 1, 1], [], []>} : vector<16x32xbf16>, vector<32x16xbf16>, vector<16x16xf32> -> vector<16x16xf32>
    %165 = arith.addf %163, %164 : vector<16x16xf32>
    %cst_63 = arith.constant dense<0.000000e+00> : vector<16x16xf32>
    %166 = tpu.matmul %157, %26, %cst_63 {dimension_numbers = #tpu.dot_dimension_numbers<[1], [0], [0], [1], [0, 0, 1, 1], [], []>} : vector<16x32xbf16>, vector<32x16xbf16>, vector<16x16xf32> -> vector<16x16xf32>
    %cst_64 = arith.constant dense<0.000000e+00> : vector<16x16xf32>
    %167 = tpu.matmul %157, %29, %cst_64 {dimension_numbers = #tpu.dot_dimension_numbers<[1], [0], [0], [1], [0, 0, 1, 1], [], []>} : vector<16x32xbf16>, vector<32x16xbf16>, vector<16x16xf32> -> vector<16x16xf32>
    %168 = arith.addf %166, %167 : vector<16x16xf32>
    %cst_65 = arith.constant dense<0.000000e+00> : vector<16x16xf32>
    %169 = tpu.matmul %160, %26, %cst_65 {dimension_numbers = #tpu.dot_dimension_numbers<[1], [0], [0], [1], [0, 0, 1, 1], [], []>} : vector<16x32xbf16>, vector<32x16xbf16>, vector<16x16xf32> -> vector<16x16xf32>
    %170 = arith.addf %168, %169 : vector<16x16xf32>
    %171 = arith.truncf %165 : vector<16x16xf32> to vector<16x16xbf16>
    %172 = arith.extf %171 : vector<16x16xbf16> to vector<16x16xf32>
    %173 = arith.subf %165, %172 : vector<16x16xf32>
    %174 = arith.truncf %173 : vector<16x16xf32> to vector<16x16xbf16>
    %175 = arith.truncf %170 : vector<16x16xf32> to vector<16x16xbf16>
    %176 = arith.extf %175 : vector<16x16xbf16> to vector<16x16xf32>
    %177 = arith.subf %170, %176 : vector<16x16xf32>
    %178 = arith.truncf %177 : vector<16x16xf32> to vector<16x16xbf16>
    %179 = arith.addf %165, %170 : vector<16x16xf32>
    %180 = arith.truncf %179 : vector<16x16xf32> to vector<16x16xbf16>
    %181 = arith.extf %180 : vector<16x16xbf16> to vector<16x16xf32>
    %182 = arith.subf %179, %181 : vector<16x16xf32>
    %183 = arith.truncf %182 : vector<16x16xf32> to vector<16x16xbf16>
    %cst_66 = arith.constant dense<0.000000e+00> : vector<16x16xf32>
    %184 = tpu.matmul %2, %171, %cst_66 {dimension_numbers = #tpu.dot_dimension_numbers<[1], [0], [0], [1], [0, 0, 1, 1], [], []>} : vector<16x16xbf16>, vector<16x16xbf16>, vector<16x16xf32> -> vector<16x16xf32>
    %cst_67 = arith.constant dense<0.000000e+00> : vector<16x16xf32>
    %185 = tpu.matmul %2, %174, %cst_67 {dimension_numbers = #tpu.dot_dimension_numbers<[1], [0], [0], [1], [0, 0, 1, 1], [], []>} : vector<16x16xbf16>, vector<16x16xbf16>, vector<16x16xf32> -> vector<16x16xf32>
    %186 = arith.addf %184, %185 : vector<16x16xf32>
    %cst_68 = arith.constant dense<0.000000e+00> : vector<16x16xf32>
    %187 = tpu.matmul %5, %171, %cst_68 {dimension_numbers = #tpu.dot_dimension_numbers<[1], [0], [0], [1], [0, 0, 1, 1], [], []>} : vector<16x16xbf16>, vector<16x16xbf16>, vector<16x16xf32> -> vector<16x16xf32>
    %188 = arith.addf %186, %187 : vector<16x16xf32>
    %cst_69 = arith.constant dense<0.000000e+00> : vector<16x16xf32>
    %189 = tpu.matmul %6, %175, %cst_69 {dimension_numbers = #tpu.dot_dimension_numbers<[1], [0], [0], [1], [0, 0, 1, 1], [], []>} : vector<16x16xbf16>, vector<16x16xbf16>, vector<16x16xf32> -> vector<16x16xf32>
    %cst_70 = arith.constant dense<0.000000e+00> : vector<16x16xf32>
    %190 = tpu.matmul %6, %178, %cst_70 {dimension_numbers = #tpu.dot_dimension_numbers<[1], [0], [0], [1], [0, 0, 1, 1], [], []>} : vector<16x16xbf16>, vector<16x16xbf16>, vector<16x16xf32> -> vector<16x16xf32>
    %191 = arith.addf %189, %190 : vector<16x16xf32>
    %cst_71 = arith.constant dense<0.000000e+00> : vector<16x16xf32>
    %192 = tpu.matmul %9, %175, %cst_71 {dimension_numbers = #tpu.dot_dimension_numbers<[1], [0], [0], [1], [0, 0, 1, 1], [], []>} : vector<16x16xbf16>, vector<16x16xbf16>, vector<16x16xf32> -> vector<16x16xf32>
    %193 = arith.addf %191, %192 : vector<16x16xf32>
    %cst_72 = arith.constant dense<0.000000e+00> : vector<16x16xf32>
    %194 = tpu.matmul %11, %180, %cst_72 {dimension_numbers = #tpu.dot_dimension_numbers<[1], [0], [0], [1], [0, 0, 1, 1], [], []>} : vector<16x16xbf16>, vector<16x16xbf16>, vector<16x16xf32> -> vector<16x16xf32>
    %cst_73 = arith.constant dense<0.000000e+00> : vector<16x16xf32>
    %195 = tpu.matmul %11, %183, %cst_73 {dimension_numbers = #tpu.dot_dimension_numbers<[1], [0], [0], [1], [0, 0, 1, 1], [], []>} : vector<16x16xbf16>, vector<16x16xbf16>, vector<16x16xf32> -> vector<16x16xf32>
    %196 = arith.addf %194, %195 : vector<16x16xf32>
    %cst_74 = arith.constant dense<0.000000e+00> : vector<16x16xf32>
    %197 = tpu.matmul %14, %180, %cst_74 {dimension_numbers = #tpu.dot_dimension_numbers<[1], [0], [0], [1], [0, 0, 1, 1], [], []>} : vector<16x16xbf16>, vector<16x16xbf16>, vector<16x16xf32> -> vector<16x16xf32>
    %198 = arith.addf %196, %197 : vector<16x16xf32>
    %199 = arith.subf %188, %193 : vector<16x16xf32>
    %200 = arith.subf %198, %188 : vector<16x16xf32>
    %201 = arith.subf %200, %193 : vector<16x16xf32>
    %c1_75 = arith.constant 1 : index
    %c0_76 = arith.constant 0 : index
    %c0_77 = arith.constant 0 : index
    %202 = vector.load %arg9[%c1_75, %c0_76, %c0_77] : memref<2x16x16xi32, #tpu.memory_space<vmem>>, vector<1x16x16xi32>
    %203 = vector.shape_cast %202 : vector<1x16x16xi32> to vector<16x16xi32>
    %204 = arith.sitofp %203 : vector<16x16xi32> to vector<16x16xf32>
    %cst_78 = arith.constant 1.000000e+00 : f32
    %205 = vector.broadcast %cst_78 : f32 to vector<16x16xf32>
    %206 = arith.subf %205, %204 : vector<16x16xf32>
    %207 = arith.mulf %206, %199 : vector<16x16xf32>
    %c0_79 = arith.constant 0 : index
    %c1_80 = arith.constant 1 : index
    %c0_81 = arith.constant 0 : index
    %c0_82 = arith.constant 0 : index
    %208 = vector.load %arg8[%c0_79, %c1_80, %c0_81, %c0_82] : memref<2x2x16x16xf32, #tpu.memory_space<vmem>>, vector<1x1x16x16xf32>
    %209 = vector.shape_cast %208 : vector<1x1x16x16xf32> to vector<16x16xf32>
    %210 = arith.mulf %204, %209 : vector<16x16xf32>
    %211 = arith.addf %207, %210 : vector<16x16xf32>
    %212 = arith.mulf %206, %201 : vector<16x16xf32>
    %c1_83 = arith.constant 1 : index
    %c1_84 = arith.constant 1 : index
    %c0_85 = arith.constant 0 : index
    %c0_86 = arith.constant 0 : index
    %213 = vector.load %arg8[%c1_83, %c1_84, %c0_85, %c0_86] : memref<2x2x16x16xf32, #tpu.memory_space<vmem>>, vector<1x1x16x16xf32>
    %214 = vector.shape_cast %213 : vector<1x1x16x16xf32> to vector<16x16xf32>
    %215 = arith.mulf %204, %214 : vector<16x16xf32>
    %216 = arith.addf %212, %215 : vector<16x16xf32>
    %217 = arith.truncf %211 : vector<16x16xf32> to vector<16x16xbf16>
    %218 = arith.extf %217 : vector<16x16xbf16> to vector<16x16xf32>
    %219 = arith.subf %211, %218 : vector<16x16xf32>
    %220 = arith.truncf %219 : vector<16x16xf32> to vector<16x16xbf16>
    %221 = arith.truncf %216 : vector<16x16xf32> to vector<16x16xbf16>
    %222 = arith.extf %221 : vector<16x16xbf16> to vector<16x16xf32>
    %223 = arith.subf %216, %222 : vector<16x16xf32>
    %224 = arith.truncf %223 : vector<16x16xf32> to vector<16x16xbf16>
    %225 = arith.addf %211, %216 : vector<16x16xf32>
    %226 = arith.truncf %225 : vector<16x16xf32> to vector<16x16xbf16>
    %227 = arith.extf %226 : vector<16x16xbf16> to vector<16x16xf32>
    %228 = arith.subf %225, %227 : vector<16x16xf32>
    %229 = arith.truncf %228 : vector<16x16xf32> to vector<16x16xbf16>
    %cst_87 = arith.constant dense<0.000000e+00> : vector<16x16xf32>
    %230 = tpu.matmul %2, %217, %cst_87 {dimension_numbers = #tpu.dot_dimension_numbers<[1], [0], [0], [1], [0, 0, 1, 1], [], []>} : vector<16x16xbf16>, vector<16x16xbf16>, vector<16x16xf32> -> vector<16x16xf32>
    %cst_88 = arith.constant dense<0.000000e+00> : vector<16x16xf32>
    %231 = tpu.matmul %2, %220, %cst_88 {dimension_numbers = #tpu.dot_dimension_numbers<[1], [0], [0], [1], [0, 0, 1, 1], [], []>} : vector<16x16xbf16>, vector<16x16xbf16>, vector<16x16xf32> -> vector<16x16xf32>
    %232 = arith.addf %230, %231 : vector<16x16xf32>
    %cst_89 = arith.constant dense<0.000000e+00> : vector<16x16xf32>
    %233 = tpu.matmul %5, %217, %cst_89 {dimension_numbers = #tpu.dot_dimension_numbers<[1], [0], [0], [1], [0, 0, 1, 1], [], []>} : vector<16x16xbf16>, vector<16x16xbf16>, vector<16x16xf32> -> vector<16x16xf32>
    %234 = arith.addf %232, %233 : vector<16x16xf32>
    %cst_90 = arith.constant dense<0.000000e+00> : vector<16x16xf32>
    %235 = tpu.matmul %6, %221, %cst_90 {dimension_numbers = #tpu.dot_dimension_numbers<[1], [0], [0], [1], [0, 0, 1, 1], [], []>} : vector<16x16xbf16>, vector<16x16xbf16>, vector<16x16xf32> -> vector<16x16xf32>
    %cst_91 = arith.constant dense<0.000000e+00> : vector<16x16xf32>
    %236 = tpu.matmul %6, %224, %cst_91 {dimension_numbers = #tpu.dot_dimension_numbers<[1], [0], [0], [1], [0, 0, 1, 1], [], []>} : vector<16x16xbf16>, vector<16x16xbf16>, vector<16x16xf32> -> vector<16x16xf32>
    %237 = arith.addf %235, %236 : vector<16x16xf32>
    %cst_92 = arith.constant dense<0.000000e+00> : vector<16x16xf32>
    %238 = tpu.matmul %9, %221, %cst_92 {dimension_numbers = #tpu.dot_dimension_numbers<[1], [0], [0], [1], [0, 0, 1, 1], [], []>} : vector<16x16xbf16>, vector<16x16xbf16>, vector<16x16xf32> -> vector<16x16xf32>
    %239 = arith.addf %237, %238 : vector<16x16xf32>
    %cst_93 = arith.constant dense<0.000000e+00> : vector<16x16xf32>
    %240 = tpu.matmul %16, %226, %cst_93 {dimension_numbers = #tpu.dot_dimension_numbers<[1], [0], [0], [1], [0, 0, 1, 1], [], []>} : vector<16x16xbf16>, vector<16x16xbf16>, vector<16x16xf32> -> vector<16x16xf32>
    %cst_94 = arith.constant dense<0.000000e+00> : vector<16x16xf32>
    %241 = tpu.matmul %16, %229, %cst_94 {dimension_numbers = #tpu.dot_dimension_numbers<[1], [0], [0], [1], [0, 0, 1, 1], [], []>} : vector<16x16xbf16>, vector<16x16xbf16>, vector<16x16xf32> -> vector<16x16xf32>
    %242 = arith.addf %240, %241 : vector<16x16xf32>
    %cst_95 = arith.constant dense<0.000000e+00> : vector<16x16xf32>
    %243 = tpu.matmul %19, %226, %cst_95 {dimension_numbers = #tpu.dot_dimension_numbers<[1], [0], [0], [1], [0, 0, 1, 1], [], []>} : vector<16x16xbf16>, vector<16x16xbf16>, vector<16x16xf32> -> vector<16x16xf32>
    %244 = arith.addf %242, %243 : vector<16x16xf32>
    %245 = arith.addf %234, %239 : vector<16x16xf32>
    %246 = arith.subf %244, %234 : vector<16x16xf32>
    %247 = arith.addf %246, %239 : vector<16x16xf32>
    %248 = arith.truncf %245 : vector<16x16xf32> to vector<16x16xbf16>
    %249 = arith.extf %248 : vector<16x16xbf16> to vector<16x16xf32>
    %250 = arith.subf %245, %249 : vector<16x16xf32>
    %251 = arith.truncf %250 : vector<16x16xf32> to vector<16x16xbf16>
    %cst_96 = arith.constant dense<0.000000e+00> : vector<16x32xf32>
    %252 = tpu.matmul %248, %31, %cst_96 {dimension_numbers = #tpu.dot_dimension_numbers<[1], [0], [0], [1], [0, 0, 1, 1], [], []>} : vector<16x16xbf16>, vector<16x32xbf16>, vector<16x32xf32> -> vector<16x32xf32>
    %cst_97 = arith.constant dense<0.000000e+00> : vector<16x32xf32>
    %253 = tpu.matmul %248, %34, %cst_97 {dimension_numbers = #tpu.dot_dimension_numbers<[1], [0], [0], [1], [0, 0, 1, 1], [], []>} : vector<16x16xbf16>, vector<16x32xbf16>, vector<16x32xf32> -> vector<16x32xf32>
    %254 = arith.addf %252, %253 : vector<16x32xf32>
    %cst_98 = arith.constant dense<0.000000e+00> : vector<16x32xf32>
    %255 = tpu.matmul %251, %31, %cst_98 {dimension_numbers = #tpu.dot_dimension_numbers<[1], [0], [0], [1], [0, 0, 1, 1], [], []>} : vector<16x16xbf16>, vector<16x32xbf16>, vector<16x32xf32> -> vector<16x32xf32>
    %256 = arith.addf %254, %255 : vector<16x32xf32>
    %257 = arith.truncf %247 : vector<16x16xf32> to vector<16x16xbf16>
    %258 = arith.extf %257 : vector<16x16xbf16> to vector<16x16xf32>
    %259 = arith.subf %247, %258 : vector<16x16xf32>
    %260 = arith.truncf %259 : vector<16x16xf32> to vector<16x16xbf16>
    %cst_99 = arith.constant dense<0.000000e+00> : vector<16x32xf32>
    %261 = tpu.matmul %257, %36, %cst_99 {dimension_numbers = #tpu.dot_dimension_numbers<[1], [0], [0], [1], [0, 0, 1, 1], [], []>} : vector<16x16xbf16>, vector<16x32xbf16>, vector<16x32xf32> -> vector<16x32xf32>
    %cst_100 = arith.constant dense<0.000000e+00> : vector<16x32xf32>
    %262 = tpu.matmul %257, %39, %cst_100 {dimension_numbers = #tpu.dot_dimension_numbers<[1], [0], [0], [1], [0, 0, 1, 1], [], []>} : vector<16x16xbf16>, vector<16x32xbf16>, vector<16x32xf32> -> vector<16x32xf32>
    %263 = arith.addf %261, %262 : vector<16x32xf32>
    %cst_101 = arith.constant dense<0.000000e+00> : vector<16x32xf32>
    %264 = tpu.matmul %260, %36, %cst_101 {dimension_numbers = #tpu.dot_dimension_numbers<[1], [0], [0], [1], [0, 0, 1, 1], [], []>} : vector<16x16xbf16>, vector<16x32xbf16>, vector<16x32xf32> -> vector<16x32xf32>
    %265 = arith.addf %263, %264 : vector<16x32xf32>
    %266 = arith.addf %256, %265 : vector<16x32xf32>
    %c1_102 = arith.constant 1 : index
    %c0_103 = arith.constant 0 : index
    %c0_104 = arith.constant 0 : index
    %267 = vector.load %arg10[%c1_102, %c0_103, %c0_104] : memref<2x16x32xf32, #tpu.memory_space<vmem>>, vector<1x16x32xf32>
    %268 = vector.shape_cast %267 : vector<1x16x32xf32> to vector<16x32xf32>
    %269 = vector.shape_cast %266 : vector<16x32xf32> to vector<1x16x32xf32>
    tpu.vector_store %arg10[%c1_102, %c0_103, %c0_104], %269 {strides = array<i32>} : memref<2x16x32xf32, #tpu.memory_space<vmem>>, vector<1x16x32xf32>,
    return
  }
  func.func @transform_0(%arg0: i32) -> (i32, i32) {
    %c0_i32 = arith.constant 0 : i32
    %c0_i32_0 = arith.constant 0 : i32
    %c0_i32_1 = arith.constant 0 : i32
    return %c0_i32, %c0_i32_0 : i32, i32
  }
  func.func @transform_1(%arg0: i32) -> (i32, i32) {
    %c0_i32 = arith.constant 0 : i32
    %c0_i32_0 = arith.constant 0 : i32
    %c0_i32_1 = arith.constant 0 : i32
    return %c0_i32, %c0_i32_0 : i32, i32
  }
  func.func @transform_2(%arg0: i32) -> (i32, i32) {
    %c0_i32 = arith.constant 0 : i32
    %c0_i32_0 = arith.constant 0 : i32
    %c0_i32_1 = arith.constant 0 : i32
    return %c0_i32, %c0_i32_0 : i32, i32
  }
  func.func @transform_3(%arg0: i32) -> (i32, i32) {
    %c0_i32 = arith.constant 0 : i32
    %c0_i32_0 = arith.constant 0 : i32
    %c0_i32_1 = arith.constant 0 : i32
    return %c0_i32, %c0_i32_0 : i32, i32
  }
  func.func @transform_4(%arg0: i32) -> (i32, i32) {
    %c0_i32 = arith.constant 0 : i32
    %c0_i32_0 = arith.constant 0 : i32
    %c0_i32_1 = arith.constant 0 : i32
    return %c0_i32, %c0_i32_0 : i32, i32
  }
  func.func @transform_5(%arg0: i32) -> (i32, i32) {
    %c0_i32 = arith.constant 0 : i32
    %c0_i32_0 = arith.constant 0 : i32
    %c0_i32_1 = arith.constant 0 : i32
    return %c0_i32, %c0_i32_0 : i32, i32
  }
  func.func @transform_6(%arg0: i32) -> (i32, i32, i32) {
    %c0_i32 = arith.constant 0 : i32
    %c0_i32_0 = arith.constant 0 : i32
    %c0_i32_1 = arith.constant 0 : i32
    return %arg0, %c0_i32, %c0_i32_0 : i32, i32, i32
  }
  func.func @transform_7(%arg0: i32) -> (i32, i32, i32, i32) {
    %c0_i32 = arith.constant 0 : i32
    %c0_i32_0 = arith.constant 0 : i32
    %c0_i32_1 = arith.constant 0 : i32
    %c0_i32_2 = arith.constant 0 : i32
    return %c0_i32, %arg0, %c0_i32_0, %c0_i32_1 : i32, i32, i32, i32
  }
  func.func @transform_8(%arg0: i32) -> (i32, i32, i32) {
    %c0_i32 = arith.constant 0 : i32
    %c0_i32_0 = arith.constant 0 : i32
    %c0_i32_1 = arith.constant 0 : i32
    return %arg0, %c0_i32, %c0_i32_0 : i32, i32, i32
  }
  func.func @transform_9(%arg0: i32) -> (i32, i32, i32) {
    %c0_i32 = arith.constant 0 : i32
    %c0_i32_0 = arith.constant 0 : i32
    %c0_i32_1 = arith.constant 0 : i32
    return %arg0, %c0_i32, %c0_i32_0 : i32, i32, i32
  }
}

</mosaic_0001>

<llo_original>
// kernel: data_consistency_in_kspace.1
$region0: #{data_consistency_in_kspace.1}
  #allocation0 [shape = 'u32[]', space=smem, size = 0x4, offset = 0x4, fixed_abs, tag = 'smem constant byte address 0x4 - core index']
  #allocation1 [shape = 'u32[144,128]{1,0:T(1,128)}', space=vmem, size = 0x12000, scoped, tag = 'internal scratch']
  %s0 = inlined_call_operand.vmem [shape: f32[16,16], index: 0, kind: input, shape index: {}]
  %s1 = inlined_call_operand.vmem [shape: f32[16,16], index: 1, kind: input, shape index: {}]
  %s2 = inlined_call_operand.vmem [shape: f32[32,16], index: 2, kind: input, shape index: {}]
  %s3 = inlined_call_operand.vmem [shape: f32[32,16], index: 3, kind: input, shape index: {}]
  %s4 = inlined_call_operand.vmem [shape: f32[16,32], index: 4, kind: input, shape index: {}]
  %s5 = inlined_call_operand.vmem [shape: f32[16,32], index: 5, kind: input, shape index: {}]
  %s6 = inlined_call_operand.vmem [shape: f32[2,16,32], index: 6, kind: input, shape index: {}]
  %s7 = inlined_call_operand.vmem [shape: f32[2,2,16,16], index: 7, kind: input, shape index: {}]
  %s8 = inlined_call_operand.vmem [shape: s32[2,16,16], index: 8, kind: input, shape index: {}]
  %s9 = inlined_call_operand.vmem [shape: f32[2,16,32], index: 9, kind: output, shape index: {}]
  %s10 = sld [smem:[#allocation0]]
  $region46: #{data_consistency_in_kspace.1} parent=0
    _
  %s12 = ssub.s32 1, %s10
  %s13 = scalar_select 0, %s12, %s10
  // Predicated region
  $region2: #{data_consistency_in_kspace.1} parent=0 // pred_check
    _
  $region3: #{data_consistency_in_kspace.1} parent=0 // pred_check_branch
    %15 = sbr.rel (0) target = $region5
  $region4: #{data_consistency_in_kspace.1} parent=0 // pred_region
    _
  $region5: #{data_consistency_in_kspace.1} parent=0 // pred_fallthru
    _
  // Predicated region
  $region6: #{data_consistency_in_kspace.1} parent=0 // pred_check
    _
  $region7: #{data_consistency_in_kspace.1} parent=0 // pred_check_branch
    %17 = sbr.rel (0) target = $region9
  $region8: #{data_consistency_in_kspace.1} parent=0 // pred_region
    _
  $region9: #{data_consistency_in_kspace.1} parent=0 // pred_fallthru
    _
  // Predicated region
  $region10: #{data_consistency_in_kspace.1} parent=0 // pred_check
    _
  $region11: #{data_consistency_in_kspace.1} parent=0 // pred_check_branch
    %19 = sbr.rel (0) target = $region13
  $region12: #{data_consistency_in_kspace.1} parent=0 // pred_region
    _
  $region13: #{data_consistency_in_kspace.1} parent=0 // pred_fallthru
    _
  // Predicated region
  $region14: #{data_consistency_in_kspace.1} parent=0 // pred_check
    _
  $region15: #{data_consistency_in_kspace.1} parent=0 // pred_check_branch
    %21 = sbr.rel (0) target = $region17
  $region16: #{data_consistency_in_kspace.1} parent=0 // pred_region
    _
  $region17: #{data_consistency_in_kspace.1} parent=0 // pred_fallthru
    _
  // Predicated region
  $region18: #{data_consistency_in_kspace.1} parent=0 // pred_check
    _
  $region19: #{data_consistency_in_kspace.1} parent=0 // pred_check_branch
    %23 = sbr.rel (0) target = $region21
  $region20: #{data_consistency_in_kspace.1} parent=0 // pred_region
    _
  $region21: #{data_consistency_in_kspace.1} parent=0 // pred_fallthru
    _
  // Predicated region
  $region22: #{data_consistency_in_kspace.1} parent=0 // pred_check
    _
  $region23: #{data_consistency_in_kspace.1} parent=0 // pred_check_branch
    %25 = sbr.rel (0) target = $region25
  $region24: #{data_consistency_in_kspace.1} parent=0 // pred_region
    _
  $region25: #{data_consistency_in_kspace.1} parent=0 // pred_fallthru
    _
  // Predicated region
  $region26: #{data_consistency_in_kspace.1} parent=0 // pred_check
    _
  $region27: #{data_consistency_in_kspace.1} parent=0 // pred_check_branch
    %27 = sbr.rel (0) target = $region29
  $region28: #{data_consistency_in_kspace.1} parent=0 // pred_region
    _
  $region29: #{data_consistency_in_kspace.1} parent=0 // pred_fallthru
    _
  // Predicated region
  $region30: #{data_consistency_in_kspace.1} parent=0 // pred_check
    _
  $region31: #{data_consistency_in_kspace.1} parent=0 // pred_check_branch
    %29 = sbr.rel (0) target = $region33
  $region32: #{data_consistency_in_kspace.1} parent=0 // pred_region
    _
  $region33: #{data_consistency_in_kspace.1} parent=0 // pred_fallthru
    _
  // Predicated region
  $region34: #{data_consistency_in_kspace.1} parent=0 // pred_check
    _
  $region35: #{data_consistency_in_kspace.1} parent=0 // pred_check_branch
    %31 = sbr.rel (0) target = $region37
  $region36: #{data_consistency_in_kspace.1} parent=0 // pred_region
    _
  $region37: #{data_consistency_in_kspace.1} parent=0 // pred_fallthru
    _
  %v33 = vld [vmem:[%s0] sm:$0xff]
  %v34 = vld [vmem:[%s0 + $0x8] sm:$0xff]
  %v35 = vld [vmem:[%s1] sm:$0xff]
  %v36 = vld [vmem:[%s1 + $0x8] sm:$0xff]
  %v37 = vpack.c.bf16 %v34, %v33
  %v38 = vunpack.c.l.bf16 %v37
  %v39 = vunpack.c.h.bf16 %v37
  %v40 = vsub.f32 %v33, %v38
  %v41 = vsub.f32 %v34, %v39
  %v42 = vpack.c.bf16 %v41, %v40
  %v43 = vpack.c.bf16 %v36, %v35
  %v44 = vunpack.c.l.bf16 %v43
  %v45 = vunpack.c.h.bf16 %v43
  %v46 = vsub.f32 %v35, %v44
  %v47 = vsub.f32 %v36, %v45
  %v48 = vpack.c.bf16 %v47, %v46
  %v49 = vadd.f32 %v33, %v35
  %v50 = vadd.f32 %v34, %v36
  %v51 = vpack.c.bf16 %v50, %v49
  %v52 = vunpack.c.l.bf16 %v51
  %v53 = vunpack.c.h.bf16 %v51
  %v54 = vsub.f32 %v49, %v52
  %v55 = vsub.f32 %v50, %v53
  %v56 = vpack.c.bf16 %v55, %v54
  %v57 = vsub.f32 %v33, %v35
  %v58 = vsub.f32 %v34, %v36
  %v59 = vpack.c.bf16 %v58, %v57
  %v60 = vunpack.c.l.bf16 %v59
  %v61 = vunpack.c.h.bf16 %v59
  %v62 = vsub.f32 %v57, %v60
  %v63 = vsub.f32 %v58, %v61
  %v64 = vpack.c.bf16 %v63, %v62
  %v65 = vld [vmem:[%s2] sm:$0xff]
  %v66 = vld [vmem:[%s2 + $0x8] sm:$0xff]
  %v67 = vld [vmem:[%s2 + $0x10] sm:$0xff]
  %v68 = vld [vmem:[%s2 + $0x18] sm:$0xff]
  %v69 = vpack.c.bf16 %v66, %v65
  %v70 = vpack.c.bf16 %v68, %v67
  %v71 = vunpack.c.l.bf16 %v69
  %v72 = vunpack.c.h.bf16 %v69
  %v73 = vunpack.c.l.bf16 %v70
  %v74 = vunpack.c.h.bf16 %v70
  %v75 = vsub.f32 %v65, %v71
  %v76 = vsub.f32 %v66, %v72
  %v77 = vsub.f32 %v67, %v73
  %v78 = vsub.f32 %v68, %v74
  %v79 = vpack.c.bf16 %v76, %v75
  %v80 = vpack.c.bf16 %v78, %v77
  %v81 = vld [vmem:[%s3] sm:$0xff]
  %v82 = vld [vmem:[%s3 + $0x8] sm:$0xff]
  %v83 = vld [vmem:[%s3 + $0x10] sm:$0xff]
  %v84 = vld [vmem:[%s3 + $0x18] sm:$0xff]
  %v85 = vpack.c.bf16 %v82, %v81
  %v86 = vpack.c.bf16 %v84, %v83
  %v87 = vunpack.c.l.bf16 %v85
  %v88 = vunpack.c.h.bf16 %v85
  %v89 = vunpack.c.l.bf16 %v86
  %v90 = vunpack.c.h.bf16 %v86
  %v91 = vsub.f32 %v81, %v87
  %v92 = vsub.f32 %v82, %v88
  %v93 = vsub.f32 %v83, %v89
  %v94 = vsub.f32 %v84, %v90
  %v95 = vpack.c.bf16 %v92, %v91
  %v96 = vpack.c.bf16 %v94, %v93
  %v97 = vld [vmem:[%s4] sm:$0xff]
  %v98 = vld [vmem:[%s4 + $0x8] sm:$0xff]
  %v99 = vpack.c.bf16 %v98, %v97
  %v100 = vunpack.c.l.bf16 %v99
  %v101 = vunpack.c.h.bf16 %v99
  %v102 = vsub.f32 %v97, %v100
  %v103 = vsub.f32 %v98, %v101
  %v104 = vpack.c.bf16 %v103, %v102
  %v105 = vld [vmem:[%s5] sm:$0xff]
  %v106 = vld [vmem:[%s5 + $0x8] sm:$0xff]
  %v107 = vpack.c.bf16 %v106, %v105
  %v108 = vunpack.c.l.bf16 %v107
  %v109 = vunpack.c.h.bf16 %v107
  %v110 = vsub.f32 %v105, %v108
  %v111 = vsub.f32 %v106, %v109
  %v112 = vpack.c.bf16 %v111, %v110
  %v113 = vld [vmem:[%s6] sm:$0xff]
  %v114 = vld [vmem:[%s6 + $0x8] sm:$0xff]
  %v115 = vpack.c.bf16 %v114, %v113
  %v116 = vunpack.c.l.bf16 %v115
  %v117 = vunpack.c.h.bf16 %v115
  %v118 = vsub.f32 %v113, %v116
  %v119 = vsub.f32 %v114, %v117
  %v120 = vpack.c.bf16 %v119, %v118
  %vm121 = vcmask 261120
  %v123 = vsel %vm121, %v115, 0
  %125 = vmatprep.subr.bf16.mxu0 0
  %126 = vmatpush1.bf16.msra.mxu0 %v79
  %127 = vmatprep.subr.bf16.mxu0 0
  %128 = vmatpush1.bf16.msra.mxu0 %v80
  %129 = vmatprep.subr.bf16.mxu0 0
  %130 = vmatpush1.bf16.msra.mxu0 0
  %131 = vmatprep.subr.bf16.mxu0 0
  %132 = vmatpush1.bf16.msra.mxu0 0
  %133 = vmatprep.subr.bf16.mxu0 0
  %134 = vmatpush1.bf16.msra.mxu0 0
  %135 = vmatprep.subr.bf16.mxu0 0
  %136 = vmatpush1.bf16.msra.mxu0 0
  %137 = vmatprep.subr.bf16.mxu0 0
  %138 = vmatpush1.bf16.msra.mxu0 0
  %139 = vmatprep.subr.bf16.mxu0 0
  %140 = vmatpush1.bf16.msra.mxu0 0
  %141 = vmatprep.subr.bf16.mxu0 0
  %142 = vmatpush1.bf16.msra.mxu0 0
  %143 = vmatprep.subr.bf16.mxu0 0
  %144 = vmatpush1.bf16.msra.mxu0 0
  %145 = vmatprep.subr.bf16.mxu0 0
  %146 = vmatpush1.bf16.msra.mxu0 0
  %147 = vmatprep.subr.bf16.mxu0 0
  %148 = vmatpush1.bf16.msra.mxu0 0
  %149 = vmatprep.subr.bf16.mxu0 0
  %150 = vmatpush1.bf16.msra.mxu0 0
  %151 = vmatprep.subr.bf16.mxu0 0
  %152 = vmatpush1.bf16.msra.mxu0 0
  %153 = vmatprep.subr.bf16.mxu0 0
  %154 = vmatpush1.bf16.msra.mxu0 0
  %155 = vmatprep.subr.bf16.mxu0 0
  %156 = vmatpush1.bf16.msra.mxu0 0
  %157 = vmatprep.mubr.bf16.mxu0 0
  %158 = vmatmul.mubr.bf16.gmra.mrb[0].mxu0 %v123
  %v159 = vpop.f32.mrb[0].mxu0
  %v160 = vadd.f32 0.0, %v159
  %v161 = vpop.f32.mrb[0].mxu0
  %v162 = vpop.f32.mrb[0].mxu0
  %v163 = vadd.f32 0.0, %v162
  %v164 = vpop.f32.mrb[0].mxu0
  %165 = vdwg.mxu0
  %166 = vmatprep.subr.bf16.mxu0 0
  %167 = vmatpush1.bf16.msra.mxu0 %v69
  %168 = vmatprep.subr.bf16.mxu0 0
  %169 = vmatpush1.bf16.msra.mxu0 %v70
  %170 = vmatprep.subr.bf16.mxu0 0
  %171 = vmatpush1.bf16.msra.mxu0 0
  %172 = vmatprep.subr.bf16.mxu0 0
  %173 = vmatpush1.bf16.msra.mxu0 0
  %174 = vmatprep.subr.bf16.mxu0 0
  %175 = vmatpush1.bf16.msra.mxu0 0
  %176 = vmatprep.subr.bf16.mxu0 0
  %177 = vmatpush1.bf16.msra.mxu0 0
  %178 = vmatprep.subr.bf16.mxu0 0
  %179 = vmatpush1.bf16.msra.mxu0 0
  %180 = vmatprep.subr.bf16.mxu0 0
  %181 = vmatpush1.bf16.msra.mxu0 0
  %182 = vmatprep.subr.bf16.mxu0 0
  %183 = vmatpush1.bf16.msra.mxu0 0
  %184 = vmatprep.subr.bf16.mxu0 0
  %185 = vmatpush1.bf16.msra.mxu0 0
  %186 = vmatprep.subr.bf16.mxu0 0
  %187 = vmatpush1.bf16.msra.mxu0 0
  %188 = vmatprep.subr.bf16.mxu0 0
  %189 = vmatpush1.bf16.msra.mxu0 0
  %190 = vmatprep.subr.bf16.mxu0 0
  %191 = vmatpush1.bf16.msra.mxu0 0
  %192 = vmatprep.subr.bf16.mxu0 0
  %193 = vmatpush1.bf16.msra.mxu0 0
  %194 = vmatprep.subr.bf16.mxu0 0
  %195 = vmatpush1.bf16.msra.mxu0 0
  %196 = vmatprep.subr.bf16.mxu0 0
  %197 = vmatpush1.bf16.msra.mxu0 0
  %198 = vmatprep.mubr.bf16.mxu0 0
  %199 = vmatmul.mubr.bf16.gmra.mrb[0].mxu0 %v123
  %v200 = vpop.f32.mrb[0].mxu0
  %v201 = vadd.f32 %v160, %v200
  %v202 = vpop.f32.mrb[0].mxu0
  %v203 = vpop.f32.mrb[0].mxu0
  %v204 = vadd.f32 %v163, %v203
  %v205 = vpop.f32.mrb[0].mxu0
  %206 = vdwg.mxu0
  %v208 = vsel %vm121, %v120, 0
  %210 = vmatprep.subr.bf16.mxu0 0
  %211 = vmatpush1.bf16.msra.mxu0 %v69
  %212 = vmatprep.subr.bf16.mxu0 0
  %213 = vmatpush1.bf16.msra.mxu0 %v70
  %214 = vmatprep.subr.bf16.mxu0 0
  %215 = vmatpush1.bf16.msra.mxu0 0
  %216 = vmatprep.subr.bf16.mxu0 0
  %217 = vmatpush1.bf16.msra.mxu0 0
  %218 = vmatprep.subr.bf16.mxu0 0
  %219 = vmatpush1.bf16.msra.mxu0 0
  %220 = vmatprep.subr.bf16.mxu0 0
  %221 = vmatpush1.bf16.msra.mxu0 0
  %222 = vmatprep.subr.bf16.mxu0 0
  %223 = vmatpush1.bf16.msra.mxu0 0
  %224 = vmatprep.subr.bf16.mxu0 0
  %225 = vmatpush1.bf16.msra.mxu0 0
  %226 = vmatprep.subr.bf16.mxu0 0
  %227 = vmatpush1.bf16.msra.mxu0 0
  %228 = vmatprep.subr.bf16.mxu0 0
  %229 = vmatpush1.bf16.msra.mxu0 0
  %230 = vmatprep.subr.bf16.mxu0 0
  %231 = vmatpush1.bf16.msra.mxu0 0
  %232 = vmatprep.subr.bf16.mxu0 0
  %233 = vmatpush1.bf16.msra.mxu0 0
  %234 = vmatprep.subr.bf16.mxu0 0
  %235 = vmatpush1.bf16.msra.mxu0 0
  %236 = vmatprep.subr.bf16.mxu0 0
  %237 = vmatpush1.bf16.msra.mxu0 0
  %238 = vmatprep.subr.bf16.mxu0 0
  %239 = vmatpush1.bf16.msra.mxu0 0
  %240 = vmatprep.subr.bf16.mxu0 0
  %241 = vmatpush1.bf16.msra.mxu0 0
  %242 = vmatprep.mubr.bf16.mxu0 0
  %243 = vmatmul.mubr.bf16.gmra.mrb[0].mxu0 %v208
  %v244 = vpop.f32.mrb[0].mxu0
  %v245 = vadd.f32 0.0, %v244
  %v246 = vpop.f32.mrb[0].mxu0
  %v247 = vpop.f32.mrb[0].mxu0
  %v248 = vadd.f32 0.0, %v247
  %v249 = vpop.f32.mrb[0].mxu0
  %250 = vdwg.mxu0
  %v251 = vadd.f32 %v201, %v245
  %v252 = vadd.f32 %v204, %v248
  %253 = vmatprep.subr.bf16.mxu0 0
  %254 = vmatpush1.bf16.msra.mxu0 %v95
  %255 = vmatprep.subr.bf16.mxu0 0
  %256 = vmatpush1.bf16.msra.mxu0 %v96
  %257 = vmatprep.subr.bf16.mxu0 0
  %258 = vmatpush1.bf16.msra.mxu0 0
  %259 = vmatprep.subr.bf16.mxu0 0
  %260 = vmatpush1.bf16.msra.mxu0 0
  %261 = vmatprep.subr.bf16.mxu0 0
  %262 = vmatpush1.bf16.msra.mxu0 0
  %263 = vmatprep.subr.bf16.mxu0 0
  %264 = vmatpush1.bf16.msra.mxu0 0
  %265 = vmatprep.subr.bf16.mxu0 0
  %266 = vmatpush1.bf16.msra.mxu0 0
  %267 = vmatprep.subr.bf16.mxu0 0
  %268 = vmatpush1.bf16.msra.mxu0 0
  %269 = vmatprep.subr.bf16.mxu0 0
  %270 = vmatpush1.bf16.msra.mxu0 0
  %271 = vmatprep.subr.bf16.mxu0 0
  %272 = vmatpush1.bf16.msra.mxu0 0
  %273 = vmatprep.subr.bf16.mxu0 0
  %274 = vmatpush1.bf16.msra.mxu0 0
  %275 = vmatprep.subr.bf16.mxu0 0
  %276 = vmatpush1.bf16.msra.mxu0 0
  %277 = vmatprep.subr.bf16.mxu0 0
  %278 = vmatpush1.bf16.msra.mxu0 0
  %279 = vmatprep.subr.bf16.mxu0 0
  %280 = vmatpush1.bf16.msra.mxu0 0
  %281 = vmatprep.subr.bf16.mxu0 0
  %282 = vmatpush1.bf16.msra.mxu0 0
  %283 = vmatprep.subr.bf16.mxu0 0
  %284 = vmatpush1.bf16.msra.mxu0 0
  %285 = vmatprep.mubr.bf16.mxu0 0
  %286 = vmatmul.mubr.bf16.gmra.mrb[0].mxu0 %v123
  %v287 = vpop.f32.mrb[0].mxu0
  %v288 = vadd.f32 0.0, %v287
  %v289 = vpop.f32.mrb[0].mxu0
  %v290 = vpop.f32.mrb[0].mxu0
  %v291 = vadd.f32 0.0, %v290
  %v292 = vpop.f32.mrb[0].mxu0
  %293 = vdwg.mxu0
  %294 = vmatprep.subr.bf16.mxu0 0
  %295 = vmatpush1.bf16.msra.mxu0 %v85
  %296 = vmatprep.subr.bf16.mxu0 0
  %297 = vmatpush1.bf16.msra.mxu0 %v86
  %298 = vmatprep.subr.bf16.mxu0 0
  %299 = vmatpush1.bf16.msra.mxu0 0
  %300 = vmatprep.subr.bf16.mxu0 0
  %301 = vmatpush1.bf16.msra.mxu0 0
  %302 = vmatprep.subr.bf16.mxu0 0
  %303 = vmatpush1.bf16.msra.mxu0 0
  %304 = vmatprep.subr.bf16.mxu0 0
  %305 = vmatpush1.bf16.msra.mxu0 0
  %306 = vmatprep.subr.bf16.mxu0 0
  %307 = vmatpush1.bf16.msra.mxu0 0
  %308 = vmatprep.subr.bf16.mxu0 0
  %309 = vmatpush1.bf16.msra.mxu0 0
  %310 = vmatprep.subr.bf16.mxu0 0
  %311 = vmatpush1.bf16.msra.mxu0 0
  %312 = vmatprep.subr.bf16.mxu0 0
  %313 = vmatpush1.bf16.msra.mxu0 0
  %314 = vmatprep.subr.bf16.mxu0 0
  %315 = vmatpush1.bf16.msra.mxu0 0
  %316 = vmatprep.subr.bf16.mxu0 0
  %317 = vmatpush1.bf16.msra.mxu0 0
  %318 = vmatprep.subr.bf16.mxu0 0
  %319 = vmatpush1.bf16.msra.mxu0 0
  %320 = vmatprep.subr.bf16.mxu0 0
  %321 = vmatpush1.bf16.msra.mxu0 0
  %322 = vmatprep.subr.bf16.mxu0 0
  %323 = vmatpush1.bf16.msra.mxu0 0
  %324 = vmatprep.subr.bf16.mxu0 0
  %325 = vmatpush1.bf16.msra.mxu0 0
  %326 = vmatprep.mubr.bf16.mxu0 0
  %327 = vmatmul.mubr.bf16.gmra.mrb[0].mxu0 %v123
  %v328 = vpop.f32.mrb[0].mxu0
  %v329 = vadd.f32 %v288, %v328
  %v330 = vpop.f32.mrb[0].mxu0
  %v331 = vpop.f32.mrb[0].mxu0
  %v332 = vadd.f32 %v291, %v331
  %v333 = vpop.f32.mrb[0].mxu0
  %334 = vdwg.mxu0
  %335 = vmatprep.subr.bf16.mxu0 0
  %336 = vmatpush1.bf16.msra.mxu0 %v85
  %337 = vmatprep.subr.bf16.mxu0 0
  %338 = vmatpush1.bf16.msra.mxu0 %v86
  %339 = vmatprep.subr.bf16.mxu0 0
  %340 = vmatpush1.bf16.msra.mxu0 0
  %341 = vmatprep.subr.bf16.mxu0 0
  %342 = vmatpush1.bf16.msra.mxu0 0
  %343 = vmatprep.subr.bf16.mxu0 0
  %344 = vmatpush1.bf16.msra.mxu0 0
  %345 = vmatprep.subr.bf16.mxu0 0
  %346 = vmatpush1.bf16.msra.mxu0 0
  %347 = vmatprep.subr.bf16.mxu0 0
  %348 = vmatpush1.bf16.msra.mxu0 0
  %349 = vmatprep.subr.bf16.mxu0 0
  %350 = vmatpush1.bf16.msra.mxu0 0
  %351 = vmatprep.subr.bf16.mxu0 0
  %352 = vmatpush1.bf16.msra.mxu0 0
  %353 = vmatprep.subr.bf16.mxu0 0
  %354 = vmatpush1.bf16.msra.mxu0 0
  %355 = vmatprep.subr.bf16.mxu0 0
  %356 = vmatpush1.bf16.msra.mxu0 0
  %357 = vmatprep.subr.bf16.mxu0 0
  %358 = vmatpush1.bf16.msra.mxu0 0
  %359 = vmatprep.subr.bf16.mxu0 0
  %360 = vmatpush1.bf16.msra.mxu0 0
  %361 = vmatprep.subr.bf16.mxu0 0
  %362 = vmatpush1.bf16.msra.mxu0 0
  %363 = vmatprep.subr.bf16.mxu0 0
  %364 = vmatpush1.bf16.msra.mxu0 0
  %365 = vmatprep.subr.bf16.mxu0 0
  %366 = vmatpush1.bf16.msra.mxu0 0
  %367 = vmatprep.mubr.bf16.mxu0 0
  %368 = vmatmul.mubr.bf16.gmra.mrb[0].mxu0 %v208
  %v369 = vpop.f32.mrb[0].mxu0
  %v370 = vadd.f32 0.0, %v369
  %v371 = vpop.f32.mrb[0].mxu0
  %v372 = vpop.f32.mrb[0].mxu0
  %v373 = vadd.f32 0.0, %v372
  %v374 = vpop.f32.mrb[0].mxu0
  %375 = vdwg.mxu0
  %v376 = vadd.f32 %v329, %v370
  %v377 = vadd.f32 %v332, %v373
  %v378 = vpack.c.bf16 %v252, %v251
  %v379 = vunpack.c.l.bf16 %v378
  %v380 = vunpack.c.h.bf16 %v378
  %v381 = vsub.f32 %v251, %v379
  %v382 = vsub.f32 %v252, %v380
  %v383 = vpack.c.bf16 %v382, %v381
  %v384 = vpack.c.bf16 %v377, %v376
  %v385 = vunpack.c.l.bf16 %v384
  %v386 = vunpack.c.h.bf16 %v384
  %v387 = vsub.f32 %v376, %v385
  %v388 = vsub.f32 %v377, %v386
  %v389 = vpack.c.bf16 %v388, %v387
  %v390 = vadd.f32 %v251, %v376
  %v391 = vadd.f32 %v252, %v377
  %v392 = vpack.c.bf16 %v391, %v390
  %v393 = vunpack.c.l.bf16 %v392
  %v394 = vunpack.c.h.bf16 %v392
  %v395 = vsub.f32 %v390, %v393
  %v396 = vsub.f32 %v391, %v394
  %v397 = vpack.c.bf16 %v396, %v395
  %vm398 = vcmask 130048
  %v400 = vsel %vm398, %v37, 0
  %402 = vmatprep.subr.bf16.mxu0 0
  %403 = vmatpush1.bf16.msra.mxu0 %v383
  %404 = vmatprep.subr.bf16.mxu0 0
  %405 = vmatpush1.bf16.msra.mxu0 0
  %406 = vmatprep.subr.bf16.mxu0 0
  %407 = vmatpush1.bf16.msra.mxu0 0
  %408 = vmatprep.subr.bf16.mxu0 0
  %409 = vmatpush1.bf16.msra.mxu0 0
  %410 = vmatprep.subr.bf16.mxu0 0
  %411 = vmatpush1.bf16.msra.mxu0 0
  %412 = vmatprep.subr.bf16.mxu0 0
  %413 = vmatpush1.bf16.msra.mxu0 0
  %414 = vmatprep.subr.bf16.mxu0 0
  %415 = vmatpush1.bf16.msra.mxu0 0
  %416 = vmatprep.subr.bf16.mxu0 0
  %417 = vmatpush1.bf16.msra.mxu0 0
  %418 = vmatprep.subr.bf16.mxu0 0
  %419 = vmatpush1.bf16.msra.mxu0 0
  %420 = vmatprep.subr.bf16.mxu0 0
  %421 = vmatpush1.bf16.msra.mxu0 0
  %422 = vmatprep.subr.bf16.mxu0 0
  %423 = vmatpush1.bf16.msra.mxu0 0
  %424 = vmatprep.subr.bf16.mxu0 0
  %425 = vmatpush1.bf16.msra.mxu0 0
  %426 = vmatprep.subr.bf16.mxu0 0
  %427 = vmatpush1.bf16.msra.mxu0 0
  %428 = vmatprep.subr.bf16.mxu0 0
  %429 = vmatpush1.bf16.msra.mxu0 0
  %430 = vmatprep.subr.bf16.mxu0 0
  %431 = vmatpush1.bf16.msra.mxu0 0
  %432 = vmatprep.subr.bf16.mxu0 0
  %433 = vmatpush1.bf16.msra.mxu0 0
  %434 = vmatprep.mubr.bf16.mxu0 0
  %435 = vmatmul.mubr.bf16.gmra.mrb[0].mxu0 %v400
  %v436 = vpop.f32.mrb[0].mxu0
  %v437 = vadd.f32 0.0, %v436
  %v438 = vpop.f32.mrb[0].mxu0
  %v439 = vpop.f32.mrb[0].mxu0
  %v440 = vadd.f32 0.0, %v439
  %v441 = vpop.f32.mrb[0].mxu0
  %442 = vdwg.mxu0
  %443 = vmatprep.subr.bf16.mxu0 0
  %444 = vmatpush1.bf16.msra.mxu0 %v378
  %445 = vmatprep.subr.bf16.mxu0 0
  %446 = vmatpush1.bf16.msra.mxu0 0
  %447 = vmatprep.subr.bf16.mxu0 0
  %448 = vmatpush1.bf16.msra.mxu0 0
  %449 = vmatprep.subr.bf16.mxu0 0
  %450 = vmatpush1.bf16.msra.mxu0 0
  %451 = vmatprep.subr.bf16.mxu0 0
  %452 = vmatpush1.bf16.msra.mxu0 0
  %453 = vmatprep.subr.bf16.mxu0 0
  %454 = vmatpush1.bf16.msra.mxu0 0
  %455 = vmatprep.subr.bf16.mxu0 0
  %456 = vmatpush1.bf16.msra.mxu0 0
  %457 = vmatprep.subr.bf16.mxu0 0
  %458 = vmatpush1.bf16.msra.mxu0 0
  %459 = vmatprep.subr.bf16.mxu0 0
  %460 = vmatpush1.bf16.msra.mxu0 0
  %461 = vmatprep.subr.bf16.mxu0 0
  %462 = vmatpush1.bf16.msra.mxu0 0
  %463 = vmatprep.subr.bf16.mxu0 0
  %464 = vmatpush1.bf16.msra.mxu0 0
  %465 = vmatprep.subr.bf16.mxu0 0
  %466 = vmatpush1.bf16.msra.mxu0 0
  %467 = vmatprep.subr.bf16.mxu0 0
  %468 = vmatpush1.bf16.msra.mxu0 0
  %469 = vmatprep.subr.bf16.mxu0 0
  %470 = vmatpush1.bf16.msra.mxu0 0
  %471 = vmatprep.subr.bf16.mxu0 0
  %472 = vmatpush1.bf16.msra.mxu0 0
  %473 = vmatprep.subr.bf16.mxu0 0
  %474 = vmatpush1.bf16.msra.mxu0 0
  %475 = vmatprep.mubr.bf16.mxu0 0
  %476 = vmatmul.mubr.bf16.gmra.mrb[0].mxu0 %v400
  %v477 = vpop.f32.mrb[0].mxu0
  %v478 = vadd.f32 %v437, %v477
  %v479 = vpop.f32.mrb[0].mxu0
  %v480 = vpop.f32.mrb[0].mxu0
  %v481 = vadd.f32 %v440, %v480
  %v482 = vpop.f32.mrb[0].mxu0
  %483 = vdwg.mxu0
  %v485 = vsel %vm398, %v42, 0
  %487 = vmatprep.subr.bf16.mxu0 0
  %488 = vmatpush1.bf16.msra.mxu0 %v378
  %489 = vmatprep.subr.bf16.mxu0 0
  %490 = vmatpush1.bf16.msra.mxu0 0
  %491 = vmatprep.subr.bf16.mxu0 0
  %492 = vmatpush1.bf16.msra.mxu0 0
  %493 = vmatprep.subr.bf16.mxu0 0
  %494 = vmatpush1.bf16.msra.mxu0 0
  %495 = vmatprep.subr.bf16.mxu0 0
  %496 = vmatpush1.bf16.msra.mxu0 0
  %497 = vmatprep.subr.bf16.mxu0 0
  %498 = vmatpush1.bf16.msra.mxu0 0
  %499 = vmatprep.subr.bf16.mxu0 0
  %500 = vmatpush1.bf16.msra.mxu0 0
  %501 = vmatprep.subr.bf16.mxu0 0
  %502 = vmatpush1.bf16.msra.mxu0 0
  %503 = vmatprep.subr.bf16.mxu0 0
  %504 = vmatpush1.bf16.msra.mxu0 0
  %505 = vmatprep.subr.bf16.mxu0 0
  %506 = vmatpush1.bf16.msra.mxu0 0
  %507 = vmatprep.subr.bf16.mxu0 0
  %508 = vmatpush1.bf16.msra.mxu0 0
  %509 = vmatprep.subr.bf16.mxu0 0
  %510 = vmatpush1.bf16.msra.mxu0 0
  %511 = vmatprep.subr.bf16.mxu0 0
  %512 = vmatpush1.bf16.msra.mxu0 0
  %513 = vmatprep.subr.bf16.mxu0 0
  %514 = vmatpush1.bf16.msra.mxu0 0
  %515 = vmatprep.subr.bf16.mxu0 0
  %516 = vmatpush1.bf16.msra.mxu0 0
  %517 = vmatprep.subr.bf16.mxu0 0
  %518 = vmatpush1.bf16.msra.mxu0 0
  %519 = vmatprep.mubr.bf16.mxu0 0
  %520 = vmatmul.mubr.bf16.gmra.mrb[0].mxu0 %v485
  %v521 = vpop.f32.mrb[0].mxu0
  %v522 = vadd.f32 0.0, %v521
  %v523 = vpop.f32.mrb[0].mxu0
  %v524 = vpop.f32.mrb[0].mxu0
  %v525 = vadd.f32 0.0, %v524
  %v526 = vpop.f32.mrb[0].mxu0
  %527 = vdwg.mxu0
  %v528 = vadd.f32 %v478, %v522
  %v529 = vadd.f32 %v481, %v525
  %v531 = vsel %vm398, %v43, 0
  %533 = vmatprep.subr.bf16.mxu0 0
  %534 = vmatpush1.bf16.msra.mxu0 %v389
  %535 = vmatprep.subr.bf16.mxu0 0
  %536 = vmatpush1.bf16.msra.mxu0 0
  %537 = vmatprep.subr.bf16.mxu0 0
  %538 = vmatpush1.bf16.msra.mxu0 0
  %539 = vmatprep.subr.bf16.mxu0 0
  %540 = vmatpush1.bf16.msra.mxu0 0
  %541 = vmatprep.subr.bf16.mxu0 0
  %542 = vmatpush1.bf16.msra.mxu0 0
  %543 = vmatprep.subr.bf16.mxu0 0
  %544 = vmatpush1.bf16.msra.mxu0 0
  %545 = vmatprep.subr.bf16.mxu0 0
  %546 = vmatpush1.bf16.msra.mxu0 0
  %547 = vmatprep.subr.bf16.mxu0 0
  %548 = vmatpush1.bf16.msra.mxu0 0
  %549 = vmatprep.subr.bf16.mxu0 0
  %550 = vmatpush1.bf16.msra.mxu0 0
  %551 = vmatprep.subr.bf16.mxu0 0
  %552 = vmatpush1.bf16.msra.mxu0 0
  %553 = vmatprep.subr.bf16.mxu0 0
  %554 = vmatpush1.bf16.msra.mxu0 0
  %555 = vmatprep.subr.bf16.mxu0 0
  %556 = vmatpush1.bf16.msra.mxu0 0
  %557 = vmatprep.subr.bf16.mxu0 0
  %558 = vmatpush1.bf16.msra.mxu0 0
  %559 = vmatprep.subr.bf16.mxu0 0
  %560 = vmatpush1.bf16.msra.mxu0 0
  %561 = vmatprep.subr.bf16.mxu0 0
  %562 = vmatpush1.bf16.msra.mxu0 0
  %563 = vmatprep.subr.bf16.mxu0 0
  %564 = vmatpush1.bf16.msra.mxu0 0
  %565 = vmatprep.mubr.bf16.mxu0 0
  %566 = vmatmul.mubr.bf16.gmra.mrb[0].mxu0 %v531
  %v567 = vpop.f32.mrb[0].mxu0
  %v568 = vadd.f32 0.0, %v567
  %v569 = vpop.f32.mrb[0].mxu0
  %v570 = vpop.f32.mrb[0].mxu0
  %v571 = vadd.f32 0.0, %v570
  %v572 = vpop.f32.mrb[0].mxu0
  %573 = vdwg.mxu0
  %574 = vmatprep.subr.bf16.mxu0 0
  %575 = vmatpush1.bf16.msra.mxu0 %v384
  %576 = vmatprep.subr.bf16.mxu0 0
  %577 = vmatpush1.bf16.msra.mxu0 0
  %578 = vmatprep.subr.bf16.mxu0 0
  %579 = vmatpush1.bf16.msra.mxu0 0
  %580 = vmatprep.subr.bf16.mxu0 0
  %581 = vmatpush1.bf16.msra.mxu0 0
  %582 = vmatprep.subr.bf16.mxu0 0
  %583 = vmatpush1.bf16.msra.mxu0 0
  %584 = vmatprep.subr.bf16.mxu0 0
  %585 = vmatpush1.bf16.msra.mxu0 0
  %586 = vmatprep.subr.bf16.mxu0 0
  %587 = vmatpush1.bf16.msra.mxu0 0
  %588 = vmatprep.subr.bf16.mxu0 0
  %589 = vmatpush1.bf16.msra.mxu0 0
  %590 = vmatprep.subr.bf16.mxu0 0
  %591 = vmatpush1.bf16.msra.mxu0 0
  %592 = vmatprep.subr.bf16.mxu0 0
  %593 = vmatpush1.bf16.msra.mxu0 0
  %594 = vmatprep.subr.bf16.mxu0 0
  %595 = vmatpush1.bf16.msra.mxu0 0
  %596 = vmatprep.subr.bf16.mxu0 0
  %597 = vmatpush1.bf16.msra.mxu0 0
  %598 = vmatprep.subr.bf16.mxu0 0
  %599 = vmatpush1.bf16.msra.mxu0 0
  %600 = vmatprep.subr.bf16.mxu0 0
  %601 = vmatpush1.bf16.msra.mxu0 0
  %602 = vmatprep.subr.bf16.mxu0 0
  %603 = vmatpush1.bf16.msra.mxu0 0
  %604 = vmatprep.subr.bf16.mxu0 0
  %605 = vmatpush1.bf16.msra.mxu0 0
  %606 = vmatprep.mubr.bf16.mxu0 0
  %607 = vmatmul.mubr.bf16.gmra.mrb[0].mxu0 %v531
  %v608 = vpop.f32.mrb[0].mxu0
  %v609 = vadd.f32 %v568, %v608
  %v610 = vpop.f32.mrb[0].mxu0
  %v611 = vpop.f32.mrb[0].mxu0
  %v612 = vadd.f32 %v571, %v611
  %v613 = vpop.f32.mrb[0].mxu0
  %614 = vdwg.mxu0
  %v616 = vsel %vm398, %v48, 0
  %618 = vmatprep.subr.bf16.mxu0 0
  %619 = vmatpush1.bf16.msra.mxu0 %v384
  %620 = vmatprep.subr.bf16.mxu0 0
  %621 = vmatpush1.bf16.msra.mxu0 0
  %622 = vmatprep.subr.bf16.mxu0 0
  %623 = vmatpush1.bf16.msra.mxu0 0
  %624 = vmatprep.subr.bf16.mxu0 0
  %625 = vmatpush1.bf16.msra.mxu0 0
  %626 = vmatprep.subr.bf16.mxu0 0
  %627 = vmatpush1.bf16.msra.mxu0 0
  %628 = vmatprep.subr.bf16.mxu0 0
  %629 = vmatpush1.bf16.msra.mxu0 0
  %630 = vmatprep.subr.bf16.mxu0 0
  %631 = vmatpush1.bf16.msra.mxu0 0
  %632 = vmatprep.subr.bf16.mxu0 0
  %633 = vmatpush1.bf16.msra.mxu0 0
  %634 = vmatprep.subr.bf16.mxu0 0
  %635 = vmatpush1.bf16.msra.mxu0 0
  %636 = vmatprep.subr.bf16.mxu0 0
  %637 = vmatpush1.bf16.msra.mxu0 0
  %638 = vmatprep.subr.bf16.mxu0 0
  %639 = vmatpush1.bf16.msra.mxu0 0
  %640 = vmatprep.subr.bf16.mxu0 0
  %641 = vmatpush1.bf16.msra.mxu0 0
  %642 = vmatprep.subr.bf16.mxu0 0
  %643 = vmatpush1.bf16.msra.mxu0 0
  %644 = vmatprep.subr.bf16.mxu0 0
  %645 = vmatpush1.bf16.msra.mxu0 0
  %646 = vmatprep.subr.bf16.mxu0 0
  %647 = vmatpush1.bf16.msra.mxu0 0
  %648 = vmatprep.subr.bf16.mxu0 0
  %649 = vmatpush1.bf16.msra.mxu0 0
  %650 = vmatprep.mubr.bf16.mxu0 0
  %651 = vmatmul.mubr.bf16.gmra.mrb[0].mxu0 %v616
  %v652 = vpop.f32.mrb[0].mxu0
  %v653 = vadd.f32 0.0, %v652
  %v654 = vpop.f32.mrb[0].mxu0
  %v655 = vpop.f32.mrb[0].mxu0
  %v656 = vadd.f32 0.0, %v655
  %v657 = vpop.f32.mrb[0].mxu0
  %658 = vdwg.mxu0
  %v659 = vadd.f32 %v609, %v653
  %v660 = vadd.f32 %v612, %v656
  %v662 = vsel %vm398, %v51, 0
  %664 = vmatprep.subr.bf16.mxu0 0
  %665 = vmatpush1.bf16.msra.mxu0 %v397
  %666 = vmatprep.subr.bf16.mxu0 0
  %667 = vmatpush1.bf16.msra.mxu0 0
  %668 = vmatprep.subr.bf16.mxu0 0
  %669 = vmatpush1.bf16.msra.mxu0 0
  %670 = vmatprep.subr.bf16.mxu0 0
  %671 = vmatpush1.bf16.msra.mxu0 0
  %672 = vmatprep.subr.bf16.mxu0 0
  %673 = vmatpush1.bf16.msra.mxu0 0
  %674 = vmatprep.subr.bf16.mxu0 0
  %675 = vmatpush1.bf16.msra.mxu0 0
  %676 = vmatprep.subr.bf16.mxu0 0
  %677 = vmatpush1.bf16.msra.mxu0 0
  %678 = vmatprep.subr.bf16.mxu0 0
  %679 = vmatpush1.bf16.msra.mxu0 0
  %680 = vmatprep.subr.bf16.mxu0 0
  %681 = vmatpush1.bf16.msra.mxu0 0
  %682 = vmatprep.subr.bf16.mxu0 0
  %683 = vmatpush1.bf16.msra.mxu0 0
  %684 = vmatprep.subr.bf16.mxu0 0
  %685 = vmatpush1.bf16.msra.mxu0 0
  %686 = vmatprep.subr.bf16.mxu0 0
  %687 = vmatpush1.bf16.msra.mxu0 0
  %688 = vmatprep.subr.bf16.mxu0 0
  %689 = vmatpush1.bf16.msra.mxu0 0
  %690 = vmatprep.subr.bf16.mxu0 0
  %691 = vmatpush1.bf16.msra.mxu0 0
  %692 = vmatprep.subr.bf16.mxu0 0
  %693 = vmatpush1.bf16.msra.mxu0 0
  %694 = vmatprep.subr.bf16.mxu0 0
  %695 = vmatpush1.bf16.msra.mxu0 0
  %696 = vmatprep.mubr.bf16.mxu0 0
  %697 = vmatmul.mubr.bf16.gmra.mrb[0].mxu0 %v662
  %v698 = vpop.f32.mrb[0].mxu0
  %v699 = vadd.f32 0.0, %v698
  %v700 = vpop.f32.mrb[0].mxu0
  %v701 = vpop.f32.mrb[0].mxu0
  %v702 = vadd.f32 0.0, %v701
  %v703 = vpop.f32.mrb[0].mxu0
  %704 = vdwg.mxu0
  %705 = vmatprep.subr.bf16.mxu0 0
  %706 = vmatpush1.bf16.msra.mxu0 %v392
  %707 = vmatprep.subr.bf16.mxu0 0
  %708 = vmatpush1.bf16.msra.mxu0 0
  %709 = vmatprep.subr.bf16.mxu0 0
  %710 = vmatpush1.bf16.msra.mxu0 0
  %711 = vmatprep.subr.bf16.mxu0 0
  %712 = vmatpush1.bf16.msra.mxu0 0
  %713 = vmatprep.subr.bf16.mxu0 0
  %714 = vmatpush1.bf16.msra.mxu0 0
  %715 = vmatprep.subr.bf16.mxu0 0
  %716 = vmatpush1.bf16.msra.mxu0 0
  %717 = vmatprep.subr.bf16.mxu0 0
  %718 = vmatpush1.bf16.msra.mxu0 0
  %719 = vmatprep.subr.bf16.mxu0 0
  %720 = vmatpush1.bf16.msra.mxu0 0
  %721 = vmatprep.subr.bf16.mxu0 0
  %722 = vmatpush1.bf16.msra.mxu0 0
  %723 = vmatprep.subr.bf16.mxu0 0
  %724 = vmatpush1.bf16.msra.mxu0 0
  %725 = vmatprep.subr.bf16.mxu0 0
  %726 = vmatpush1.bf16.msra.mxu0 0
  %727 = vmatprep.subr.bf16.mxu0 0
  %728 = vmatpush1.bf16.msra.mxu0 0
  %729 = vmatprep.subr.bf16.mxu0 0
  %730 = vmatpush1.bf16.msra.mxu0 0
  %731 = vmatprep.subr.bf16.mxu0 0
  %732 = vmatpush1.bf16.msra.mxu0 0
  %733 = vmatprep.subr.bf16.mxu0 0
  %734 = vmatpush1.bf16.msra.mxu0 0
  %735 = vmatprep.subr.bf16.mxu0 0
  %736 = vmatpush1.bf16.msra.mxu0 0
  %737 = vmatprep.mubr.bf16.mxu0 0
  %738 = vmatmul.mubr.bf16.gmra.mrb[0].mxu0 %v662
  %v739 = vpop.f32.mrb[0].mxu0
  %v740 = vadd.f32 %v699, %v739
  %v741 = vpop.f32.mrb[0].mxu0
  %v742 = vpop.f32.mrb[0].mxu0
  %v743 = vadd.f32 %v702, %v742
  %v744 = vpop.f32.mrb[0].mxu0
  %745 = vdwg.mxu0
  %v747 = vsel %vm398, %v56, 0
  %749 = vmatprep.subr.bf16.mxu0 0
  %750 = vmatpush1.bf16.msra.mxu0 %v392
  %751 = vmatprep.subr.bf16.mxu0 0
  %752 = vmatpush1.bf16.msra.mxu0 0
  %753 = vmatprep.subr.bf16.mxu0 0
  %754 = vmatpush1.bf16.msra.mxu0 0
  %755 = vmatprep.subr.bf16.mxu0 0
  %756 = vmatpush1.bf16.msra.mxu0 0
  %757 = vmatprep.subr.bf16.mxu0 0
  %758 = vmatpush1.bf16.msra.mxu0 0
  %759 = vmatprep.subr.bf16.mxu0 0
  %760 = vmatpush1.bf16.msra.mxu0 0
  %761 = vmatprep.subr.bf16.mxu0 0
  %762 = vmatpush1.bf16.msra.mxu0 0
  %763 = vmatprep.subr.bf16.mxu0 0
  %764 = vmatpush1.bf16.msra.mxu0 0
  %765 = vmatprep.subr.bf16.mxu0 0
  %766 = vmatpush1.bf16.msra.mxu0 0
  %767 = vmatprep.subr.bf16.mxu0 0
  %768 = vmatpush1.bf16.msra.mxu0 0
  %769 = vmatprep.subr.bf16.mxu0 0
  %770 = vmatpush1.bf16.msra.mxu0 0
  %771 = vmatprep.subr.bf16.mxu0 0
  %772 = vmatpush1.bf16.msra.mxu0 0
  %773 = vmatprep.subr.bf16.mxu0 0
  %774 = vmatpush1.bf16.msra.mxu0 0
  %775 = vmatprep.subr.bf16.mxu0 0
  %776 = vmatpush1.bf16.msra.mxu0 0
  %777 = vmatprep.subr.bf16.mxu0 0
  %778 = vmatpush1.bf16.msra.mxu0 0
  %779 = vmatprep.subr.bf16.mxu0 0
  %780 = vmatpush1.bf16.msra.mxu0 0
  %781 = vmatprep.mubr.bf16.mxu0 0
  %782 = vmatmul.mubr.bf16.gmra.mrb[0].mxu0 %v747
  %v783 = vpop.f32.mrb[0].mxu0
  %v784 = vadd.f32 0.0, %v783
  %v785 = vpop.f32.mrb[0].mxu0
  %v786 = vpop.f32.mrb[0].mxu0
  %v787 = vadd.f32 0.0, %v786
  %v788 = vpop.f32.mrb[0].mxu0
  %789 = vdwg.mxu0
  %v790 = vadd.f32 %v740, %v784
  %v791 = vadd.f32 %v743, %v787
  %v792 = vsub.f32 %v528, %v659
  %v793 = vsub.f32 %v529, %v660
  %v794 = vsub.f32 %v790, %v528
  %v795 = vsub.f32 %v791, %v529
  %v796 = vsub.f32 %v794, %v659
  %v797 = vsub.f32 %v795, %v660
  %v798 = vld [vmem:[%s8] sm:$0xff]
  %v799 = vld [vmem:[%s8 + $0x8] sm:$0xff]
  %v800 = vcvt.s32.f32 %v798
  %v801 = vcvt.s32.f32 %v799
  %v802 = vsub.f32 1.0, %v800
  %v803 = vsub.f32 1.0, %v801
  %v804 = vmul.f32 %v802, %v792
  %v805 = vmul.f32 %v803, %v793
  %v806 = vld [vmem:[%s7] sm:$0xff]
  %v807 = vld [vmem:[%s7 + $0x8] sm:$0xff]
  %v808 = vmul.f32 %v800, %v806
  %v809 = vmul.f32 %v801, %v807
  %v810 = vadd.f32 %v804, %v808
  %v811 = vadd.f32 %v805, %v809
  %v812 = vmul.f32 %v802, %v796
  %v813 = vmul.f32 %v803, %v797
  %s814 = scalar_lea.vmem %s7, 32
  %v815 = vld [vmem:[%s814] sm:$0xff]
  %v816 = vld [vmem:[%s814 + $0x8] sm:$0xff]
  %v817 = vmul.f32 %v800, %v815
  %v818 = vmul.f32 %v801, %v816
  %v819 = vadd.f32 %v812, %v817
  %v820 = vadd.f32 %v813, %v818
  %v821 = vpack.c.bf16 %v811, %v810
  %v822 = vunpack.c.l.bf16 %v821
  %v823 = vunpack.c.h.bf16 %v821
  %v824 = vsub.f32 %v810, %v822
  %v825 = vsub.f32 %v811, %v823
  %v826 = vpack.c.bf16 %v825, %v824
  %v827 = vpack.c.bf16 %v820, %v819
  %v828 = vunpack.c.l.bf16 %v827
  %v829 = vunpack.c.h.bf16 %v827
  %v830 = vsub.f32 %v819, %v828
  %v831 = vsub.f32 %v820, %v829
  %v832 = vpack.c.bf16 %v831, %v830
  %v833 = vadd.f32 %v810, %v819
  %v834 = vadd.f32 %v811, %v820
  %v835 = vpack.c.bf16 %v834, %v833
  %v836 = vunpack.c.l.bf16 %v835
  %v837 = vunpack.c.h.bf16 %v835
  %v838 = vsub.f32 %v833, %v836
  %v839 = vsub.f32 %v834, %v837
  %v840 = vpack.c.bf16 %v839, %v838
  %841 = vmatprep.subr.bf16.mxu0 0
  %842 = vmatpush1.bf16.msra.mxu0 %v826
  %843 = vmatprep.subr.bf16.mxu0 0
  %844 = vmatpush1.bf16.msra.mxu0 0
  %845 = vmatprep.subr.bf16.mxu0 0
  %846 = vmatpush1.bf16.msra.mxu0 0
  %847 = vmatprep.subr.bf16.mxu0 0
  %848 = vmatpush1.bf16.msra.mxu0 0
  %849 = vmatprep.subr.bf16.mxu0 0
  %850 = vmatpush1.bf16.msra.mxu0 0
  %851 = vmatprep.subr.bf16.mxu0 0
  %852 = vmatpush1.bf16.msra.mxu0 0
  %853 = vmatprep.subr.bf16.mxu0 0
  %854 = vmatpush1.bf16.msra.mxu0 0
  %855 = vmatprep.subr.bf16.mxu0 0
  %856 = vmatpush1.bf16.msra.mxu0 0
  %857 = vmatprep.subr.bf16.mxu0 0
  %858 = vmatpush1.bf16.msra.mxu0 0
  %859 = vmatprep.subr.bf16.mxu0 0
  %860 = vmatpush1.bf16.msra.mxu0 0
  %861 = vmatprep.subr.bf16.mxu0 0
  %862 = vmatpush1.bf16.msra.mxu0 0
  %863 = vmatprep.subr.bf16.mxu0 0
  %864 = vmatpush1.bf16.msra.mxu0 0
  %865 = vmatprep.subr.bf16.mxu0 0
  %866 = vmatpush1.bf16.msra.mxu0 0
  %867 = vmatprep.subr.bf16.mxu0 0
  %868 = vmatpush1.bf16.msra.mxu0 0
  %869 = vmatprep.subr.bf16.mxu0 0
  %870 = vmatpush1.bf16.msra.mxu0 0
  %871 = vmatprep.subr.bf16.mxu0 0
  %872 = vmatpush1.bf16.msra.mxu0 0
  %873 = vmatprep.mubr.bf16.mxu0 0
  %874 = vmatmul.mubr.bf16.gmra.mrb[0].mxu0 %v400
  %v875 = vpop.f32.mrb[0].mxu0
  %v876 = vadd.f32 0.0, %v875
  %v877 = vpop.f32.mrb[0].mxu0
  %v878 = vpop.f32.mrb[0].mxu0
  %v879 = vadd.f32 0.0, %v878
  %v880 = vpop.f32.mrb[0].mxu0
  %881 = vdwg.mxu0
  %882 = vmatprep.subr.bf16.mxu0 0
  %883 = vmatpush1.bf16.msra.mxu0 %v821
  %884 = vmatprep.subr.bf16.mxu0 0
  %885 = vmatpush1.bf16.msra.mxu0 0
  %886 = vmatprep.subr.bf16.mxu0 0
  %887 = vmatpush1.bf16.msra.mxu0 0
  %888 = vmatprep.subr.bf16.mxu0 0
  %889 = vmatpush1.bf16.msra.mxu0 0
  %890 = vmatprep.subr.bf16.mxu0 0
  %891 = vmatpush1.bf16.msra.mxu0 0
  %892 = vmatprep.subr.bf16.mxu0 0
  %893 = vmatpush1.bf16.msra.mxu0 0
  %894 = vmatprep.subr.bf16.mxu0 0
  %895 = vmatpush1.bf16.msra.mxu0 0
  %896 = vmatprep.subr.bf16.mxu0 0
  %897 = vmatpush1.bf16.msra.mxu0 0
  %898 = vmatprep.subr.bf16.mxu0 0
  %899 = vmatpush1.bf16.msra.mxu0 0
  %900 = vmatprep.subr.bf16.mxu0 0
  %901 = vmatpush1.bf16.msra.mxu0 0
  %902 = vmatprep.subr.bf16.mxu0 0
  %903 = vmatpush1.bf16.msra.mxu0 0
  %904 = vmatprep.subr.bf16.mxu0 0
  %905 = vmatpush1.bf16.msra.mxu0 0
  %906 = vmatprep.subr.bf16.mxu0 0
  %907 = vmatpush1.bf16.msra.mxu0 0
  %908 = vmatprep.subr.bf16.mxu0 0
  %909 = vmatpush1.bf16.msra.mxu0 0
  %910 = vmatprep.subr.bf16.mxu0 0
  %911 = vmatpush1.bf16.msra.mxu0 0
  %912 = vmatprep.subr.bf16.mxu0 0
  %913 = vmatpush1.bf16.msra.mxu0 0
  %914 = vmatprep.mubr.bf16.mxu0 0
  %915 = vmatmul.mubr.bf16.gmra.mrb[0].mxu0 %v400
  %v916 = vpop.f32.mrb[0].mxu0
  %v917 = vadd.f32 %v876, %v916
  %v918 = vpop.f32.mrb[0].mxu0
  %v919 = vpop.f32.mrb[0].mxu0
  %v920 = vadd.f32 %v879, %v919
  %v921 = vpop.f32.mrb[0].mxu0
  %922 = vdwg.mxu0
  %923 = vmatprep.subr.bf16.mxu0 0
  %924 = vmatpush1.bf16.msra.mxu0 %v821
  %925 = vmatprep.subr.bf16.mxu0 0
  %926 = vmatpush1.bf16.msra.mxu0 0
  %927 = vmatprep.subr.bf16.mxu0 0
  %928 = vmatpush1.bf16.msra.mxu0 0
  %929 = vmatprep.subr.bf16.mxu0 0
  %930 = vmatpush1.bf16.msra.mxu0 0
  %931 = vmatprep.subr.bf16.mxu0 0
  %932 = vmatpush1.bf16.msra.mxu0 0
  %933 = vmatprep.subr.bf16.mxu0 0
  %934 = vmatpush1.bf16.msra.mxu0 0
  %935 = vmatprep.subr.bf16.mxu0 0
  %936 = vmatpush1.bf16.msra.mxu0 0
  %937 = vmatprep.subr.bf16.mxu0 0
  %938 = vmatpush1.bf16.msra.mxu0 0
  %939 = vmatprep.subr.bf16.mxu0 0
  %940 = vmatpush1.bf16.msra.mxu0 0
  %941 = vmatprep.subr.bf16.mxu0 0
  %942 = vmatpush1.bf16.msra.mxu0 0
  %943 = vmatprep.subr.bf16.mxu0 0
  %944 = vmatpush1.bf16.msra.mxu0 0
  %945 = vmatprep.subr.bf16.mxu0 0
  %946 = vmatpush1.bf16.msra.mxu0 0
  %947 = vmatprep.subr.bf16.mxu0 0
  %948 = vmatpush1.bf16.msra.mxu0 0
  %949 = vmatprep.subr.bf16.mxu0 0
  %950 = vmatpush1.bf16.msra.mxu0 0
  %951 = vmatprep.subr.bf16.mxu0 0
  %952 = vmatpush1.bf16.msra.mxu0 0
  %953 = vmatprep.subr.bf16.mxu0 0
  %954 = vmatpush1.bf16.msra.mxu0 0
  %955 = vmatprep.mubr.bf16.mxu0 0
  %956 = vmatmul.mubr.bf16.gmra.mrb[0].mxu0 %v485
  %v957 = vpop.f32.mrb[0].mxu0
  %v958 = vadd.f32 0.0, %v957
  %v959 = vpop.f32.mrb[0].mxu0
  %v960 = vpop.f32.mrb[0].mxu0
  %v961 = vadd.f32 0.0, %v960
  %v962 = vpop.f32.mrb[0].mxu0
  %963 = vdwg.mxu0
  %v964 = vadd.f32 %v917, %v958
  %v965 = vadd.f32 %v920, %v961
  %966 = vmatprep.subr.bf16.mxu0 0
  %967 = vmatpush1.bf16.msra.mxu0 %v832
  %968 = vmatprep.subr.bf16.mxu0 0
  %969 = vmatpush1.bf16.msra.mxu0 0
  %970 = vmatprep.subr.bf16.mxu0 0
  %971 = vmatpush1.bf16.msra.mxu0 0
  %972 = vmatprep.subr.bf16.mxu0 0
  %973 = vmatpush1.bf16.msra.mxu0 0
  %974 = vmatprep.subr.bf16.mxu0 0
  %975 = vmatpush1.bf16.msra.mxu0 0
  %976 = vmatprep.subr.bf16.mxu0 0
  %977 = vmatpush1.bf16.msra.mxu0 0
  %978 = vmatprep.subr.bf16.mxu0 0
  %979 = vmatpush1.bf16.msra.mxu0 0
  %980 = vmatprep.subr.bf16.mxu0 0
  %981 = vmatpush1.bf16.msra.mxu0 0
  %982 = vmatprep.subr.bf16.mxu0 0
  %983 = vmatpush1.bf16.msra.mxu0 0
  %984 = vmatprep.subr.bf16.mxu0 0
  %985 = vmatpush1.bf16.msra.mxu0 0
  %986 = vmatprep.subr.bf16.mxu0 0
  %987 = vmatpush1.bf16.msra.mxu0 0
  %988 = vmatprep.subr.bf16.mxu0 0
  %989 = vmatpush1.bf16.msra.mxu0 0
  %990 = vmatprep.subr.bf16.mxu0 0
  %991 = vmatpush1.bf16.msra.mxu0 0
  %992 = vmatprep.subr.bf16.mxu0 0
  %993 = vmatpush1.bf16.msra.mxu0 0
  %994 = vmatprep.subr.bf16.mxu0 0
  %995 = vmatpush1.bf16.msra.mxu0 0
  %996 = vmatprep.subr.bf16.mxu0 0
  %997 = vmatpush1.bf16.msra.mxu0 0
  %998 = vmatprep.mubr.bf16.mxu0 0
  %999 = vmatmul.mubr.bf16.gmra.mrb[0].mxu0 %v531
  %v1000 = vpop.f32.mrb[0].mxu0
  %v1001 = vadd.f32 0.0, %v1000
  %v1002 = vpop.f32.mrb[0].mxu0
  %v1003 = vpop.f32.mrb[0].mxu0
  %v1004 = vadd.f32 0.0, %v1003
  %v1005 = vpop.f32.mrb[0].mxu0
  %1006 = vdwg.mxu0
  %1007 = vmatprep.subr.bf16.mxu0 0
  %1008 = vmatpush1.bf16.msra.mxu0 %v827
  %1009 = vmatprep.subr.bf16.mxu0 0
  %1010 = vmatpush1.bf16.msra.mxu0 0
  %1011 = vmatprep.subr.bf16.mxu0 0
  %1012 = vmatpush1.bf16.msra.mxu0 0
  %1013 = vmatprep.subr.bf16.mxu0 0
  %1014 = vmatpush1.bf16.msra.mxu0 0
  %1015 = vmatprep.subr.bf16.mxu0 0
  %1016 = vmatpush1.bf16.msra.mxu0 0
  %1017 = vmatprep.subr.bf16.mxu0 0
  %1018 = vmatpush1.bf16.msra.mxu0 0
  %1019 = vmatprep.subr.bf16.mxu0 0
  %1020 = vmatpush1.bf16.msra.mxu0 0
  %1021 = vmatprep.subr.bf16.mxu0 0
  %1022 = vmatpush1.bf16.msra.mxu0 0
  %1023 = vmatprep.subr.bf16.mxu0 0
  %1024 = vmatpush1.bf16.msra.mxu0 0
  %1025 = vmatprep.subr.bf16.mxu0 0
  %1026 = vmatpush1.bf16.msra.mxu0 0
  %1027 = vmatprep.subr.bf16.mxu0 0
  %1028 = vmatpush1.bf16.msra.mxu0 0
  %1029 = vmatprep.subr.bf16.mxu0 0
  %1030 = vmatpush1.bf16.msra.mxu0 0
  %1031 = vmatprep.subr.bf16.mxu0 0
  %1032 = vmatpush1.bf16.msra.mxu0 0
  %1033 = vmatprep.subr.bf16.mxu0 0
  %1034 = vmatpush1.bf16.msra.mxu0 0
  %1035 = vmatprep.subr.bf16.mxu0 0
  %1036 = vmatpush1.bf16.msra.mxu0 0
  %1037 = vmatprep.subr.bf16.mxu0 0
  %1038 = vmatpush1.bf16.msra.mxu0 0
  %1039 = vmatprep.mubr.bf16.mxu0 0
  %1040 = vmatmul.mubr.bf16.gmra.mrb[0].mxu0 %v531
  %v1041 = vpop.f32.mrb[0].mxu0
  %v1042 = vadd.f32 %v1001, %v1041
  %v1043 = vpop.f32.mrb[0].mxu0
  %v1044 = vpop.f32.mrb[0].mxu0
  %v1045 = vadd.f32 %v1004, %v1044
  %v1046 = vpop.f32.mrb[0].mxu0
  %1047 = vdwg.mxu0
  %1048 = vmatprep.subr.bf16.mxu0 0
  %1049 = vmatpush1.bf16.msra.mxu0 %v827
  %1050 = vmatprep.subr.bf16.mxu0 0
  %1051 = vmatpush1.bf16.msra.mxu0 0
  %1052 = vmatprep.subr.bf16.mxu0 0
  %1053 = vmatpush1.bf16.msra.mxu0 0
  %1054 = vmatprep.subr.bf16.mxu0 0
  %1055 = vmatpush1.bf16.msra.mxu0 0
  %1056 = vmatprep.subr.bf16.mxu0 0
  %1057 = vmatpush1.bf16.msra.mxu0 0
  %1058 = vmatprep.subr.bf16.mxu0 0
  %1059 = vmatpush1.bf16.msra.mxu0 0
  %1060 = vmatprep.subr.bf16.mxu0 0
  %1061 = vmatpush1.bf16.msra.mxu0 0
  %1062 = vmatprep.subr.bf16.mxu0 0
  %1063 = vmatpush1.bf16.msra.mxu0 0
  %1064 = vmatprep.subr.bf16.mxu0 0
  %1065 = vmatpush1.bf16.msra.mxu0 0
  %1066 = vmatprep.subr.bf16.mxu0 0
  %1067 = vmatpush1.bf16.msra.mxu0 0
  %1068 = vmatprep.subr.bf16.mxu0 0
  %1069 = vmatpush1.bf16.msra.mxu0 0
  %1070 = vmatprep.subr.bf16.mxu0 0
  %1071 = vmatpush1.bf16.msra.mxu0 0
  %1072 = vmatprep.subr.bf16.mxu0 0
  %1073 = vmatpush1.bf16.msra.mxu0 0
  %1074 = vmatprep.subr.bf16.mxu0 0
  %1075 = vmatpush1.bf16.msra.mxu0 0
  %1076 = vmatprep.subr.bf16.mxu0 0
  %1077 = vmatpush1.bf16.msra.mxu0 0
  %1078 = vmatprep.subr.bf16.mxu0 0
  %1079 = vmatpush1.bf16.msra.mxu0 0
  %1080 = vmatprep.mubr.bf16.mxu0 0
  %1081 = vmatmul.mubr.bf16.gmra.mrb[0].mxu0 %v616
  %v1082 = vpop.f32.mrb[0].mxu0
  %v1083 = vadd.f32 0.0, %v1082
  %v1084 = vpop.f32.mrb[0].mxu0
  %v1085 = vpop.f32.mrb[0].mxu0
  %v1086 = vadd.f32 0.0, %v1085
  %v1087 = vpop.f32.mrb[0].mxu0
  %1088 = vdwg.mxu0
  %v1089 = vadd.f32 %v1042, %v1083
  %v1090 = vadd.f32 %v1045, %v1086
  %v1092 = vsel %vm398, %v59, 0
  %1094 = vmatprep.subr.bf16.mxu0 0
  %1095 = vmatpush1.bf16.msra.mxu0 %v840
  %1096 = vmatprep.subr.bf16.mxu0 0
  %1097 = vmatpush1.bf16.msra.mxu0 0
  %1098 = vmatprep.subr.bf16.mxu0 0
  %1099 = vmatpush1.bf16.msra.mxu0 0
  %1100 = vmatprep.subr.bf16.mxu0 0
  %1101 = vmatpush1.bf16.msra.mxu0 0
  %1102 = vmatprep.subr.bf16.mxu0 0
  %1103 = vmatpush1.bf16.msra.mxu0 0
  %1104 = vmatprep.subr.bf16.mxu0 0
  %1105 = vmatpush1.bf16.msra.mxu0 0
  %1106 = vmatprep.subr.bf16.mxu0 0
  %1107 = vmatpush1.bf16.msra.mxu0 0
  %1108 = vmatprep.subr.bf16.mxu0 0
  %1109 = vmatpush1.bf16.msra.mxu0 0
  %1110 = vmatprep.subr.bf16.mxu0 0
  %1111 = vmatpush1.bf16.msra.mxu0 0
  %1112 = vmatprep.subr.bf16.mxu0 0
  %1113 = vmatpush1.bf16.msra.mxu0 0
  %1114 = vmatprep.subr.bf16.mxu0 0
  %1115 = vmatpush1.bf16.msra.mxu0 0
  %1116 = vmatprep.subr.bf16.mxu0 0
  %1117 = vmatpush1.bf16.msra.mxu0 0
  %1118 = vmatprep.subr.bf16.mxu0 0
  %1119 = vmatpush1.bf16.msra.mxu0 0
  %1120 = vmatprep.subr.bf16.mxu0 0
  %1121 = vmatpush1.bf16.msra.mxu0 0
  %1122 = vmatprep.subr.bf16.mxu0 0
  %1123 = vmatpush1.bf16.msra.mxu0 0
  %1124 = vmatprep.subr.bf16.mxu0 0
  %1125 = vmatpush1.bf16.msra.mxu0 0
  %1126 = vmatprep.mubr.bf16.mxu0 0
  %1127 = vmatmul.mubr.bf16.gmra.mrb[0].mxu0 %v1092
  %v1128 = vpop.f32.mrb[0].mxu0
  %v1129 = vadd.f32 0.0, %v1128
  %v1130 = vpop.f32.mrb[0].mxu0
  %v1131 = vpop.f32.mrb[0].mxu0
  %v1132 = vadd.f32 0.0, %v1131
  %v1133 = vpop.f32.mrb[0].mxu0
  %1134 = vdwg.mxu0
  %1135 = vmatprep.subr.bf16.mxu0 0
  %1136 = vmatpush1.bf16.msra.mxu0 %v835
  %1137 = vmatprep.subr.bf16.mxu0 0
  %1138 = vmatpush1.bf16.msra.mxu0 0
  %1139 = vmatprep.subr.bf16.mxu0 0
  %1140 = vmatpush1.bf16.msra.mxu0 0
  %1141 = vmatprep.subr.bf16.mxu0 0
  %1142 = vmatpush1.bf16.msra.mxu0 0
  %1143 = vmatprep.subr.bf16.mxu0 0
  %1144 = vmatpush1.bf16.msra.mxu0 0
  %1145 = vmatprep.subr.bf16.mxu0 0
  %1146 = vmatpush1.bf16.msra.mxu0 0
  %1147 = vmatprep.subr.bf16.mxu0 0
  %1148 = vmatpush1.bf16.msra.mxu0 0
  %1149 = vmatprep.subr.bf16.mxu0 0
  %1150 = vmatpush1.bf16.msra.mxu0 0
  %1151 = vmatprep.subr.bf16.mxu0 0
  %1152 = vmatpush1.bf16.msra.mxu0 0
  %1153 = vmatprep.subr.bf16.mxu0 0
  %1154 = vmatpush1.bf16.msra.mxu0 0
  %1155 = vmatprep.subr.bf16.mxu0 0
  %1156 = vmatpush1.bf16.msra.mxu0 0
  %1157 = vmatprep.subr.bf16.mxu0 0
  %1158 = vmatpush1.bf16.msra.mxu0 0
  %1159 = vmatprep.subr.bf16.mxu0 0
  %1160 = vmatpush1.bf16.msra.mxu0 0
  %1161 = vmatprep.subr.bf16.mxu0 0
  %1162 = vmatpush1.bf16.msra.mxu0 0
  %1163 = vmatprep.subr.bf16.mxu0 0
  %1164 = vmatpush1.bf16.msra.mxu0 0
  %1165 = vmatprep.subr.bf16.mxu0 0
  %1166 = vmatpush1.bf16.msra.mxu0 0
  %1167 = vmatprep.mubr.bf16.mxu0 0
  %1168 = vmatmul.mubr.bf16.gmra.mrb[0].mxu0 %v1092
  %v1169 = vpop.f32.mrb[0].mxu0
  %v1170 = vadd.f32 %v1129, %v1169
  %v1171 = vpop.f32.mrb[0].mxu0
  %v1172 = vpop.f32.mrb[0].mxu0
  %v1173 = vadd.f32 %v1132, %v1172
  %v1174 = vpop.f32.mrb[0].mxu0
  %1175 = vdwg.mxu0
  %v1177 = vsel %vm398, %v64, 0
  %1179 = vmatprep.subr.bf16.mxu0 0
  %1180 = vmatpush1.bf16.msra.mxu0 %v835
  %1181 = vmatprep.subr.bf16.mxu0 0
  %1182 = vmatpush1.bf16.msra.mxu0 0
  %1183 = vmatprep.subr.bf16.mxu0 0
  %1184 = vmatpush1.bf16.msra.mxu0 0
  %1185 = vmatprep.subr.bf16.mxu0 0
  %1186 = vmatpush1.bf16.msra.mxu0 0
  %1187 = vmatprep.subr.bf16.mxu0 0
  %1188 = vmatpush1.bf16.msra.mxu0 0
  %1189 = vmatprep.subr.bf16.mxu0 0
  %1190 = vmatpush1.bf16.msra.mxu0 0
  %1191 = vmatprep.subr.bf16.mxu0 0
  %1192 = vmatpush1.bf16.msra.mxu0 0
  %1193 = vmatprep.subr.bf16.mxu0 0
  %1194 = vmatpush1.bf16.msra.mxu0 0
  %1195 = vmatprep.subr.bf16.mxu0 0
  %1196 = vmatpush1.bf16.msra.mxu0 0
  %1197 = vmatprep.subr.bf16.mxu0 0
  %1198 = vmatpush1.bf16.msra.mxu0 0
  %1199 = vmatprep.subr.bf16.mxu0 0
  %1200 = vmatpush1.bf16.msra.mxu0 0
  %1201 = vmatprep.subr.bf16.mxu0 0
  %1202 = vmatpush1.bf16.msra.mxu0 0
  %1203 = vmatprep.subr.bf16.mxu0 0
  %1204 = vmatpush1.bf16.msra.mxu0 0
  %1205 = vmatprep.subr.bf16.mxu0 0
  %1206 = vmatpush1.bf16.msra.mxu0 0
  %1207 = vmatprep.subr.bf16.mxu0 0
  %1208 = vmatpush1.bf16.msra.mxu0 0
  %1209 = vmatprep.subr.bf16.mxu0 0
  %1210 = vmatpush1.bf16.msra.mxu0 0
  %1211 = vmatprep.mubr.bf16.mxu0 0
  %1212 = vmatmul.mubr.bf16.gmra.mrb[0].mxu0 %v1177
  %v1213 = vpop.f32.mrb[0].mxu0
  %v1214 = vadd.f32 0.0, %v1213
  %v1215 = vpop.f32.mrb[0].mxu0
  %v1216 = vpop.f32.mrb[0].mxu0
  %v1217 = vadd.f32 0.0, %v1216
  %v1218 = vpop.f32.mrb[0].mxu0
  %1219 = vdwg.mxu0
  %v1220 = vadd.f32 %v1170, %v1214
  %v1221 = vadd.f32 %v1173, %v1217
  %v1222 = vadd.f32 %v964, %v1089
  %v1223 = vadd.f32 %v965, %v1090
  %v1224 = vsub.f32 %v1220, %v964
  %v1225 = vsub.f32 %v1221, %v965
  %v1226 = vadd.f32 %v1224, %v1089
  %v1227 = vadd.f32 %v1225, %v1090
  %v1228 = vpack.c.bf16 %v1223, %v1222
  %v1229 = vunpack.c.l.bf16 %v1228
  %v1230 = vunpack.c.h.bf16 %v1228
  %v1231 = vsub.f32 %v1222, %v1229
  %v1232 = vsub.f32 %v1223, %v1230
  %v1233 = vpack.c.bf16 %v1232, %v1231
  %v1235 = vsel %vm398, %v1228, 0
  %1237 = vmatprep.subr.bf16.mxu0 0
  %1238 = vmatpush1.bf16.msra.mxu0 %v104
  %1239 = vmatprep.subr.bf16.mxu0 0
  %1240 = vmatpush1.bf16.msra.mxu0 0
  %1241 = vmatprep.subr.bf16.mxu0 0
  %1242 = vmatpush1.bf16.msra.mxu0 0
  %1243 = vmatprep.subr.bf16.mxu0 0
  %1244 = vmatpush1.bf16.msra.mxu0 0
  %1245 = vmatprep.subr.bf16.mxu0 0
  %1246 = vmatpush1.bf16.msra.mxu0 0
  %1247 = vmatprep.subr.bf16.mxu0 0
  %1248 = vmatpush1.bf16.msra.mxu0 0
  %1249 = vmatprep.subr.bf16.mxu0 0
  %1250 = vmatpush1.bf16.msra.mxu0 0
  %1251 = vmatprep.subr.bf16.mxu0 0
  %1252 = vmatpush1.bf16.msra.mxu0 0
  %1253 = vmatprep.subr.bf16.mxu0 0
  %1254 = vmatpush1.bf16.msra.mxu0 0
  %1255 = vmatprep.subr.bf16.mxu0 0
  %1256 = vmatpush1.bf16.msra.mxu0 0
  %1257 = vmatprep.subr.bf16.mxu0 0
  %1258 = vmatpush1.bf16.msra.mxu0 0
  %1259 = vmatprep.subr.bf16.mxu0 0
  %1260 = vmatpush1.bf16.msra.mxu0 0
  %1261 = vmatprep.subr.bf16.mxu0 0
  %1262 = vmatpush1.bf16.msra.mxu0 0
  %1263 = vmatprep.subr.bf16.mxu0 0
  %1264 = vmatpush1.bf16.msra.mxu0 0
  %1265 = vmatprep.subr.bf16.mxu0 0
  %1266 = vmatpush1.bf16.msra.mxu0 0
  %1267 = vmatprep.subr.bf16.mxu0 0
  %1268 = vmatpush1.bf16.msra.mxu0 0
  %1269 = vmatprep.mubr.bf16.mxu0 0
  %1270 = vmatmul.mubr.bf16.gmra.mrb[0].mxu0 %v1235
  %v1271 = vpop.f32.mrb[0].mxu0
  %v1272 = vadd.f32 0.0, %v1271
  %v1273 = vpop.f32.mrb[0].mxu0
  %v1274 = vpop.f32.mrb[0].mxu0
  %v1275 = vadd.f32 0.0, %v1274
  %v1276 = vpop.f32.mrb[0].mxu0
  %1277 = vdwg.mxu0
  %1278 = vmatprep.subr.bf16.mxu0 0
  %1279 = vmatpush1.bf16.msra.mxu0 %v99
  %1280 = vmatprep.subr.bf16.mxu0 0
  %1281 = vmatpush1.bf16.msra.mxu0 0
  %1282 = vmatprep.subr.bf16.mxu0 0
  %1283 = vmatpush1.bf16.msra.mxu0 0
  %1284 = vmatprep.subr.bf16.mxu0 0
  %1285 = vmatpush1.bf16.msra.mxu0 0
  %1286 = vmatprep.subr.bf16.mxu0 0
  %1287 = vmatpush1.bf16.msra.mxu0 0
  %1288 = vmatprep.subr.bf16.mxu0 0
  %1289 = vmatpush1.bf16.msra.mxu0 0
  %1290 = vmatprep.subr.bf16.mxu0 0
  %1291 = vmatpush1.bf16.msra.mxu0 0
  %1292 = vmatprep.subr.bf16.mxu0 0
  %1293 = vmatpush1.bf16.msra.mxu0 0
  %1294 = vmatprep.subr.bf16.mxu0 0
  %1295 = vmatpush1.bf16.msra.mxu0 0
  %1296 = vmatprep.subr.bf16.mxu0 0
  %1297 = vmatpush1.bf16.msra.mxu0 0
  %1298 = vmatprep.subr.bf16.mxu0 0
  %1299 = vmatpush1.bf16.msra.mxu0 0
  %1300 = vmatprep.subr.bf16.mxu0 0
  %1301 = vmatpush1.bf16.msra.mxu0 0
  %1302 = vmatprep.subr.bf16.mxu0 0
  %1303 = vmatpush1.bf16.msra.mxu0 0
  %1304 = vmatprep.subr.bf16.mxu0 0
  %1305 = vmatpush1.bf16.msra.mxu0 0
  %1306 = vmatprep.subr.bf16.mxu0 0
  %1307 = vmatpush1.bf16.msra.mxu0 0
  %1308 = vmatprep.subr.bf16.mxu0 0
  %1309 = vmatpush1.bf16.msra.mxu0 0
  %1310 = vmatprep.mubr.bf16.mxu0 0
  %1311 = vmatmul.mubr.bf16.gmra.mrb[0].mxu0 %v1235
  %v1312 = vpop.f32.mrb[0].mxu0
  %v1313 = vadd.f32 %v1272, %v1312
  %v1314 = vpop.f32.mrb[0].mxu0
  %v1315 = vpop.f32.mrb[0].mxu0
  %v1316 = vadd.f32 %v1275, %v1315
  %v1317 = vpop.f32.mrb[0].mxu0
  %1318 = vdwg.mxu0
  %v1320 = vsel %vm398, %v1233, 0
  %1322 = vmatprep.subr.bf16.mxu0 0
  %1323 = vmatpush1.bf16.msra.mxu0 %v99
  %1324 = vmatprep.subr.bf16.mxu0 0
  %1325 = vmatpush1.bf16.msra.mxu0 0
  %1326 = vmatprep.subr.bf16.mxu0 0
  %1327 = vmatpush1.bf16.msra.mxu0 0
  %1328 = vmatprep.subr.bf16.mxu0 0
  %1329 = vmatpush1.bf16.msra.mxu0 0
  %1330 = vmatprep.subr.bf16.mxu0 0
  %1331 = vmatpush1.bf16.msra.mxu0 0
  %1332 = vmatprep.subr.bf16.mxu0 0
  %1333 = vmatpush1.bf16.msra.mxu0 0
  %1334 = vmatprep.subr.bf16.mxu0 0
  %1335 = vmatpush1.bf16.msra.mxu0 0
  %1336 = vmatprep.subr.bf16.mxu0 0
  %1337 = vmatpush1.bf16.msra.mxu0 0
  %1338 = vmatprep.subr.bf16.mxu0 0
  %1339 = vmatpush1.bf16.msra.mxu0 0
  %1340 = vmatprep.subr.bf16.mxu0 0
  %1341 = vmatpush1.bf16.msra.mxu0 0
  %1342 = vmatprep.subr.bf16.mxu0 0
  %1343 = vmatpush1.bf16.msra.mxu0 0
  %1344 = vmatprep.subr.bf16.mxu0 0
  %1345 = vmatpush1.bf16.msra.mxu0 0
  %1346 = vmatprep.subr.bf16.mxu0 0
  %1347 = vmatpush1.bf16.msra.mxu0 0
  %1348 = vmatprep.subr.bf16.mxu0 0
  %1349 = vmatpush1.bf16.msra.mxu0 0
  %1350 = vmatprep.subr.bf16.mxu0 0
  %1351 = vmatpush1.bf16.msra.mxu0 0
  %1352 = vmatprep.subr.bf16.mxu0 0
  %1353 = vmatpush1.bf16.msra.mxu0 0
  %1354 = vmatprep.mubr.bf16.mxu0 0
  %1355 = vmatmul.mubr.bf16.gmra.mrb[0].mxu0 %v1320
  %v1356 = vpop.f32.mrb[0].mxu0
  %v1357 = vadd.f32 0.0, %v1356
  %v1358 = vpop.f32.mrb[0].mxu0
  %v1359 = vpop.f32.mrb[0].mxu0
  %v1360 = vadd.f32 0.0, %v1359
  %v1361 = vpop.f32.mrb[0].mxu0
  %1362 = vdwg.mxu0
  %v1363 = vadd.f32 %v1313, %v1357
  %v1364 = vadd.f32 %v1316, %v1360
  %v1365 = vpack.c.bf16 %v1227, %v1226
  %v1366 = vunpack.c.l.bf16 %v1365
  %v1367 = vunpack.c.h.bf16 %v1365
  %v1368 = vsub.f32 %v1226, %v1366
  %v1369 = vsub.f32 %v1227, %v1367
  %v1370 = vpack.c.bf16 %v1369, %v1368
  %v1372 = vsel %vm398, %v1365, 0
  %1374 = vmatprep.subr.bf16.mxu0 0
  %1375 = vmatpush1.bf16.msra.mxu0 %v112
  %1376 = vmatprep.subr.bf16.mxu0 0
  %1377 = vmatpush1.bf16.msra.mxu0 0
  %1378 = vmatprep.subr.bf16.mxu0 0
  %1379 = vmatpush1.bf16.msra.mxu0 0
  %1380 = vmatprep.subr.bf16.mxu0 0
  %1381 = vmatpush1.bf16.msra.mxu0 0
  %1382 = vmatprep.subr.bf16.mxu0 0
  %1383 = vmatpush1.bf16.msra.mxu0 0
  %1384 = vmatprep.subr.bf16.mxu0 0
  %1385 = vmatpush1.bf16.msra.mxu0 0
  %1386 = vmatprep.subr.bf16.mxu0 0
  %1387 = vmatpush1.bf16.msra.mxu0 0
  %1388 = vmatprep.subr.bf16.mxu0 0
  %1389 = vmatpush1.bf16.msra.mxu0 0
  %1390 = vmatprep.subr.bf16.mxu0 0
  %1391 = vmatpush1.bf16.msra.mxu0 0
  %1392 = vmatprep.subr.bf16.mxu0 0
  %1393 = vmatpush1.bf16.msra.mxu0 0
  %1394 = vmatprep.subr.bf16.mxu0 0
  %1395 = vmatpush1.bf16.msra.mxu0 0
  %1396 = vmatprep.subr.bf16.mxu0 0
  %1397 = vmatpush1.bf16.msra.mxu0 0
  %1398 = vmatprep.subr.bf16.mxu0 0
  %1399 = vmatpush1.bf16.msra.mxu0 0
  %1400 = vmatprep.subr.bf16.mxu0 0
  %1401 = vmatpush1.bf16.msra.mxu0 0
  %1402 = vmatprep.subr.bf16.mxu0 0
  %1403 = vmatpush1.bf16.msra.mxu0 0
  %1404 = vmatprep.subr.bf16.mxu0 0
  %1405 = vmatpush1.bf16.msra.mxu0 0
  %1406 = vmatprep.mubr.bf16.mxu0 0
  %1407 = vmatmul.mubr.bf16.gmra.mrb[0].mxu0 %v1372
  %v1408 = vpop.f32.mrb[0].mxu0
  %v1409 = vadd.f32 0.0, %v1408
  %v1410 = vpop.f32.mrb[0].mxu0
  %v1411 = vpop.f32.mrb[0].mxu0
  %v1412 = vadd.f32 0.0, %v1411
  %v1413 = vpop.f32.mrb[0].mxu0
  %1414 = vdwg.mxu0
  %1415 = vmatprep.subr.bf16.mxu0 0
  %1416 = vmatpush1.bf16.msra.mxu0 %v107
  %1417 = vmatprep.subr.bf16.mxu0 0
  %1418 = vmatpush1.bf16.msra.mxu0 0
  %1419 = vmatprep.subr.bf16.mxu0 0
  %1420 = vmatpush1.bf16.msra.mxu0 0
  %1421 = vmatprep.subr.bf16.mxu0 0
  %1422 = vmatpush1.bf16.msra.mxu0 0
  %1423 = vmatprep.subr.bf16.mxu0 0
  %1424 = vmatpush1.bf16.msra.mxu0 0
  %1425 = vmatprep.subr.bf16.mxu0 0
  %1426 = vmatpush1.bf16.msra.mxu0 0
  %1427 = vmatprep.subr.bf16.mxu0 0
  %1428 = vmatpush1.bf16.msra.mxu0 0
  %1429 = vmatprep.subr.bf16.mxu0 0
  %1430 = vmatpush1.bf16.msra.mxu0 0
  %1431 = vmatprep.subr.bf16.mxu0 0
  %1432 = vmatpush1.bf16.msra.mxu0 0
  %1433 = vmatprep.subr.bf16.mxu0 0
  %1434 = vmatpush1.bf16.msra.mxu0 0
  %1435 = vmatprep.subr.bf16.mxu0 0
  %1436 = vmatpush1.bf16.msra.mxu0 0
  %1437 = vmatprep.subr.bf16.mxu0 0
  %1438 = vmatpush1.bf16.msra.mxu0 0
  %1439 = vmatprep.subr.bf16.mxu0 0
  %1440 = vmatpush1.bf16.msra.mxu0 0
  %1441 = vmatprep.subr.bf16.mxu0 0
  %1442 = vmatpush1.bf16.msra.mxu0 0
  %1443 = vmatprep.subr.bf16.mxu0 0
  %1444 = vmatpush1.bf16.msra.mxu0 0
  %1445 = vmatprep.subr.bf16.mxu0 0
  %1446 = vmatpush1.bf16.msra.mxu0 0
  %1447 = vmatprep.mubr.bf16.mxu0 0
  %1448 = vmatmul.mubr.bf16.gmra.mrb[0].mxu0 %v1372
  %v1449 = vpop.f32.mrb[0].mxu0
  %v1450 = vadd.f32 %v1409, %v1449
  %v1451 = vpop.f32.mrb[0].mxu0
  %v1452 = vpop.f32.mrb[0].mxu0
  %v1453 = vadd.f32 %v1412, %v1452
  %v1454 = vpop.f32.mrb[0].mxu0
  %1455 = vdwg.mxu0
  %v1457 = vsel %vm398, %v1370, 0
  %1459 = vmatprep.subr.bf16.mxu0 0
  %1460 = vmatpush1.bf16.msra.mxu0 %v107
  %1461 = vmatprep.subr.bf16.mxu0 0
  %1462 = vmatpush1.bf16.msra.mxu0 0
  %1463 = vmatprep.subr.bf16.mxu0 0
  %1464 = vmatpush1.bf16.msra.mxu0 0
  %1465 = vmatprep.subr.bf16.mxu0 0
  %1466 = vmatpush1.bf16.msra.mxu0 0
  %1467 = vmatprep.subr.bf16.mxu0 0
  %1468 = vmatpush1.bf16.msra.mxu0 0
  %1469 = vmatprep.subr.bf16.mxu0 0
  %1470 = vmatpush1.bf16.msra.mxu0 0
  %1471 = vmatprep.subr.bf16.mxu0 0
  %1472 = vmatpush1.bf16.msra.mxu0 0
  %1473 = vmatprep.subr.bf16.mxu0 0
  %1474 = vmatpush1.bf16.msra.mxu0 0
  %1475 = vmatprep.subr.bf16.mxu0 0
  %1476 = vmatpush1.bf16.msra.mxu0 0
  %1477 = vmatprep.subr.bf16.mxu0 0
  %1478 = vmatpush1.bf16.msra.mxu0 0
  %1479 = vmatprep.subr.bf16.mxu0 0
  %1480 = vmatpush1.bf16.msra.mxu0 0
  %1481 = vmatprep.subr.bf16.mxu0 0
  %1482 = vmatpush1.bf16.msra.mxu0 0
  %1483 = vmatprep.subr.bf16.mxu0 0
  %1484 = vmatpush1.bf16.msra.mxu0 0
  %1485 = vmatprep.subr.bf16.mxu0 0
  %1486 = vmatpush1.bf16.msra.mxu0 0
  %1487 = vmatprep.subr.bf16.mxu0 0
  %1488 = vmatpush1.bf16.msra.mxu0 0
  %1489 = vmatprep.subr.bf16.mxu0 0
  %1490 = vmatpush1.bf16.msra.mxu0 0
  %1491 = vmatprep.mubr.bf16.mxu0 0
  %1492 = vmatmul.mubr.bf16.gmra.mrb[0].mxu0 %v1457
  %v1493 = vpop.f32.mrb[0].mxu0
  %v1494 = vadd.f32 0.0, %v1493
  %v1495 = vpop.f32.mrb[0].mxu0
  %v1496 = vpop.f32.mrb[0].mxu0
  %v1497 = vadd.f32 0.0, %v1496
  %v1498 = vpop.f32.mrb[0].mxu0
  %1499 = vdwg.mxu0
  %v1500 = vadd.f32 %v1450, %v1494
  %v1501 = vadd.f32 %v1453, %v1497
  %v1502 = vadd.f32 %v1363, %v1500
  %v1503 = vadd.f32 %v1364, %v1501
  %1504 = vst.msk [vmem:[%s9] sm:$0xff] %vm121, %v1502
  %1505 = vst.msk [vmem:[%s9 + $0x8] sm:$0xff] %vm121, %v1503
  %s1506 = scalar_lea.vmem %s6, 16
  %v1507 = vld [vmem:[%s1506] sm:$0xff]
  %v1508 = vld [vmem:[%s1506 + $0x8] sm:$0xff]
  %v1509 = vpack.c.bf16 %v1508, %v1507
  %v1510 = vunpack.c.l.bf16 %v1509
  %v1511 = vunpack.c.h.bf16 %v1509
  %v1512 = vsub.f32 %v1507, %v1510
  %v1513 = vsub.f32 %v1508, %v1511
  %v1514 = vpack.c.bf16 %v1513, %v1512
  %v1516 = vsel %vm121, %v1509, 0
  %1518 = vmatprep.subr.bf16.mxu0 0
  %1519 = vmatpush1.bf16.msra.mxu0 %v79
  %1520 = vmatprep.subr.bf16.mxu0 0
  %1521 = vmatpush1.bf16.msra.mxu0 %v80
  %1522 = vmatprep.subr.bf16.mxu0 0
  %1523 = vmatpush1.bf16.msra.mxu0 0
  %1524 = vmatprep.subr.bf16.mxu0 0
  %1525 = vmatpush1.bf16.msra.mxu0 0
  %1526 = vmatprep.subr.bf16.mxu0 0
  %1527 = vmatpush1.bf16.msra.mxu0 0
  %1528 = vmatprep.subr.bf16.mxu0 0
  %1529 = vmatpush1.bf16.msra.mxu0 0
  %1530 = vmatprep.subr.bf16.mxu0 0
  %1531 = vmatpush1.bf16.msra.mxu0 0
  %1532 = vmatprep.subr.bf16.mxu0 0
  %1533 = vmatpush1.bf16.msra.mxu0 0
  %1534 = vmatprep.subr.bf16.mxu0 0
  %1535 = vmatpush1.bf16.msra.mxu0 0
  %1536 = vmatprep.subr.bf16.mxu0 0
  %1537 = vmatpush1.bf16.msra.mxu0 0
  %1538 = vmatprep.subr.bf16.mxu0 0
  %1539 = vmatpush1.bf16.msra.mxu0 0
  %1540 = vmatprep.subr.bf16.mxu0 0
  %1541 = vmatpush1.bf16.msra.mxu0 0
  %1542 = vmatprep.subr.bf16.mxu0 0
  %1543 = vmatpush1.bf16.msra.mxu0 0
  %1544 = vmatprep.subr.bf16.mxu0 0
  %1545 = vmatpush1.bf16.msra.mxu0 0
  %1546 = vmatprep.subr.bf16.mxu0 0
  %1547 = vmatpush1.bf16.msra.mxu0 0
  %1548 = vmatprep.subr.bf16.mxu0 0
  %1549 = vmatpush1.bf16.msra.mxu0 0
  %1550 = vmatprep.mubr.bf16.mxu0 0
  %1551 = vmatmul.mubr.bf16.gmra.mrb[0].mxu0 %v1516
  %v1552 = vpop.f32.mrb[0].mxu0
  %v1553 = vadd.f32 0.0, %v1552
  %v1554 = vpop.f32.mrb[0].mxu0
  %v1555 = vpop.f32.mrb[0].mxu0
  %v1556 = vadd.f32 0.0, %v1555
  %v1557 = vpop.f32.mrb[0].mxu0
  %1558 = vdwg.mxu0
  %1559 = vmatprep.subr.bf16.mxu0 0
  %1560 = vmatpush1.bf16.msra.mxu0 %v69
  %1561 = vmatprep.subr.bf16.mxu0 0
  %1562 = vmatpush1.bf16.msra.mxu0 %v70
  %1563 = vmatprep.subr.bf16.mxu0 0
  %1564 = vmatpush1.bf16.msra.mxu0 0
  %1565 = vmatprep.subr.bf16.mxu0 0
  %1566 = vmatpush1.bf16.msra.mxu0 0
  %1567 = vmatprep.subr.bf16.mxu0 0
  %1568 = vmatpush1.bf16.msra.mxu0 0
  %1569 = vmatprep.subr.bf16.mxu0 0
  %1570 = vmatpush1.bf16.msra.mxu0 0
  %1571 = vmatprep.subr.bf16.mxu0 0
  %1572 = vmatpush1.bf16.msra.mxu0 0
  %1573 = vmatprep.subr.bf16.mxu0 0
  %1574 = vmatpush1.bf16.msra.mxu0 0
  %1575 = vmatprep.subr.bf16.mxu0 0
  %1576 = vmatpush1.bf16.msra.mxu0 0
  %1577 = vmatprep.subr.bf16.mxu0 0
  %1578 = vmatpush1.bf16.msra.mxu0 0
  %1579 = vmatprep.subr.bf16.mxu0 0
  %1580 = vmatpush1.bf16.msra.mxu0 0
  %1581 = vmatprep.subr.bf16.mxu0 0
  %1582 = vmatpush1.bf16.msra.mxu0 0
  %1583 = vmatprep.subr.bf16.mxu0 0
  %1584 = vmatpush1.bf16.msra.mxu0 0
  %1585 = vmatprep.subr.bf16.mxu0 0
  %1586 = vmatpush1.bf16.msra.mxu0 0
  %1587 = vmatprep.subr.bf16.mxu0 0
  %1588 = vmatpush1.bf16.msra.mxu0 0
  %1589 = vmatprep.subr.bf16.mxu0 0
  %1590 = vmatpush1.bf16.msra.mxu0 0
  %1591 = vmatprep.mubr.bf16.mxu0 0
  %1592 = vmatmul.mubr.bf16.gmra.mrb[0].mxu0 %v1516
  %v1593 = vpop.f32.mrb[0].mxu0
  %v1594 = vadd.f32 %v1553, %v1593
  %v1595 = vpop.f32.mrb[0].mxu0
  %v1596 = vpop.f32.mrb[0].mxu0
  %v1597 = vadd.f32 %v1556, %v1596
  %v1598 = vpop.f32.mrb[0].mxu0
  %1599 = vdwg.mxu0
  %v1601 = vsel %vm121, %v1514, 0
  %1603 = vmatprep.subr.bf16.mxu0 0
  %1604 = vmatpush1.bf16.msra.mxu0 %v69
  %1605 = vmatprep.subr.bf16.mxu0 0
  %1606 = vmatpush1.bf16.msra.mxu0 %v70
  %1607 = vmatprep.subr.bf16.mxu0 0
  %1608 = vmatpush1.bf16.msra.mxu0 0
  %1609 = vmatprep.subr.bf16.mxu0 0
  %1610 = vmatpush1.bf16.msra.mxu0 0
  %1611 = vmatprep.subr.bf16.mxu0 0
  %1612 = vmatpush1.bf16.msra.mxu0 0
  %1613 = vmatprep.subr.bf16.mxu0 0
  %1614 = vmatpush1.bf16.msra.mxu0 0
  %1615 = vmatprep.subr.bf16.mxu0 0
  %1616 = vmatpush1.bf16.msra.mxu0 0
  %1617 = vmatprep.subr.bf16.mxu0 0
  %1618 = vmatpush1.bf16.msra.mxu0 0
  %1619 = vmatprep.subr.bf16.mxu0 0
  %1620 = vmatpush1.bf16.msra.mxu0 0
  %1621 = vmatprep.subr.bf16.mxu0 0
  %1622 = vmatpush1.bf16.msra.mxu0 0
  %1623 = vmatprep.subr.bf16.mxu0 0
  %1624 = vmatpush1.bf16.msra.mxu0 0
  %1625 = vmatprep.subr.bf16.mxu0 0
  %1626 = vmatpush1.bf16.msra.mxu0 0
  %1627 = vmatprep.subr.bf16.mxu0 0
  %1628 = vmatpush1.bf16.msra.mxu0 0
  %1629 = vmatprep.subr.bf16.mxu0 0
  %1630 = vmatpush1.bf16.msra.mxu0 0
  %1631 = vmatprep.subr.bf16.mxu0 0
  %1632 = vmatpush1.bf16.msra.mxu0 0
  %1633 = vmatprep.subr.bf16.mxu0 0
  %1634 = vmatpush1.bf16.msra.mxu0 0
  %1635 = vmatprep.mubr.bf16.mxu0 0
  %1636 = vmatmul.mubr.bf16.gmra.mrb[0].mxu0 %v1601
  %v1637 = vpop.f32.mrb[0].mxu0
  %v1638 = vadd.f32 0.0, %v1637
  %v1639 = vpop.f32.mrb[0].mxu0
  %v1640 = vpop.f32.mrb[0].mxu0
  %v1641 = vadd.f32 0.0, %v1640
  %v1642 = vpop.f32.mrb[0].mxu0
  %1643 = vdwg.mxu0
  %v1644 = vadd.f32 %v1594, %v1638
  %v1645 = vadd.f32 %v1597, %v1641
  %1646 = vmatprep.subr.bf16.mxu0 0
  %1647 = vmatpush1.bf16.msra.mxu0 %v95
  %1648 = vmatprep.subr.bf16.mxu0 0
  %1649 = vmatpush1.bf16.msra.mxu0 %v96
  %1650 = vmatprep.subr.bf16.mxu0 0
  %1651 = vmatpush1.bf16.msra.mxu0 0
  %1652 = vmatprep.subr.bf16.mxu0 0
  %1653 = vmatpush1.bf16.msra.mxu0 0
  %1654 = vmatprep.subr.bf16.mxu0 0
  %1655 = vmatpush1.bf16.msra.mxu0 0
  %1656 = vmatprep.subr.bf16.mxu0 0
  %1657 = vmatpush1.bf16.msra.mxu0 0
  %1658 = vmatprep.subr.bf16.mxu0 0
  %1659 = vmatpush1.bf16.msra.mxu0 0
  %1660 = vmatprep.subr.bf16.mxu0 0
  %1661 = vmatpush1.bf16.msra.mxu0 0
  %1662 = vmatprep.subr.bf16.mxu0 0
  %1663 = vmatpush1.bf16.msra.mxu0 0
  %1664 = vmatprep.subr.bf16.mxu0 0
  %1665 = vmatpush1.bf16.msra.mxu0 0
  %1666 = vmatprep.subr.bf16.mxu0 0
  %1667 = vmatpush1.bf16.msra.mxu0 0
  %1668 = vmatprep.subr.bf16.mxu0 0
  %1669 = vmatpush1.bf16.msra.mxu0 0
  %1670 = vmatprep.subr.bf16.mxu0 0
  %1671 = vmatpush1.bf16.msra.mxu0 0
  %1672 = vmatprep.subr.bf16.mxu0 0
  %1673 = vmatpush1.bf16.msra.mxu0 0
  %1674 = vmatprep.subr.bf16.mxu0 0
  %1675 = vmatpush1.bf16.msra.mxu0 0
  %1676 = vmatprep.subr.bf16.mxu0 0
  %1677 = vmatpush1.bf16.msra.mxu0 0
  %1678 = vmatprep.mubr.bf16.mxu0 0
  %1679 = vmatmul.mubr.bf16.gmra.mrb[0].mxu0 %v1516
  %v1680 = vpop.f32.mrb[0].mxu0
  %v1681 = vadd.f32 0.0, %v1680
  %v1682 = vpop.f32.mrb[0].mxu0
  %v1683 = vpop.f32.mrb[0].mxu0
  %v1684 = vadd.f32 0.0, %v1683
  %v1685 = vpop.f32.mrb[0].mxu0
  %1686 = vdwg.mxu0
  %1687 = vmatprep.subr.bf16.mxu0 0
  %1688 = vmatpush1.bf16.msra.mxu0 %v85
  %1689 = vmatprep.subr.bf16.mxu0 0
  %1690 = vmatpush1.bf16.msra.mxu0 %v86
  %1691 = vmatprep.subr.bf16.mxu0 0
  %1692 = vmatpush1.bf16.msra.mxu0 0
  %1693 = vmatprep.subr.bf16.mxu0 0
  %1694 = vmatpush1.bf16.msra.mxu0 0
  %1695 = vmatprep.subr.bf16.mxu0 0
  %1696 = vmatpush1.bf16.msra.mxu0 0
  %1697 = vmatprep.subr.bf16.mxu0 0
  %1698 = vmatpush1.bf16.msra.mxu0 0
  %1699 = vmatprep.subr.bf16.mxu0 0
  %1700 = vmatpush1.bf16.msra.mxu0 0
  %1701 = vmatprep.subr.bf16.mxu0 0
  %1702 = vmatpush1.bf16.msra.mxu0 0
  %1703 = vmatprep.subr.bf16.mxu0 0
  %1704 = vmatpush1.bf16.msra.mxu0 0
  %1705 = vmatprep.subr.bf16.mxu0 0
  %1706 = vmatpush1.bf16.msra.mxu0 0
  %1707 = vmatprep.subr.bf16.mxu0 0
  %1708 = vmatpush1.bf16.msra.mxu0 0
  %1709 = vmatprep.subr.bf16.mxu0 0
  %1710 = vmatpush1.bf16.msra.mxu0 0
  %1711 = vmatprep.subr.bf16.mxu0 0
  %1712 = vmatpush1.bf16.msra.mxu0 0
  %1713 = vmatprep.subr.bf16.mxu0 0
  %1714 = vmatpush1.bf16.msra.mxu0 0
  %1715 = vmatprep.subr.bf16.mxu0 0
  %1716 = vmatpush1.bf16.msra.mxu0 0
  %1717 = vmatprep.subr.bf16.mxu0 0
  %1718 = vmatpush1.bf16.msra.mxu0 0
  %1719 = vmatprep.mubr.bf16.mxu0 0
  %1720 = vmatmul.mubr.bf16.gmra.mrb[0].mxu0 %v1516
  %v1721 = vpop.f32.mrb[0].mxu0
  %v1722 = vadd.f32 %v1681, %v1721
  %v1723 = vpop.f32.mrb[0].mxu0
  %v1724 = vpop.f32.mrb[0].mxu0
  %v1725 = vadd.f32 %v1684, %v1724
  %v1726 = vpop.f32.mrb[0].mxu0
  %1727 = vdwg.mxu0
  %1728 = vmatprep.subr.bf16.mxu0 0
  %1729 = vmatpush1.bf16.msra.mxu0 %v85
  %1730 = vmatprep.subr.bf16.mxu0 0
  %1731 = vmatpush1.bf16.msra.mxu0 %v86
  %1732 = vmatprep.subr.bf16.mxu0 0
  %1733 = vmatpush1.bf16.msra.mxu0 0
  %1734 = vmatprep.subr.bf16.mxu0 0
  %1735 = vmatpush1.bf16.msra.mxu0 0
  %1736 = vmatprep.subr.bf16.mxu0 0
  %1737 = vmatpush1.bf16.msra.mxu0 0
  %1738 = vmatprep.subr.bf16.mxu0 0
  %1739 = vmatpush1.bf16.msra.mxu0 0
  %1740 = vmatprep.subr.bf16.mxu0 0
  %1741 = vmatpush1.bf16.msra.mxu0 0
  %1742 = vmatprep.subr.bf16.mxu0 0
  %1743 = vmatpush1.bf16.msra.mxu0 0
  %1744 = vmatprep.subr.bf16.mxu0 0
  %1745 = vmatpush1.bf16.msra.mxu0 0
  %1746 = vmatprep.subr.bf16.mxu0 0
  %1747 = vmatpush1.bf16.msra.mxu0 0
  %1748 = vmatprep.subr.bf16.mxu0 0
  %1749 = vmatpush1.bf16.msra.mxu0 0
  %1750 = vmatprep.subr.bf16.mxu0 0
  %1751 = vmatpush1.bf16.msra.mxu0 0
  %1752 = vmatprep.subr.bf16.mxu0 0
  %1753 = vmatpush1.bf16.msra.mxu0 0
  %1754 = vmatprep.subr.bf16.mxu0 0
  %1755 = vmatpush1.bf16.msra.mxu0 0
  %1756 = vmatprep.subr.bf16.mxu0 0
  %1757 = vmatpush1.bf16.msra.mxu0 0
  %1758 = vmatprep.subr.bf16.mxu0 0
  %1759 = vmatpush1.bf16.msra.mxu0 0
  %1760 = vmatprep.mubr.bf16.mxu0 0
  %1761 = vmatmul.mubr.bf16.gmra.mrb[0].mxu0 %v1601
  %v1762 = vpop.f32.mrb[0].mxu0
  %v1763 = vadd.f32 0.0, %v1762
  %v1764 = vpop.f32.mrb[0].mxu0
  %v1765 = vpop.f32.mrb[0].mxu0
  %v1766 = vadd.f32 0.0, %v1765
  %v1767 = vpop.f32.mrb[0].mxu0
  %1768 = vdwg.mxu0
  %v1769 = vadd.f32 %v1722, %v1763
  %v1770 = vadd.f32 %v1725, %v1766
  %v1771 = vpack.c.bf16 %v1645, %v1644
  %v1772 = vunpack.c.l.bf16 %v1771
  %v1773 = vunpack.c.h.bf16 %v1771
  %v1774 = vsub.f32 %v1644, %v1772
  %v1775 = vsub.f32 %v1645, %v1773
  %v1776 = vpack.c.bf16 %v1775, %v1774
  %v1777 = vpack.c.bf16 %v1770, %v1769
  %v1778 = vunpack.c.l.bf16 %v1777
  %v1779 = vunpack.c.h.bf16 %v1777
  %v1780 = vsub.f32 %v1769, %v1778
  %v1781 = vsub.f32 %v1770, %v1779
  %v1782 = vpack.c.bf16 %v1781, %v1780
  %v1783 = vadd.f32 %v1644, %v1769
  %v1784 = vadd.f32 %v1645, %v1770
  %v1785 = vpack.c.bf16 %v1784, %v1783
  %v1786 = vunpack.c.l.bf16 %v1785
  %v1787 = vunpack.c.h.bf16 %v1785
  %v1788 = vsub.f32 %v1783, %v1786
  %v1789 = vsub.f32 %v1784, %v1787
  %v1790 = vpack.c.bf16 %v1789, %v1788
  %1791 = vmatprep.subr.bf16.mxu0 0
  %1792 = vmatpush1.bf16.msra.mxu0 %v1776
  %1793 = vmatprep.subr.bf16.mxu0 0
  %1794 = vmatpush1.bf16.msra.mxu0 0
  %1795 = vmatprep.subr.bf16.mxu0 0
  %1796 = vmatpush1.bf16.msra.mxu0 0
  %1797 = vmatprep.subr.bf16.mxu0 0
  %1798 = vmatpush1.bf16.msra.mxu0 0
  %1799 = vmatprep.subr.bf16.mxu0 0
  %1800 = vmatpush1.bf16.msra.mxu0 0
  %1801 = vmatprep.subr.bf16.mxu0 0
  %1802 = vmatpush1.bf16.msra.mxu0 0
  %1803 = vmatprep.subr.bf16.mxu0 0
  %1804 = vmatpush1.bf16.msra.mxu0 0
  %1805 = vmatprep.subr.bf16.mxu0 0
  %1806 = vmatpush1.bf16.msra.mxu0 0
  %1807 = vmatprep.subr.bf16.mxu0 0
  %1808 = vmatpush1.bf16.msra.mxu0 0
  %1809 = vmatprep.subr.bf16.mxu0 0
  %1810 = vmatpush1.bf16.msra.mxu0 0
  %1811 = vmatprep.subr.bf16.mxu0 0
  %1812 = vmatpush1.bf16.msra.mxu0 0
  %1813 = vmatprep.subr.bf16.mxu0 0
  %1814 = vmatpush1.bf16.msra.mxu0 0
  %1815 = vmatprep.subr.bf16.mxu0 0
  %1816 = vmatpush1.bf16.msra.mxu0 0
  %1817 = vmatprep.subr.bf16.mxu0 0
  %1818 = vmatpush1.bf16.msra.mxu0 0
  %1819 = vmatprep.subr.bf16.mxu0 0
  %1820 = vmatpush1.bf16.msra.mxu0 0
  %1821 = vmatprep.subr.bf16.mxu0 0
  %1822 = vmatpush1.bf16.msra.mxu0 0
  %1823 = vmatprep.mubr.bf16.mxu0 0
  %1824 = vmatmul.mubr.bf16.gmra.mrb[0].mxu0 %v400
  %v1825 = vpop.f32.mrb[0].mxu0
  %v1826 = vadd.f32 0.0, %v1825
  %v1827 = vpop.f32.mrb[0].mxu0
  %v1828 = vpop.f32.mrb[0].mxu0
  %v1829 = vadd.f32 0.0, %v1828
  %v1830 = vpop.f32.mrb[0].mxu0
  %1831 = vdwg.mxu0
  %1832 = vmatprep.subr.bf16.mxu0 0
  %1833 = vmatpush1.bf16.msra.mxu0 %v1771
  %1834 = vmatprep.subr.bf16.mxu0 0
  %1835 = vmatpush1.bf16.msra.mxu0 0
  %1836 = vmatprep.subr.bf16.mxu0 0
  %1837 = vmatpush1.bf16.msra.mxu0 0
  %1838 = vmatprep.subr.bf16.mxu0 0
  %1839 = vmatpush1.bf16.msra.mxu0 0
  %1840 = vmatprep.subr.bf16.mxu0 0
  %1841 = vmatpush1.bf16.msra.mxu0 0
  %1842 = vmatprep.subr.bf16.mxu0 0
  %1843 = vmatpush1.bf16.msra.mxu0 0
  %1844 = vmatprep.subr.bf16.mxu0 0
  %1845 = vmatpush1.bf16.msra.mxu0 0
  %1846 = vmatprep.subr.bf16.mxu0 0
  %1847 = vmatpush1.bf16.msra.mxu0 0
  %1848 = vmatprep.subr.bf16.mxu0 0
  %1849 = vmatpush1.bf16.msra.mxu0 0
  %1850 = vmatprep.subr.bf16.mxu0 0
  %1851 = vmatpush1.bf16.msra.mxu0 0
  %1852 = vmatprep.subr.bf16.mxu0 0
  %1853 = vmatpush1.bf16.msra.mxu0 0
  %1854 = vmatprep.subr.bf16.mxu0 0
  %1855 = vmatpush1.bf16.msra.mxu0 0
  %1856 = vmatprep.subr.bf16.mxu0 0
  %1857 = vmatpush1.bf16.msra.mxu0 0
  %1858 = vmatprep.subr.bf16.mxu0 0
  %1859 = vmatpush1.bf16.msra.mxu0 0
  %1860 = vmatprep.subr.bf16.mxu0 0
  %1861 = vmatpush1.bf16.msra.mxu0 0
  %1862 = vmatprep.subr.bf16.mxu0 0
  %1863 = vmatpush1.bf16.msra.mxu0 0
  %1864 = vmatprep.mubr.bf16.mxu0 0
  %1865 = vmatmul.mubr.bf16.gmra.mrb[0].mxu0 %v400
  %v1866 = vpop.f32.mrb[0].mxu0
  %v1867 = vadd.f32 %v1826, %v1866
  %v1868 = vpop.f32.mrb[0].mxu0
  %v1869 = vpop.f32.mrb[0].mxu0
  %v1870 = vadd.f32 %v1829, %v1869
  %v1871 = vpop.f32.mrb[0].mxu0
  %1872 = vdwg.mxu0
  %1873 = vmatprep.subr.bf16.mxu0 0
  %1874 = vmatpush1.bf16.msra.mxu0 %v1771
  %1875 = vmatprep.subr.bf16.mxu0 0
  %1876 = vmatpush1.bf16.msra.mxu0 0
  %1877 = vmatprep.subr.bf16.mxu0 0
  %1878 = vmatpush1.bf16.msra.mxu0 0
  %1879 = vmatprep.subr.bf16.mxu0 0
  %1880 = vmatpush1.bf16.msra.mxu0 0
  %1881 = vmatprep.subr.bf16.mxu0 0
  %1882 = vmatpush1.bf16.msra.mxu0 0
  %1883 = vmatprep.subr.bf16.mxu0 0
  %1884 = vmatpush1.bf16.msra.mxu0 0
  %1885 = vmatprep.subr.bf16.mxu0 0
  %1886 = vmatpush1.bf16.msra.mxu0 0
  %1887 = vmatprep.subr.bf16.mxu0 0
  %1888 = vmatpush1.bf16.msra.mxu0 0
  %1889 = vmatprep.subr.bf16.mxu0 0
  %1890 = vmatpush1.bf16.msra.mxu0 0
  %1891 = vmatprep.subr.bf16.mxu0 0
  %1892 = vmatpush1.bf16.msra.mxu0 0
  %1893 = vmatprep.subr.bf16.mxu0 0
  %1894 = vmatpush1.bf16.msra.mxu0 0
  %1895 = vmatprep.subr.bf16.mxu0 0
  %1896 = vmatpush1.bf16.msra.mxu0 0
  %1897 = vmatprep.subr.bf16.mxu0 0
  %1898 = vmatpush1.bf16.msra.mxu0 0
  %1899 = vmatprep.subr.bf16.mxu0 0
  %1900 = vmatpush1.bf16.msra.mxu0 0
  %1901 = vmatprep.subr.bf16.mxu0 0
  %1902 = vmatpush1.bf16.msra.mxu0 0
  %1903 = vmatprep.subr.bf16.mxu0 0
  %1904 = vmatpush1.bf16.msra.mxu0 0
  %1905 = vmatprep.mubr.bf16.mxu0 0
  %1906 = vmatmul.mubr.bf16.gmra.mrb[0].mxu0 %v485
  %v1907 = vpop.f32.mrb[0].mxu0
  %v1908 = vadd.f32 0.0, %v1907
  %v1909 = vpop.f32.mrb[0].mxu0
  %v1910 = vpop.f32.mrb[0].mxu0
  %v1911 = vadd.f32 0.0, %v1910
  %v1912 = vpop.f32.mrb[0].mxu0
  %1913 = vdwg.mxu0
  %v1914 = vadd.f32 %v1867, %v1908
  %v1915 = vadd.f32 %v1870, %v1911
  %1916 = vmatprep.subr.bf16.mxu0 0
  %1917 = vmatpush1.bf16.msra.mxu0 %v1782
  %1918 = vmatprep.subr.bf16.mxu0 0
  %1919 = vmatpush1.bf16.msra.mxu0 0
  %1920 = vmatprep.subr.bf16.mxu0 0
  %1921 = vmatpush1.bf16.msra.mxu0 0
  %1922 = vmatprep.subr.bf16.mxu0 0
  %1923 = vmatpush1.bf16.msra.mxu0 0
  %1924 = vmatprep.subr.bf16.mxu0 0
  %1925 = vmatpush1.bf16.msra.mxu0 0
  %1926 = vmatprep.subr.bf16.mxu0 0
  %1927 = vmatpush1.bf16.msra.mxu0 0
  %1928 = vmatprep.subr.bf16.mxu0 0
  %1929 = vmatpush1.bf16.msra.mxu0 0
  %1930 = vmatprep.subr.bf16.mxu0 0
  %1931 = vmatpush1.bf16.msra.mxu0 0
  %1932 = vmatprep.subr.bf16.mxu0 0
  %1933 = vmatpush1.bf16.msra.mxu0 0
  %1934 = vmatprep.subr.bf16.mxu0 0
  %1935 = vmatpush1.bf16.msra.mxu0 0
  %1936 = vmatprep.subr.bf16.mxu0 0
  %1937 = vmatpush1.bf16.msra.mxu0 0
  %1938 = vmatprep.subr.bf16.mxu0 0
  %1939 = vmatpush1.bf16.msra.mxu0 0
  %1940 = vmatprep.subr.bf16.mxu0 0
  %1941 = vmatpush1.bf16.msra.mxu0 0
  %1942 = vmatprep.subr.bf16.mxu0 0
  %1943 = vmatpush1.bf16.msra.mxu0 0
  %1944 = vmatprep.subr.bf16.mxu0 0
  %1945 = vmatpush1.bf16.msra.mxu0 0
  %1946 = vmatprep.subr.bf16.mxu0 0
  %1947 = vmatpush1.bf16.msra.mxu0 0
  %1948 = vmatprep.mubr.bf16.mxu0 0
  %1949 = vmatmul.mubr.bf16.gmra.mrb[0].mxu0 %v531
  %v1950 = vpop.f32.mrb[0].mxu0
  %v1951 = vadd.f32 0.0, %v1950
  %v1952 = vpop.f32.mrb[0].mxu0
  %v1953 = vpop.f32.mrb[0].mxu0
  %v1954 = vadd.f32 0.0, %v1953
  %v1955 = vpop.f32.mrb[0].mxu0
  %1956 = vdwg.mxu0
  %1957 = vmatprep.subr.bf16.mxu0 0
  %1958 = vmatpush1.bf16.msra.mxu0 %v1777
  %1959 = vmatprep.subr.bf16.mxu0 0
  %1960 = vmatpush1.bf16.msra.mxu0 0
  %1961 = vmatprep.subr.bf16.mxu0 0
  %1962 = vmatpush1.bf16.msra.mxu0 0
  %1963 = vmatprep.subr.bf16.mxu0 0
  %1964 = vmatpush1.bf16.msra.mxu0 0
  %1965 = vmatprep.subr.bf16.mxu0 0
  %1966 = vmatpush1.bf16.msra.mxu0 0
  %1967 = vmatprep.subr.bf16.mxu0 0
  %1968 = vmatpush1.bf16.msra.mxu0 0
  %1969 = vmatprep.subr.bf16.mxu0 0
  %1970 = vmatpush1.bf16.msra.mxu0 0
  %1971 = vmatprep.subr.bf16.mxu0 0
  %1972 = vmatpush1.bf16.msra.mxu0 0
  %1973 = vmatprep.subr.bf16.mxu0 0
  %1974 = vmatpush1.bf16.msra.mxu0 0
  %1975 = vmatprep.subr.bf16.mxu0 0
  %1976 = vmatpush1.bf16.msra.mxu0 0
  %1977 = vmatprep.subr.bf16.mxu0 0
  %1978 = vmatpush1.bf16.msra.mxu0 0
  %1979 = vmatprep.subr.bf16.mxu0 0
  %1980 = vmatpush1.bf16.msra.mxu0 0
  %1981 = vmatprep.subr.bf16.mxu0 0
  %1982 = vmatpush1.bf16.msra.mxu0 0
  %1983 = vmatprep.subr.bf16.mxu0 0
  %1984 = vmatpush1.bf16.msra.mxu0 0
  %1985 = vmatprep.subr.bf16.mxu0 0
  %1986 = vmatpush1.bf16.msra.mxu0 0
  %1987 = vmatprep.subr.bf16.mxu0 0
  %1988 = vmatpush1.bf16.msra.mxu0 0
  %1989 = vmatprep.mubr.bf16.mxu0 0
  %1990 = vmatmul.mubr.bf16.gmra.mrb[0].mxu0 %v531
  %v1991 = vpop.f32.mrb[0].mxu0
  %v1992 = vadd.f32 %v1951, %v1991
  %v1993 = vpop.f32.mrb[0].mxu0
  %v1994 = vpop.f32.mrb[0].mxu0
  %v1995 = vadd.f32 %v1954, %v1994
  %v1996 = vpop.f32.mrb[0].mxu0
  %1997 = vdwg.mxu0
  %1998 = vmatprep.subr.bf16.mxu0 0
  %1999 = vmatpush1.bf16.msra.mxu0 %v1777
  %2000 = vmatprep.subr.bf16.mxu0 0
  %2001 = vmatpush1.bf16.msra.mxu0 0
  %2002 = vmatprep.subr.bf16.mxu0 0
  %2003 = vmatpush1.bf16.msra.mxu0 0
  %2004 = vmatprep.subr.bf16.mxu0 0
  %2005 = vmatpush1.bf16.msra.mxu0 0
  %2006 = vmatprep.subr.bf16.mxu0 0
  %2007 = vmatpush1.bf16.msra.mxu0 0
  %2008 = vmatprep.subr.bf16.mxu0 0
  %2009 = vmatpush1.bf16.msra.mxu0 0
  %2010 = vmatprep.subr.bf16.mxu0 0
  %2011 = vmatpush1.bf16.msra.mxu0 0
  %2012 = vmatprep.subr.bf16.mxu0 0
  %2013 = vmatpush1.bf16.msra.mxu0 0
  %2014 = vmatprep.subr.bf16.mxu0 0
  %2015 = vmatpush1.bf16.msra.mxu0 0
  %2016 = vmatprep.subr.bf16.mxu0 0
  %2017 = vmatpush1.bf16.msra.mxu0 0
  %2018 = vmatprep.subr.bf16.mxu0 0
  %2019 = vmatpush1.bf16.msra.mxu0 0
  %2020 = vmatprep.subr.bf16.mxu0 0
  %2021 = vmatpush1.bf16.msra.mxu0 0
  %2022 = vmatprep.subr.bf16.mxu0 0
  %2023 = vmatpush1.bf16.msra.mxu0 0
  %2024 = vmatprep.subr.bf16.mxu0 0
  %2025 = vmatpush1.bf16.msra.mxu0 0
  %2026 = vmatprep.subr.bf16.mxu0 0
  %2027 = vmatpush1.bf16.msra.mxu0 0
  %2028 = vmatprep.subr.bf16.mxu0 0
  %2029 = vmatpush1.bf16.msra.mxu0 0
  %2030 = vmatprep.mubr.bf16.mxu0 0
  %2031 = vmatmul.mubr.bf16.gmra.mrb[0].mxu0 %v616
  %v2032 = vpop.f32.mrb[0].mxu0
  %v2033 = vadd.f32 0.0, %v2032
  %v2034 = vpop.f32.mrb[0].mxu0
  %v2035 = vpop.f32.mrb[0].mxu0
  %v2036 = vadd.f32 0.0, %v2035
  %v2037 = vpop.f32.mrb[0].mxu0
  %2038 = vdwg.mxu0
  %v2039 = vadd.f32 %v1992, %v2033
  %v2040 = vadd.f32 %v1995, %v2036
  %2041 = vmatprep.subr.bf16.mxu0 0
  %2042 = vmatpush1.bf16.msra.mxu0 %v1790
  %2043 = vmatprep.subr.bf16.mxu0 0
  %2044 = vmatpush1.bf16.msra.mxu0 0
  %2045 = vmatprep.subr.bf16.mxu0 0
  %2046 = vmatpush1.bf16.msra.mxu0 0
  %2047 = vmatprep.subr.bf16.mxu0 0
  %2048 = vmatpush1.bf16.msra.mxu0 0
  %2049 = vmatprep.subr.bf16.mxu0 0
  %2050 = vmatpush1.bf16.msra.mxu0 0
  %2051 = vmatprep.subr.bf16.mxu0 0
  %2052 = vmatpush1.bf16.msra.mxu0 0
  %2053 = vmatprep.subr.bf16.mxu0 0
  %2054 = vmatpush1.bf16.msra.mxu0 0
  %2055 = vmatprep.subr.bf16.mxu0 0
  %2056 = vmatpush1.bf16.msra.mxu0 0
  %2057 = vmatprep.subr.bf16.mxu0 0
  %2058 = vmatpush1.bf16.msra.mxu0 0
  %2059 = vmatprep.subr.bf16.mxu0 0
  %2060 = vmatpush1.bf16.msra.mxu0 0
  %2061 = vmatprep.subr.bf16.mxu0 0
  %2062 = vmatpush1.bf16.msra.mxu0 0
  %2063 = vmatprep.subr.bf16.mxu0 0
  %2064 = vmatpush1.bf16.msra.mxu0 0
  %2065 = vmatprep.subr.bf16.mxu0 0
  %2066 = vmatpush1.bf16.msra.mxu0 0
  %2067 = vmatprep.subr.bf16.mxu0 0
  %2068 = vmatpush1.bf16.msra.mxu0 0
  %2069 = vmatprep.subr.bf16.mxu0 0
  %2070 = vmatpush1.bf16.msra.mxu0 0
  %2071 = vmatprep.subr.bf16.mxu0 0
  %2072 = vmatpush1.bf16.msra.mxu0 0
  %2073 = vmatprep.mubr.bf16.mxu0 0
  %2074 = vmatmul.mubr.bf16.gmra.mrb[0].mxu0 %v662
  %v2075 = vpop.f32.mrb[0].mxu0
  %v2076 = vadd.f32 0.0, %v2075
  %v2077 = vpop.f32.mrb[0].mxu0
  %v2078 = vpop.f32.mrb[0].mxu0
  %v2079 = vadd.f32 0.0, %v2078
  %v2080 = vpop.f32.mrb[0].mxu0
  %2081 = vdwg.mxu0
  %2082 = vmatprep.subr.bf16.mxu0 0
  %2083 = vmatpush1.bf16.msra.mxu0 %v1785
  %2084 = vmatprep.subr.bf16.mxu0 0
  %2085 = vmatpush1.bf16.msra.mxu0 0
  %2086 = vmatprep.subr.bf16.mxu0 0
  %2087 = vmatpush1.bf16.msra.mxu0 0
  %2088 = vmatprep.subr.bf16.mxu0 0
  %2089 = vmatpush1.bf16.msra.mxu0 0
  %2090 = vmatprep.subr.bf16.mxu0 0
  %2091 = vmatpush1.bf16.msra.mxu0 0
  %2092 = vmatprep.subr.bf16.mxu0 0
  %2093 = vmatpush1.bf16.msra.mxu0 0
  %2094 = vmatprep.subr.bf16.mxu0 0
  %2095 = vmatpush1.bf16.msra.mxu0 0
  %2096 = vmatprep.subr.bf16.mxu0 0
  %2097 = vmatpush1.bf16.msra.mxu0 0
  %2098 = vmatprep.subr.bf16.mxu0 0
  %2099 = vmatpush1.bf16.msra.mxu0 0
  %2100 = vmatprep.subr.bf16.mxu0 0
  %2101 = vmatpush1.bf16.msra.mxu0 0
  %2102 = vmatprep.subr.bf16.mxu0 0
  %2103 = vmatpush1.bf16.msra.mxu0 0
  %2104 = vmatprep.subr.bf16.mxu0 0
  %2105 = vmatpush1.bf16.msra.mxu0 0
  %2106 = vmatprep.subr.bf16.mxu0 0
  %2107 = vmatpush1.bf16.msra.mxu0 0
  %2108 = vmatprep.subr.bf16.mxu0 0
  %2109 = vmatpush1.bf16.msra.mxu0 0
  %2110 = vmatprep.subr.bf16.mxu0 0
  %2111 = vmatpush1.bf16.msra.mxu0 0
  %2112 = vmatprep.subr.bf16.mxu0 0
  %2113 = vmatpush1.bf16.msra.mxu0 0
  %2114 = vmatprep.mubr.bf16.mxu0 0
  %2115 = vmatmul.mubr.bf16.gmra.mrb[0].mxu0 %v662
  %v2116 = vpop.f32.mrb[0].mxu0
  %v2117 = vadd.f32 %v2076, %v2116
  %v2118 = vpop.f32.mrb[0].mxu0
  %v2119 = vpop.f32.mrb[0].mxu0
  %v2120 = vadd.f32 %v2079, %v2119
  %v2121 = vpop.f32.mrb[0].mxu0
  %2122 = vdwg.mxu0
  %2123 = vmatprep.subr.bf16.mxu0 0
  %2124 = vmatpush1.bf16.msra.mxu0 %v1785
  %2125 = vmatprep.subr.bf16.mxu0 0
  %2126 = vmatpush1.bf16.msra.mxu0 0
  %2127 = vmatprep.subr.bf16.mxu0 0
  %2128 = vmatpush1.bf16.msra.mxu0 0
  %2129 = vmatprep.subr.bf16.mxu0 0
  %2130 = vmatpush1.bf16.msra.mxu0 0
  %2131 = vmatprep.subr.bf16.mxu0 0
  %2132 = vmatpush1.bf16.msra.mxu0 0
  %2133 = vmatprep.subr.bf16.mxu0 0
  %2134 = vmatpush1.bf16.msra.mxu0 0
  %2135 = vmatprep.subr.bf16.mxu0 0
  %2136 = vmatpush1.bf16.msra.mxu0 0
  %2137 = vmatprep.subr.bf16.mxu0 0
  %2138 = vmatpush1.bf16.msra.mxu0 0
  %2139 = vmatprep.subr.bf16.mxu0 0
  %2140 = vmatpush1.bf16.msra.mxu0 0
  %2141 = vmatprep.subr.bf16.mxu0 0
  %2142 = vmatpush1.bf16.msra.mxu0 0
  %2143 = vmatprep.subr.bf16.mxu0 0
  %2144 = vmatpush1.bf16.msra.mxu0 0
  %2145 = vmatprep.subr.bf16.mxu0 0
  %2146 = vmatpush1.bf16.msra.mxu0 0
  %2147 = vmatprep.subr.bf16.mxu0 0
  %2148 = vmatpush1.bf16.msra.mxu0 0
  %2149 = vmatprep.subr.bf16.mxu0 0
  %2150 = vmatpush1.bf16.msra.mxu0 0
  %2151 = vmatprep.subr.bf16.mxu0 0
  %2152 = vmatpush1.bf16.msra.mxu0 0
  %2153 = vmatprep.subr.bf16.mxu0 0
  %2154 = vmatpush1.bf16.msra.mxu0 0
  %2155 = vmatprep.mubr.bf16.mxu0 0
  %2156 = vmatmul.mubr.bf16.gmra.mrb[0].mxu0 %v747
  %v2157 = vpop.f32.mrb[0].mxu0
  %v2158 = vadd.f32 0.0, %v2157
  %v2159 = vpop.f32.mrb[0].mxu0
  %v2160 = vpop.f32.mrb[0].mxu0
  %v2161 = vadd.f32 0.0, %v2160
  %v2162 = vpop.f32.mrb[0].mxu0
  %2163 = vdwg.mxu0
  %v2164 = vadd.f32 %v2117, %v2158
  %v2165 = vadd.f32 %v2120, %v2161
  %v2166 = vsub.f32 %v1914, %v2039
  %v2167 = vsub.f32 %v1915, %v2040
  %v2168 = vsub.f32 %v2164, %v1914
  %v2169 = vsub.f32 %v2165, %v1915
  %v2170 = vsub.f32 %v2168, %v2039
  %v2171 = vsub.f32 %v2169, %v2040
  %s2172 = scalar_lea.vmem %s8, 16
  %v2173 = vld [vmem:[%s2172] sm:$0xff]
  %v2174 = vld [vmem:[%s2172 + $0x8] sm:$0xff]
  %v2175 = vcvt.s32.f32 %v2173
  %v2176 = vcvt.s32.f32 %v2174
  %v2177 = vsub.f32 1.0, %v2175
  %v2178 = vsub.f32 1.0, %v2176
  %v2179 = vmul.f32 %v2177, %v2166
  %v2180 = vmul.f32 %v2178, %v2167
  %s2181 = scalar_lea.vmem %s7, 16
  %v2182 = vld [vmem:[%s2181] sm:$0xff]
  %v2183 = vld [vmem:[%s2181 + $0x8] sm:$0xff]
  %v2184 = vmul.f32 %v2175, %v2182
  %v2185 = vmul.f32 %v2176, %v2183
  %v2186 = vadd.f32 %v2179, %v2184
  %v2187 = vadd.f32 %v2180, %v2185
  %v2188 = vmul.f32 %v2177, %v2170
  %v2189 = vmul.f32 %v2178, %v2171
  %s2190 = scalar_lea.vmem %s7, 48
  %v2191 = vld [vmem:[%s2190] sm:$0xff]
  %v2192 = vld [vmem:[%s2190 + $0x8] sm:$0xff]
  %v2193 = vmul.f32 %v2175, %v2191
  %v2194 = vmul.f32 %v2176, %v2192
  %v2195 = vadd.f32 %v2188, %v2193
  %v2196 = vadd.f32 %v2189, %v2194
  %v2197 = vpack.c.bf16 %v2187, %v2186
  %v2198 = vunpack.c.l.bf16 %v2197
  %v2199 = vunpack.c.h.bf16 %v2197
  %v2200 = vsub.f32 %v2186, %v2198
  %v2201 = vsub.f32 %v2187, %v2199
  %v2202 = vpack.c.bf16 %v2201, %v2200
  %v2203 = vpack.c.bf16 %v2196, %v2195
  %v2204 = vunpack.c.l.bf16 %v2203
  %v2205 = vunpack.c.h.bf16 %v2203
  %v2206 = vsub.f32 %v2195, %v2204
  %v2207 = vsub.f32 %v2196, %v2205
  %v2208 = vpack.c.bf16 %v2207, %v2206
  %v2209 = vadd.f32 %v2186, %v2195
  %v2210 = vadd.f32 %v2187, %v2196
  %v2211 = vpack.c.bf16 %v2210, %v2209
  %v2212 = vunpack.c.l.bf16 %v2211
  %v2213 = vunpack.c.h.bf16 %v2211
  %v2214 = vsub.f32 %v2209, %v2212
  %v2215 = vsub.f32 %v2210, %v2213
  %v2216 = vpack.c.bf16 %v2215, %v2214
  %2217 = vmatprep.subr.bf16.mxu0 0
  %2218 = vmatpush1.bf16.msra.mxu0 %v2202
  %2219 = vmatprep.subr.bf16.mxu0 0
  %2220 = vmatpush1.bf16.msra.mxu0 0
  %2221 = vmatprep.subr.bf16.mxu0 0
  %2222 = vmatpush1.bf16.msra.mxu0 0
  %2223 = vmatprep.subr.bf16.mxu0 0
  %2224 = vmatpush1.bf16.msra.mxu0 0
  %2225 = vmatprep.subr.bf16.mxu0 0
  %2226 = vmatpush1.bf16.msra.mxu0 0
  %2227 = vmatprep.subr.bf16.mxu0 0
  %2228 = vmatpush1.bf16.msra.mxu0 0
  %2229 = vmatprep.subr.bf16.mxu0 0
  %2230 = vmatpush1.bf16.msra.mxu0 0
  %2231 = vmatprep.subr.bf16.mxu0 0
  %2232 = vmatpush1.bf16.msra.mxu0 0
  %2233 = vmatprep.subr.bf16.mxu0 0
  %2234 = vmatpush1.bf16.msra.mxu0 0
  %2235 = vmatprep.subr.bf16.mxu0 0
  %2236 = vmatpush1.bf16.msra.mxu0 0
  %2237 = vmatprep.subr.bf16.mxu0 0
  %2238 = vmatpush1.bf16.msra.mxu0 0
  %2239 = vmatprep.subr.bf16.mxu0 0
  %2240 = vmatpush1.bf16.msra.mxu0 0
  %2241 = vmatprep.subr.bf16.mxu0 0
  %2242 = vmatpush1.bf16.msra.mxu0 0
  %2243 = vmatprep.subr.bf16.mxu0 0
  %2244 = vmatpush1.bf16.msra.mxu0 0
  %2245 = vmatprep.subr.bf16.mxu0 0
  %2246 = vmatpush1.bf16.msra.mxu0 0
  %2247 = vmatprep.subr.bf16.mxu0 0
  %2248 = vmatpush1.bf16.msra.mxu0 0
  %2249 = vmatprep.mubr.bf16.mxu0 0
  %2250 = vmatmul.mubr.bf16.gmra.mrb[0].mxu0 %v400
  %v2251 = vpop.f32.mrb[0].mxu0
  %v2252 = vadd.f32 0.0, %v2251
  %v2253 = vpop.f32.mrb[0].mxu0
  %v2254 = vpop.f32.mrb[0].mxu0
  %v2255 = vadd.f32 0.0, %v2254
  %v2256 = vpop.f32.mrb[0].mxu0
  %2257 = vdwg.mxu0
  %2258 = vmatprep.subr.bf16.mxu0 0
  %2259 = vmatpush1.bf16.msra.mxu0 %v2197
  %2260 = vmatprep.subr.bf16.mxu0 0
  %2261 = vmatpush1.bf16.msra.mxu0 0
  %2262 = vmatprep.subr.bf16.mxu0 0
  %2263 = vmatpush1.bf16.msra.mxu0 0
  %2264 = vmatprep.subr.bf16.mxu0 0
  %2265 = vmatpush1.bf16.msra.mxu0 0
  %2266 = vmatprep.subr.bf16.mxu0 0
  %2267 = vmatpush1.bf16.msra.mxu0 0
  %2268 = vmatprep.subr.bf16.mxu0 0
  %2269 = vmatpush1.bf16.msra.mxu0 0
  %2270 = vmatprep.subr.bf16.mxu0 0
  %2271 = vmatpush1.bf16.msra.mxu0 0
  %2272 = vmatprep.subr.bf16.mxu0 0
  %2273 = vmatpush1.bf16.msra.mxu0 0
  %2274 = vmatprep.subr.bf16.mxu0 0
  %2275 = vmatpush1.bf16.msra.mxu0 0
  %2276 = vmatprep.subr.bf16.mxu0 0
  %2277 = vmatpush1.bf16.msra.mxu0 0
  %2278 = vmatprep.subr.bf16.mxu0 0
  %2279 = vmatpush1.bf16.msra.mxu0 0
  %2280 = vmatprep.subr.bf16.mxu0 0
  %2281 = vmatpush1.bf16.msra.mxu0 0
  %2282 = vmatprep.subr.bf16.mxu0 0
  %2283 = vmatpush1.bf16.msra.mxu0 0
  %2284 = vmatprep.subr.bf16.mxu0 0
  %2285 = vmatpush1.bf16.msra.mxu0 0
  %2286 = vmatprep.subr.bf16.mxu0 0
  %2287 = vmatpush1.bf16.msra.mxu0 0
  %2288 = vmatprep.subr.bf16.mxu0 0
  %2289 = vmatpush1.bf16.msra.mxu0 0
  %2290 = vmatprep.mubr.bf16.mxu0 0
  %2291 = vmatmul.mubr.bf16.gmra.mrb[0].mxu0 %v400
  %v2292 = vpop.f32.mrb[0].mxu0
  %v2293 = vadd.f32 %v2252, %v2292
  %v2294 = vpop.f32.mrb[0].mxu0
  %v2295 = vpop.f32.mrb[0].mxu0
  %v2296 = vadd.f32 %v2255, %v2295
  %v2297 = vpop.f32.mrb[0].mxu0
  %2298 = vdwg.mxu0
  %2299 = vmatprep.subr.bf16.mxu0 0
  %2300 = vmatpush1.bf16.msra.mxu0 %v2197
  %2301 = vmatprep.subr.bf16.mxu0 0
  %2302 = vmatpush1.bf16.msra.mxu0 0
  %2303 = vmatprep.subr.bf16.mxu0 0
  %2304 = vmatpush1.bf16.msra.mxu0 0
  %2305 = vmatprep.subr.bf16.mxu0 0
  %2306 = vmatpush1.bf16.msra.mxu0 0
  %2307 = vmatprep.subr.bf16.mxu0 0
  %2308 = vmatpush1.bf16.msra.mxu0 0
  %2309 = vmatprep.subr.bf16.mxu0 0
  %2310 = vmatpush1.bf16.msra.mxu0 0
  %2311 = vmatprep.subr.bf16.mxu0 0
  %2312 = vmatpush1.bf16.msra.mxu0 0
  %2313 = vmatprep.subr.bf16.mxu0 0
  %2314 = vmatpush1.bf16.msra.mxu0 0
  %2315 = vmatprep.subr.bf16.mxu0 0
  %2316 = vmatpush1.bf16.msra.mxu0 0
  %2317 = vmatprep.subr.bf16.mxu0 0
  %2318 = vmatpush1.bf16.msra.mxu0 0
  %2319 = vmatprep.subr.bf16.mxu0 0
  %2320 = vmatpush1.bf16.msra.mxu0 0
  %2321 = vmatprep.subr.bf16.mxu0 0
  %2322 = vmatpush1.bf16.msra.mxu0 0
  %2323 = vmatprep.subr.bf16.mxu0 0
  %2324 = vmatpush1.bf16.msra.mxu0 0
  %2325 = vmatprep.subr.bf16.mxu0 0
  %2326 = vmatpush1.bf16.msra.mxu0 0
  %2327 = vmatprep.subr.bf16.mxu0 0
  %2328 = vmatpush1.bf16.msra.mxu0 0
  %2329 = vmatprep.subr.bf16.mxu0 0
  %2330 = vmatpush1.bf16.msra.mxu0 0
  %2331 = vmatprep.mubr.bf16.mxu0 0
  %2332 = vmatmul.mubr.bf16.gmra.mrb[0].mxu0 %v485
  %v2333 = vpop.f32.mrb[0].mxu0
  %v2334 = vadd.f32 0.0, %v2333
  %v2335 = vpop.f32.mrb[0].mxu0
  %v2336 = vpop.f32.mrb[0].mxu0
  %v2337 = vadd.f32 0.0, %v2336
  %v2338 = vpop.f32.mrb[0].mxu0
  %2339 = vdwg.mxu0
  %v2340 = vadd.f32 %v2293, %v2334
  %v2341 = vadd.f32 %v2296, %v2337
  %2342 = vmatprep.subr.bf16.mxu0 0
  %2343 = vmatpush1.bf16.msra.mxu0 %v2208
  %2344 = vmatprep.subr.bf16.mxu0 0
  %2345 = vmatpush1.bf16.msra.mxu0 0
  %2346 = vmatprep.subr.bf16.mxu0 0
  %2347 = vmatpush1.bf16.msra.mxu0 0
  %2348 = vmatprep.subr.bf16.mxu0 0
  %2349 = vmatpush1.bf16.msra.mxu0 0
  %2350 = vmatprep.subr.bf16.mxu0 0
  %2351 = vmatpush1.bf16.msra.mxu0 0
  %2352 = vmatprep.subr.bf16.mxu0 0
  %2353 = vmatpush1.bf16.msra.mxu0 0
  %2354 = vmatprep.subr.bf16.mxu0 0
  %2355 = vmatpush1.bf16.msra.mxu0 0
  %2356 = vmatprep.subr.bf16.mxu0 0
  %2357 = vmatpush1.bf16.msra.mxu0 0
  %2358 = vmatprep.subr.bf16.mxu0 0
  %2359 = vmatpush1.bf16.msra.mxu0 0
  %2360 = vmatprep.subr.bf16.mxu0 0
  %2361 = vmatpush1.bf16.msra.mxu0 0
  %2362 = vmatprep.subr.bf16.mxu0 0
  %2363 = vmatpush1.bf16.msra.mxu0 0
  %2364 = vmatprep.subr.bf16.mxu0 0
  %2365 = vmatpush1.bf16.msra.mxu0 0
  %2366 = vmatprep.subr.bf16.mxu0 0
  %2367 = vmatpush1.bf16.msra.mxu0 0
  %2368 = vmatprep.subr.bf16.mxu0 0
  %2369 = vmatpush1.bf16.msra.mxu0 0
  %2370 = vmatprep.subr.bf16.mxu0 0
  %2371 = vmatpush1.bf16.msra.mxu0 0
  %2372 = vmatprep.subr.bf16.mxu0 0
  %2373 = vmatpush1.bf16.msra.mxu0 0
  %2374 = vmatprep.mubr.bf16.mxu0 0
  %2375 = vmatmul.mubr.bf16.gmra.mrb[0].mxu0 %v531
  %v2376 = vpop.f32.mrb[0].mxu0
  %v2377 = vadd.f32 0.0, %v2376
  %v2378 = vpop.f32.mrb[0].mxu0
  %v2379 = vpop.f32.mrb[0].mxu0
  %v2380 = vadd.f32 0.0, %v2379
  %v2381 = vpop.f32.mrb[0].mxu0
  %2382 = vdwg.mxu0
  %2383 = vmatprep.subr.bf16.mxu0 0
  %2384 = vmatpush1.bf16.msra.mxu0 %v2203
  %2385 = vmatprep.subr.bf16.mxu0 0
  %2386 = vmatpush1.bf16.msra.mxu0 0
  %2387 = vmatprep.subr.bf16.mxu0 0
  %2388 = vmatpush1.bf16.msra.mxu0 0
  %2389 = vmatprep.subr.bf16.mxu0 0
  %2390 = vmatpush1.bf16.msra.mxu0 0
  %2391 = vmatprep.subr.bf16.mxu0 0
  %2392 = vmatpush1.bf16.msra.mxu0 0
  %2393 = vmatprep.subr.bf16.mxu0 0
  %2394 = vmatpush1.bf16.msra.mxu0 0
  %2395 = vmatprep.subr.bf16.mxu0 0
  %2396 = vmatpush1.bf16.msra.mxu0 0
  %2397 = vmatprep.subr.bf16.mxu0 0
  %2398 = vmatpush1.bf16.msra.mxu0 0
  %2399 = vmatprep.subr.bf16.mxu0 0
  %2400 = vmatpush1.bf16.msra.mxu0 0
  %2401 = vmatprep.subr.bf16.mxu0 0
  %2402 = vmatpush1.bf16.msra.mxu0 0
  %2403 = vmatprep.subr.bf16.mxu0 0
  %2404 = vmatpush1.bf16.msra.mxu0 0
  %2405 = vmatprep.subr.bf16.mxu0 0
  %2406 = vmatpush1.bf16.msra.mxu0 0
  %2407 = vmatprep.subr.bf16.mxu0 0
  %2408 = vmatpush1.bf16.msra.mxu0 0
  %2409 = vmatprep.subr.bf16.mxu0 0
  %2410 = vmatpush1.bf16.msra.mxu0 0
  %2411 = vmatprep.subr.bf16.mxu0 0
  %2412 = vmatpush1.bf16.msra.mxu0 0
  %2413 = vmatprep.subr.bf16.mxu0 0
  %2414 = vmatpush1.bf16.msra.mxu0 0
  %2415 = vmatprep.mubr.bf16.mxu0 0
  %2416 = vmatmul.mubr.bf16.gmra.mrb[0].mxu0 %v531
  %v2417 = vpop.f32.mrb[0].mxu0
  %v2418 = vadd.f32 %v2377, %v2417
  %v2419 = vpop.f32.mrb[0].mxu0
  %v2420 = vpop.f32.mrb[0].mxu0
  %v2421 = vadd.f32 %v2380, %v2420
  %v2422 = vpop.f32.mrb[0].mxu0
  %2423 = vdwg.mxu0
  %2424 = vmatprep.subr.bf16.mxu0 0
  %2425 = vmatpush1.bf16.msra.mxu0 %v2203
  %2426 = vmatprep.subr.bf16.mxu0 0
  %2427 = vmatpush1.bf16.msra.mxu0 0
  %2428 = vmatprep.subr.bf16.mxu0 0
  %2429 = vmatpush1.bf16.msra.mxu0 0
  %2430 = vmatprep.subr.bf16.mxu0 0
  %2431 = vmatpush1.bf16.msra.mxu0 0
  %2432 = vmatprep.subr.bf16.mxu0 0
  %2433 = vmatpush1.bf16.msra.mxu0 0
  %2434 = vmatprep.subr.bf16.mxu0 0
  %2435 = vmatpush1.bf16.msra.mxu0 0
  %2436 = vmatprep.subr.bf16.mxu0 0
  %2437 = vmatpush1.bf16.msra.mxu0 0
  %2438 = vmatprep.subr.bf16.mxu0 0
  %2439 = vmatpush1.bf16.msra.mxu0 0
  %2440 = vmatprep.subr.bf16.mxu0 0
  %2441 = vmatpush1.bf16.msra.mxu0 0
  %2442 = vmatprep.subr.bf16.mxu0 0
  %2443 = vmatpush1.bf16.msra.mxu0 0
  %2444 = vmatprep.subr.bf16.mxu0 0
  %2445 = vmatpush1.bf16.msra.mxu0 0
  %2446 = vmatprep.subr.bf16.mxu0 0
  %2447 = vmatpush1.bf16.msra.mxu0 0
  %2448 = vmatprep.subr.bf16.mxu0 0
  %2449 = vmatpush1.bf16.msra.mxu0 0
  %2450 = vmatprep.subr.bf16.mxu0 0
  %2451 = vmatpush1.bf16.msra.mxu0 0
  %2452 = vmatprep.subr.bf16.mxu0 0
  %2453 = vmatpush1.bf16.msra.mxu0 0
  %2454 = vmatprep.subr.bf16.mxu0 0
  %2455 = vmatpush1.bf16.msra.mxu0 0
  %2456 = vmatprep.mubr.bf16.mxu0 0
  %2457 = vmatmul.mubr.bf16.gmra.mrb[0].mxu0 %v616
  %v2458 = vpop.f32.mrb[0].mxu0
  %v2459 = vadd.f32 0.0, %v2458
  %v2460 = vpop.f32.mrb[0].mxu0
  %v2461 = vpop.f32.mrb[0].mxu0
  %v2462 = vadd.f32 0.0, %v2461
  %v2463 = vpop.f32.mrb[0].mxu0
  %2464 = vdwg.mxu0
  %v2465 = vadd.f32 %v2418, %v2459
  %v2466 = vadd.f32 %v2421, %v2462
  %2467 = vmatprep.subr.bf16.mxu0 0
  %2468 = vmatpush1.bf16.msra.mxu0 %v2216
  %2469 = vmatprep.subr.bf16.mxu0 0
  %2470 = vmatpush1.bf16.msra.mxu0 0
  %2471 = vmatprep.subr.bf16.mxu0 0
  %2472 = vmatpush1.bf16.msra.mxu0 0
  %2473 = vmatprep.subr.bf16.mxu0 0
  %2474 = vmatpush1.bf16.msra.mxu0 0
  %2475 = vmatprep.subr.bf16.mxu0 0
  %2476 = vmatpush1.bf16.msra.mxu0 0
  %2477 = vmatprep.subr.bf16.mxu0 0
  %2478 = vmatpush1.bf16.msra.mxu0 0
  %2479 = vmatprep.subr.bf16.mxu0 0
  %2480 = vmatpush1.bf16.msra.mxu0 0
  %2481 = vmatprep.subr.bf16.mxu0 0
  %2482 = vmatpush1.bf16.msra.mxu0 0
  %2483 = vmatprep.subr.bf16.mxu0 0
  %2484 = vmatpush1.bf16.msra.mxu0 0
  %2485 = vmatprep.subr.bf16.mxu0 0
  %2486 = vmatpush1.bf16.msra.mxu0 0
  %2487 = vmatprep.subr.bf16.mxu0 0
  %2488 = vmatpush1.bf16.msra.mxu0 0
  %2489 = vmatprep.subr.bf16.mxu0 0
  %2490 = vmatpush1.bf16.msra.mxu0 0
  %2491 = vmatprep.subr.bf16.mxu0 0
  %2492 = vmatpush1.bf16.msra.mxu0 0
  %2493 = vmatprep.subr.bf16.mxu0 0
  %2494 = vmatpush1.bf16.msra.mxu0 0
  %2495 = vmatprep.subr.bf16.mxu0 0
  %2496 = vmatpush1.bf16.msra.mxu0 0
  %2497 = vmatprep.subr.bf16.mxu0 0
  %2498 = vmatpush1.bf16.msra.mxu0 0
  %2499 = vmatprep.mubr.bf16.mxu0 0
  %2500 = vmatmul.mubr.bf16.gmra.mrb[0].mxu0 %v1092
  %v2501 = vpop.f32.mrb[0].mxu0
  %v2502 = vadd.f32 0.0, %v2501
  %v2503 = vpop.f32.mrb[0].mxu0
  %v2504 = vpop.f32.mrb[0].mxu0
  %v2505 = vadd.f32 0.0, %v2504
  %v2506 = vpop.f32.mrb[0].mxu0
  %2507 = vdwg.mxu0
  %2508 = vmatprep.subr.bf16.mxu0 0
  %2509 = vmatpush1.bf16.msra.mxu0 %v2211
  %2510 = vmatprep.subr.bf16.mxu0 0
  %2511 = vmatpush1.bf16.msra.mxu0 0
  %2512 = vmatprep.subr.bf16.mxu0 0
  %2513 = vmatpush1.bf16.msra.mxu0 0
  %2514 = vmatprep.subr.bf16.mxu0 0
  %2515 = vmatpush1.bf16.msra.mxu0 0
  %2516 = vmatprep.subr.bf16.mxu0 0
  %2517 = vmatpush1.bf16.msra.mxu0 0
  %2518 = vmatprep.subr.bf16.mxu0 0
  %2519 = vmatpush1.bf16.msra.mxu0 0
  %2520 = vmatprep.subr.bf16.mxu0 0
  %2521 = vmatpush1.bf16.msra.mxu0 0
  %2522 = vmatprep.subr.bf16.mxu0 0
  %2523 = vmatpush1.bf16.msra.mxu0 0
  %2524 = vmatprep.subr.bf16.mxu0 0
  %2525 = vmatpush1.bf16.msra.mxu0 0
  %2526 = vmatprep.subr.bf16.mxu0 0
  %2527 = vmatpush1.bf16.msra.mxu0 0
  %2528 = vmatprep.subr.bf16.mxu0 0
  %2529 = vmatpush1.bf16.msra.mxu0 0
  %2530 = vmatprep.subr.bf16.mxu0 0
  %2531 = vmatpush1.bf16.msra.mxu0 0
  %2532 = vmatprep.subr.bf16.mxu0 0
  %2533 = vmatpush1.bf16.msra.mxu0 0
  %2534 = vmatprep.subr.bf16.mxu0 0
  %2535 = vmatpush1.bf16.msra.mxu0 0
  %2536 = vmatprep.subr.bf16.mxu0 0
  %2537 = vmatpush1.bf16.msra.mxu0 0
  %2538 = vmatprep.subr.bf16.mxu0 0
  %2539 = vmatpush1.bf16.msra.mxu0 0
  %2540 = vmatprep.mubr.bf16.mxu0 0
  %2541 = vmatmul.mubr.bf16.gmra.mrb[0].mxu0 %v1092
  %v2542 = vpop.f32.mrb[0].mxu0
  %v2543 = vadd.f32 %v2502, %v2542
  %v2544 = vpop.f32.mrb[0].mxu0
  %v2545 = vpop.f32.mrb[0].mxu0
  %v2546 = vadd.f32 %v2505, %v2545
  %v2547 = vpop.f32.mrb[0].mxu0
  %2548 = vdwg.mxu0
  %2549 = vmatprep.subr.bf16.mxu0 0
  %2550 = vmatpush1.bf16.msra.mxu0 %v2211
  %2551 = vmatprep.subr.bf16.mxu0 0
  %2552 = vmatpush1.bf16.msra.mxu0 0
  %2553 = vmatprep.subr.bf16.mxu0 0
  %2554 = vmatpush1.bf16.msra.mxu0 0
  %2555 = vmatprep.subr.bf16.mxu0 0
  %2556 = vmatpush1.bf16.msra.mxu0 0
  %2557 = vmatprep.subr.bf16.mxu0 0
  %2558 = vmatpush1.bf16.msra.mxu0 0
  %2559 = vmatprep.subr.bf16.mxu0 0
  %2560 = vmatpush1.bf16.msra.mxu0 0
  %2561 = vmatprep.subr.bf16.mxu0 0
  %2562 = vmatpush1.bf16.msra.mxu0 0
  %2563 = vmatprep.subr.bf16.mxu0 0
  %2564 = vmatpush1.bf16.msra.mxu0 0
  %2565 = vmatprep.subr.bf16.mxu0 0
  %2566 = vmatpush1.bf16.msra.mxu0 0
  %2567 = vmatprep.subr.bf16.mxu0 0
  %2568 = vmatpush1.bf16.msra.mxu0 0
  %2569 = vmatprep.subr.bf16.mxu0 0
  %2570 = vmatpush1.bf16.msra.mxu0 0
  %2571 = vmatprep.subr.bf16.mxu0 0
  %2572 = vmatpush1.bf16.msra.mxu0 0
  %2573 = vmatprep.subr.bf16.mxu0 0
  %2574 = vmatpush1.bf16.msra.mxu0 0
  %2575 = vmatprep.subr.bf16.mxu0 0
  %2576 = vmatpush1.bf16.msra.mxu0 0
  %2577 = vmatprep.subr.bf16.mxu0 0
  %2578 = vmatpush1.bf16.msra.mxu0 0
  %2579 = vmatprep.subr.bf16.mxu0 0
  %2580 = vmatpush1.bf16.msra.mxu0 0
  %2581 = vmatprep.mubr.bf16.mxu0 0
  %2582 = vmatmul.mubr.bf16.gmra.mrb[0].mxu0 %v1177
  %v2583 = vpop.f32.mrb[0].mxu0
  %v2584 = vadd.f32 0.0, %v2583
  %v2585 = vpop.f32.mrb[0].mxu0
  %v2586 = vpop.f32.mrb[0].mxu0
  %v2587 = vadd.f32 0.0, %v2586
  %v2588 = vpop.f32.mrb[0].mxu0
  %2589 = vdwg.mxu0
  %v2590 = vadd.f32 %v2543, %v2584
  %v2591 = vadd.f32 %v2546, %v2587
  %v2592 = vadd.f32 %v2340, %v2465
  %v2593 = vadd.f32 %v2341, %v2466
  %v2594 = vsub.f32 %v2590, %v2340
  %v2595 = vsub.f32 %v2591, %v2341
  %v2596 = vadd.f32 %v2594, %v2465
  %v2597 = vadd.f32 %v2595, %v2466
  %v2598 = vpack.c.bf16 %v2593, %v2592
  %v2599 = vunpack.c.l.bf16 %v2598
  %v2600 = vunpack.c.h.bf16 %v2598
  %v2601 = vsub.f32 %v2592, %v2599
  %v2602 = vsub.f32 %v2593, %v2600
  %v2603 = vpack.c.bf16 %v2602, %v2601
  %v2605 = vsel %vm398, %v2598, 0
  %2607 = vmatprep.subr.bf16.mxu0 0
  %2608 = vmatpush1.bf16.msra.mxu0 %v104
  %2609 = vmatprep.subr.bf16.mxu0 0
  %2610 = vmatpush1.bf16.msra.mxu0 0
  %2611 = vmatprep.subr.bf16.mxu0 0
  %2612 = vmatpush1.bf16.msra.mxu0 0
  %2613 = vmatprep.subr.bf16.mxu0 0
  %2614 = vmatpush1.bf16.msra.mxu0 0
  %2615 = vmatprep.subr.bf16.mxu0 0
  %2616 = vmatpush1.bf16.msra.mxu0 0
  %2617 = vmatprep.subr.bf16.mxu0 0
  %2618 = vmatpush1.bf16.msra.mxu0 0
  %2619 = vmatprep.subr.bf16.mxu0 0
  %2620 = vmatpush1.bf16.msra.mxu0 0
  %2621 = vmatprep.subr.bf16.mxu0 0
  %2622 = vmatpush1.bf16.msra.mxu0 0
  %2623 = vmatprep.subr.bf16.mxu0 0
  %2624 = vmatpush1.bf16.msra.mxu0 0
  %2625 = vmatprep.subr.bf16.mxu0 0
  %2626 = vmatpush1.bf16.msra.mxu0 0
  %2627 = vmatprep.subr.bf16.mxu0 0
  %2628 = vmatpush1.bf16.msra.mxu0 0
  %2629 = vmatprep.subr.bf16.mxu0 0
  %2630 = vmatpush1.bf16.msra.mxu0 0
  %2631 = vmatprep.subr.bf16.mxu0 0
  %2632 = vmatpush1.bf16.msra.mxu0 0
  %2633 = vmatprep.subr.bf16.mxu0 0
  %2634 = vmatpush1.bf16.msra.mxu0 0
  %2635 = vmatprep.subr.bf16.mxu0 0
  %2636 = vmatpush1.bf16.msra.mxu0 0
  %2637 = vmatprep.subr.bf16.mxu0 0
  %2638 = vmatpush1.bf16.msra.mxu0 0
  %2639 = vmatprep.mubr.bf16.mxu0 0
  %2640 = vmatmul.mubr.bf16.gmra.mrb[0].mxu0 %v2605
  %v2641 = vpop.f32.mrb[0].mxu0
  %v2642 = vadd.f32 0.0, %v2641
  %v2643 = vpop.f32.mrb[0].mxu0
  %v2644 = vpop.f32.mrb[0].mxu0
  %v2645 = vadd.f32 0.0, %v2644
  %v2646 = vpop.f32.mrb[0].mxu0
  %2647 = vdwg.mxu0
  %2648 = vmatprep.subr.bf16.mxu0 0
  %2649 = vmatpush1.bf16.msra.mxu0 %v99
  %2650 = vmatprep.subr.bf16.mxu0 0
  %2651 = vmatpush1.bf16.msra.mxu0 0
  %2652 = vmatprep.subr.bf16.mxu0 0
  %2653 = vmatpush1.bf16.msra.mxu0 0
  %2654 = vmatprep.subr.bf16.mxu0 0
  %2655 = vmatpush1.bf16.msra.mxu0 0
  %2656 = vmatprep.subr.bf16.mxu0 0
  %2657 = vmatpush1.bf16.msra.mxu0 0
  %2658 = vmatprep.subr.bf16.mxu0 0
  %2659 = vmatpush1.bf16.msra.mxu0 0
  %2660 = vmatprep.subr.bf16.mxu0 0
  %2661 = vmatpush1.bf16.msra.mxu0 0
  %2662 = vmatprep.subr.bf16.mxu0 0
  %2663 = vmatpush1.bf16.msra.mxu0 0
  %2664 = vmatprep.subr.bf16.mxu0 0
  %2665 = vmatpush1.bf16.msra.mxu0 0
  %2666 = vmatprep.subr.bf16.mxu0 0
  %2667 = vmatpush1.bf16.msra.mxu0 0
  %2668 = vmatprep.subr.bf16.mxu0 0
  %2669 = vmatpush1.bf16.msra.mxu0 0
  %2670 = vmatprep.subr.bf16.mxu0 0
  %2671 = vmatpush1.bf16.msra.mxu0 0
  %2672 = vmatprep.subr.bf16.mxu0 0
  %2673 = vmatpush1.bf16.msra.mxu0 0
  %2674 = vmatprep.subr.bf16.mxu0 0
  %2675 = vmatpush1.bf16.msra.mxu0 0
  %2676 = vmatprep.subr.bf16.mxu0 0
  %2677 = vmatpush1.bf16.msra.mxu0 0
  %2678 = vmatprep.subr.bf16.mxu0 0
  %2679 = vmatpush1.bf16.msra.mxu0 0
  %2680 = vmatprep.mubr.bf16.mxu0 0
  %2681 = vmatmul.mubr.bf16.gmra.mrb[0].mxu0 %v2605
  %v2682 = vpop.f32.mrb[0].mxu0
  %v2683 = vadd.f32 %v2642, %v2682
  %v2684 = vpop.f32.mrb[0].mxu0
  %v2685 = vpop.f32.mrb[0].mxu0
  %v2686 = vadd.f32 %v2645, %v2685
  %v2687 = vpop.f32.mrb[0].mxu0
  %2688 = vdwg.mxu0
  %v2690 = vsel %vm398, %v2603, 0
  %2692 = vmatprep.subr.bf16.mxu0 0
  %2693 = vmatpush1.bf16.msra.mxu0 %v99
  %2694 = vmatprep.subr.bf16.mxu0 0
  %2695 = vmatpush1.bf16.msra.mxu0 0
  %2696 = vmatprep.subr.bf16.mxu0 0
  %2697 = vmatpush1.bf16.msra.mxu0 0
  %2698 = vmatprep.subr.bf16.mxu0 0
  %2699 = vmatpush1.bf16.msra.mxu0 0
  %2700 = vmatprep.subr.bf16.mxu0 0
  %2701 = vmatpush1.bf16.msra.mxu0 0
  %2702 = vmatprep.subr.bf16.mxu0 0
  %2703 = vmatpush1.bf16.msra.mxu0 0
  %2704 = vmatprep.subr.bf16.mxu0 0
  %2705 = vmatpush1.bf16.msra.mxu0 0
  %2706 = vmatprep.subr.bf16.mxu0 0
  %2707 = vmatpush1.bf16.msra.mxu0 0
  %2708 = vmatprep.subr.bf16.mxu0 0
  %2709 = vmatpush1.bf16.msra.mxu0 0
  %2710 = vmatprep.subr.bf16.mxu0 0
  %2711 = vmatpush1.bf16.msra.mxu0 0
  %2712 = vmatprep.subr.bf16.mxu0 0
  %2713 = vmatpush1.bf16.msra.mxu0 0
  %2714 = vmatprep.subr.bf16.mxu0 0
  %2715 = vmatpush1.bf16.msra.mxu0 0
  %2716 = vmatprep.subr.bf16.mxu0 0
  %2717 = vmatpush1.bf16.msra.mxu0 0
  %2718 = vmatprep.subr.bf16.mxu0 0
  %2719 = vmatpush1.bf16.msra.mxu0 0
  %2720 = vmatprep.subr.bf16.mxu0 0
  %2721 = vmatpush1.bf16.msra.mxu0 0
  %2722 = vmatprep.subr.bf16.mxu0 0
  %2723 = vmatpush1.bf16.msra.mxu0 0
  %2724 = vmatprep.mubr.bf16.mxu0 0
  %2725 = vmatmul.mubr.bf16.gmra.mrb[0].mxu0 %v2690
  %v2726 = vpop.f32.mrb[0].mxu0
  %v2727 = vadd.f32 0.0, %v2726
  %v2728 = vpop.f32.mrb[0].mxu0
  %v2729 = vpop.f32.mrb[0].mxu0
  %v2730 = vadd.f32 0.0, %v2729
  %v2731 = vpop.f32.mrb[0].mxu0
  %2732 = vdwg.mxu0
  %v2733 = vadd.f32 %v2683, %v2727
  %v2734 = vadd.f32 %v2686, %v2730
  %v2735 = vpack.c.bf16 %v2597, %v2596
  %v2736 = vunpack.c.l.bf16 %v2735
  %v2737 = vunpack.c.h.bf16 %v2735
  %v2738 = vsub.f32 %v2596, %v2736
  %v2739 = vsub.f32 %v2597, %v2737
  %v2740 = vpack.c.bf16 %v2739, %v2738
  %v2742 = vsel %vm398, %v2735, 0
  %2744 = vmatprep.subr.bf16.mxu0 0
  %2745 = vmatpush1.bf16.msra.mxu0 %v112
  %2746 = vmatprep.subr.bf16.mxu0 0
  %2747 = vmatpush1.bf16.msra.mxu0 0
  %2748 = vmatprep.subr.bf16.mxu0 0
  %2749 = vmatpush1.bf16.msra.mxu0 0
  %2750 = vmatprep.subr.bf16.mxu0 0
  %2751 = vmatpush1.bf16.msra.mxu0 0
  %2752 = vmatprep.subr.bf16.mxu0 0
  %2753 = vmatpush1.bf16.msra.mxu0 0
  %2754 = vmatprep.subr.bf16.mxu0 0
  %2755 = vmatpush1.bf16.msra.mxu0 0
  %2756 = vmatprep.subr.bf16.mxu0 0
  %2757 = vmatpush1.bf16.msra.mxu0 0
  %2758 = vmatprep.subr.bf16.mxu0 0
  %2759 = vmatpush1.bf16.msra.mxu0 0
  %2760 = vmatprep.subr.bf16.mxu0 0
  %2761 = vmatpush1.bf16.msra.mxu0 0
  %2762 = vmatprep.subr.bf16.mxu0 0
  %2763 = vmatpush1.bf16.msra.mxu0 0
  %2764 = vmatprep.subr.bf16.mxu0 0
  %2765 = vmatpush1.bf16.msra.mxu0 0
  %2766 = vmatprep.subr.bf16.mxu0 0
  %2767 = vmatpush1.bf16.msra.mxu0 0
  %2768 = vmatprep.subr.bf16.mxu0 0
  %2769 = vmatpush1.bf16.msra.mxu0 0
  %2770 = vmatprep.subr.bf16.mxu0 0
  %2771 = vmatpush1.bf16.msra.mxu0 0
  %2772 = vmatprep.subr.bf16.mxu0 0
  %2773 = vmatpush1.bf16.msra.mxu0 0
  %2774 = vmatprep.subr.bf16.mxu0 0
  %2775 = vmatpush1.bf16.msra.mxu0 0
  %2776 = vmatprep.mubr.bf16.mxu0 0
  %2777 = vmatmul.mubr.bf16.gmra.mrb[0].mxu0 %v2742
  %v2778 = vpop.f32.mrb[0].mxu0
  %v2779 = vadd.f32 0.0, %v2778
  %v2780 = vpop.f32.mrb[0].mxu0
  %v2781 = vpop.f32.mrb[0].mxu0
  %v2782 = vadd.f32 0.0, %v2781
  %v2783 = vpop.f32.mrb[0].mxu0
  %2784 = vdwg.mxu0
  %2785 = vmatprep.subr.bf16.mxu0 0
  %2786 = vmatpush1.bf16.msra.mxu0 %v107
  %2787 = vmatprep.subr.bf16.mxu0 0
  %2788 = vmatpush1.bf16.msra.mxu0 0
  %2789 = vmatprep.subr.bf16.mxu0 0
  %2790 = vmatpush1.bf16.msra.mxu0 0
  %2791 = vmatprep.subr.bf16.mxu0 0
  %2792 = vmatpush1.bf16.msra.mxu0 0
  %2793 = vmatprep.subr.bf16.mxu0 0
  %2794 = vmatpush1.bf16.msra.mxu0 0
  %2795 = vmatprep.subr.bf16.mxu0 0
  %2796 = vmatpush1.bf16.msra.mxu0 0
  %2797 = vmatprep.subr.bf16.mxu0 0
  %2798 = vmatpush1.bf16.msra.mxu0 0
  %2799 = vmatprep.subr.bf16.mxu0 0
  %2800 = vmatpush1.bf16.msra.mxu0 0
  %2801 = vmatprep.subr.bf16.mxu0 0
  %2802 = vmatpush1.bf16.msra.mxu0 0
  %2803 = vmatprep.subr.bf16.mxu0 0
  %2804 = vmatpush1.bf16.msra.mxu0 0
  %2805 = vmatprep.subr.bf16.mxu0 0
  %2806 = vmatpush1.bf16.msra.mxu0 0
  %2807 = vmatprep.subr.bf16.mxu0 0
  %2808 = vmatpush1.bf16.msra.mxu0 0
  %2809 = vmatprep.subr.bf16.mxu0 0
  %2810 = vmatpush1.bf16.msra.mxu0 0
  %2811 = vmatprep.subr.bf16.mxu0 0
  %2812 = vmatpush1.bf16.msra.mxu0 0
  %2813 = vmatprep.subr.bf16.mxu0 0
  %2814 = vmatpush1.bf16.msra.mxu0 0
  %2815 = vmatprep.subr.bf16.mxu0 0
  %2816 = vmatpush1.bf16.msra.mxu0 0
  %2817 = vmatprep.mubr.bf16.mxu0 0
  %2818 = vmatmul.mubr.bf16.gmra.mrb[0].mxu0 %v2742
  %v2819 = vpop.f32.mrb[0].mxu0
  %v2820 = vadd.f32 %v2779, %v2819
  %v2821 = vpop.f32.mrb[0].mxu0
  %v2822 = vpop.f32.mrb[0].mxu0
  %v2823 = vadd.f32 %v2782, %v2822
  %v2824 = vpop.f32.mrb[0].mxu0
  %2825 = vdwg.mxu0
  %v2827 = vsel %vm398, %v2740, 0
  %2829 = vmatprep.subr.bf16.mxu0 0
  %2830 = vmatpush1.bf16.msra.mxu0 %v107
  %2831 = vmatprep.subr.bf16.mxu0 0
  %2832 = vmatpush1.bf16.msra.mxu0 0
  %2833 = vmatprep.subr.bf16.mxu0 0
  %2834 = vmatpush1.bf16.msra.mxu0 0
  %2835 = vmatprep.subr.bf16.mxu0 0
  %2836 = vmatpush1.bf16.msra.mxu0 0
  %2837 = vmatprep.subr.bf16.mxu0 0
  %2838 = vmatpush1.bf16.msra.mxu0 0
  %2839 = vmatprep.subr.bf16.mxu0 0
  %2840 = vmatpush1.bf16.msra.mxu0 0
  %2841 = vmatprep.subr.bf16.mxu0 0
  %2842 = vmatpush1.bf16.msra.mxu0 0
  %2843 = vmatprep.subr.bf16.mxu0 0
  %2844 = vmatpush1.bf16.msra.mxu0 0
  %2845 = vmatprep.subr.bf16.mxu0 0
  %2846 = vmatpush1.bf16.msra.mxu0 0
  %2847 = vmatprep.subr.bf16.mxu0 0
  %2848 = vmatpush1.bf16.msra.mxu0 0
  %2849 = vmatprep.subr.bf16.mxu0 0
  %2850 = vmatpush1.bf16.msra.mxu0 0
  %2851 = vmatprep.subr.bf16.mxu0 0
  %2852 = vmatpush1.bf16.msra.mxu0 0
  %2853 = vmatprep.subr.bf16.mxu0 0
  %2854 = vmatpush1.bf16.msra.mxu0 0
  %2855 = vmatprep.subr.bf16.mxu0 0
  %2856 = vmatpush1.bf16.msra.mxu0 0
  %2857 = vmatprep.subr.bf16.mxu0 0
  %2858 = vmatpush1.bf16.msra.mxu0 0
  %2859 = vmatprep.subr.bf16.mxu0 0
  %2860 = vmatpush1.bf16.msra.mxu0 0
  %2861 = vmatprep.mubr.bf16.mxu0 0
  %2862 = vmatmul.mubr.bf16.gmra.mrb[0].mxu0 %v2827
  %v2863 = vpop.f32.mrb[0].mxu0
  %v2864 = vadd.f32 0.0, %v2863
  %v2865 = vpop.f32.mrb[0].mxu0
  %v2866 = vpop.f32.mrb[0].mxu0
  %v2867 = vadd.f32 0.0, %v2866
  %v2868 = vpop.f32.mrb[0].mxu0
  %2869 = vdwg.mxu0
  %v2870 = vadd.f32 %v2820, %v2864
  %v2871 = vadd.f32 %v2823, %v2867
  %v2872 = vadd.f32 %v2733, %v2870
  %v2873 = vadd.f32 %v2734, %v2871
  %s2874 = scalar_lea.vmem %s9, 16
  %2875 = vst.msk [vmem:[%s2874] sm:$0xff] %vm121, %v2872
  %2876 = vst.msk [vmem:[%s2874 + $0x8] sm:$0xff] %vm121, %v2873
  // Predicated region
  $region38: #{data_consistency_in_kspace.1} parent=0 // pred_check
    _
  $region39: #{data_consistency_in_kspace.1} parent=0 // pred_check_branch
    %2878 = sbr.rel (0) target = $region41
  $region40: #{data_consistency_in_kspace.1} parent=0 // pred_region
    _
  $region41: #{data_consistency_in_kspace.1} parent=0 // pred_fallthru
    _
  // Predicated region
  $region42: #{data_consistency_in_kspace.1} parent=0 // pred_check
    _
  $region43: #{data_consistency_in_kspace.1} parent=0 // pred_check_branch
    %2880 = sbr.rel (0) target = $region45
  $region44: #{data_consistency_in_kspace.1} parent=0 // pred_region
    _
  $region45: #{data_consistency_in_kspace.1} parent=0 // pred_fallthru
    _

</llo_original>
